<compile_context>
chip_gen: v5e
topology: v5e:2x2
jax: 0.10.0
libtpu: 0.0.40
codegen_flags: <defaults>
</compile_context>

<pallas_src>
import functools

import numpy as np
import jax
import jax.numpy as jnp
from jax import lax
from jax.experimental import pallas as pl
from jax.experimental.pallas import tpu as pltpu

EPS = 1e-5
NEG_SLOPE = 0.2
# Matmul operand dtype inside the kernel.  bf16 doubles MXU throughput on v6e/v7x
# (accumulation stays f32 via preferred_element_type); f32 keeps the correctness
# check tight on every generation (incl. v5e, which has no bf16 VPU anyway).
MXU_DTYPE = jnp.float32


# ----------------------------- fused kernel --------------------------------

def _fused_patchgan_kernel(x_ref, *refs, plan):
    """Whole-network fused forward for one batch element.

    x_ref : (1, Ck0, L0) layer-0 input: padded + space-to-depth'd image, flattened
                         channels-first (channels on sublanes, pixels on lanes).
    refs  : per layer (w_ref (Cout, K), b_ref (Cout, 1), sel_ref (G, M, Lnext)),
            followed by o_ref (1, Cout_last, Ho*Wo).
    """
    o_ref = refs[-1]
    layer_refs = refs[:-1]

    x = x_ref[0]                                            # (Ck0, L0), f32
    for li, meta in enumerate(plan):
        w_ref, b_ref, sel_ref = layer_refs[3 * li:3 * li + 3]
        ck, m = meta['ck'], meta['m']

        # conv as per-tap MXU matmuls accumulated in f32 (no im2col scratch,
        # no scratch stores -- only lane-offset reads feeding the MXU).
        w = w_ref[...].astype(MXU_DTYPE)
        xm = x.astype(MXU_DTYPE)
        acc = None
        for t, off in enumerate(meta['taps']):
            part = jnp.dot(w[:, t * ck:(t + 1) * ck], xm[:, off:off + m],
                           preferred_element_type=jnp.float32)
            acc = part if acc is None else acc + part

        # fused epilogue: folded conv-bias / BN shift (+ LeakyReLU), in f32.
        y = acc + b_ref[...]
        if meta['act']:
            y = jnp.where(y > 0, y, NEG_SLOPE * y)

        # Transition to the next layer's padded (+ space-to-depth) flattened input
        # layout -- or, for the last layer, compaction to the dense valid logits.
        # Pure MXU matmuls against constant 0/1 selection matrices; parity groups
        # land on 8-aligned sublane blocks via the channel-axis concatenate.
        ym = y.astype(MXU_DTYPE)
        sel = sel_ref[...].astype(MXU_DTYPE)
        pieces = [jnp.dot(ym, sel[g], preferred_element_type=jnp.float32)
                  for g in range(meta['groups'])]
        x = pieces[0] if meta['groups'] == 1 else jnp.concatenate(pieces, axis=0)

    o_ref[0] = x.astype(o_ref.dtype)


# ----------------------------- host-side layout prep --------------------------------

def _selection_matrices(ho, wo, wrow, m, next_stride):
    """0/1 matrices mapping a layer's flattened output (columns p = y*wrow + x,
    valid for x < wo) to the next layer's flattened padded (+s2d) input layout,
    or to the dense final logits when next_stride is None."""
    if next_stride == 2:
        hk, wk = (ho + 2) // 2, (wo + 2) // 2
        lout = hk * wk + 1                                   # +1 tail for last tap read
        sel = np.zeros((4, m, lout), np.float32)
        for r in range(2):
            for s in range(2):
                g = 2 * r + s
                for i in range(hk):
                    for j in range(wk):
                        y, x = 2 * i + r - 1, 2 * j + s - 1  # -1: zero padding
                        if 0 <= y < ho and 0 <= x < wo:
                            sel[g, y * wrow + x, i * wk + j] = 1.0
    elif next_stride == 1:
        hp, wp = ho + 2, wo + 2
        lout = hp * wp + 3                                   # +3 tail for last tap read
        sel = np.zeros((1, m, lout), np.float32)
        for i in range(hp):
            for j in range(wp):
                y, x = i - 1, j - 1
                if 0 <= y < ho and 0 <= x < wo:
                    sel[0, y * wrow + x, i * wp + j] = 1.0
    else:                                                    # final compaction
        sel = np.zeros((1, m, ho * wo), np.float32)
        for y in range(ho):
            for x in range(wo):
                sel[0, y * wrow + x, y * wo + x] = 1.0
    return sel


def _fold_layer(layer):
    """Fold conv-bias + eval-mode BatchNorm into the conv weights and a per-channel bias."""
    w = layer['w']
    cout = w.shape[-1]
    if layer['bn'] is None:
        bias = layer['b'] if layer['b'] is not None else jnp.zeros((cout,), jnp.float32)
        return w, bias
    bn = layer['bn']
    scale = bn['gamma'] / jnp.sqrt(bn['var'] + EPS)
    b = layer['b'] if layer['b'] is not None else 0.0
    return w * scale, (b - bn['mean']) * scale + bn['beta']


def _build_plan(params, H, W):
    """Static per-layer metadata + host-packed operands for the fused kernel."""
    assert params[0]['stride'] == 2
    plan, operands = [], []
    h, w_sp = H, W
    prev_lout = None
    for li, layer in enumerate(params):
        wgt, bias = _fold_layer(layer)
        kh, kw, cin, cout = wgt.shape
        assert (kh, kw) == (4, 4)
        stride = layer['stride']
        if stride == 2:
            assert h % 2 == 0 and w_sp % 2 == 0, "stride-2 layer needs even spatial dims"
            hk, wk = (h + 2) // 2, (w_sp + 2) // 2
            ck, wrow = 4 * cin, wk
            lin = hk * wk + 1
            taps = tuple(a * wk + b for a in range(2) for b in range(2))
            ho, wo = h // 2, w_sp // 2
            # (a,r,b,s,c,co) -> (a,b,r,s,c,co): tap index (a,b), per-tap channel (r,s,c)
            w2 = (wgt.reshape(2, 2, 2, 2, cin, cout)
                     .transpose(0, 2, 1, 3, 4, 5)
                     .reshape(16 * cin, cout).T)
        else:
            hp, wp = h + 2, w_sp + 2
            ck, wrow = cin, wp
            lin = hp * wp + 3
            taps = tuple(dy * wp + dx for dy in range(4) for dx in range(4))
            ho, wo = h - 1, w_sp - 1
            w2 = wgt.reshape(16 * cin, cout).T
        assert ho >= 1 and wo >= 1, "spatial size too small for this layer"
        if prev_lout is not None:
            assert lin == prev_lout
        m = ho * wrow
        next_stride = params[li + 1]['stride'] if li + 1 < len(params) else None
        sel = _selection_matrices(ho, wo, wrow, m, next_stride)
        plan.append(dict(ck=ck, lin=lin, m=m, taps=taps, cout=cout,
                         act=layer['act'], groups=sel.shape[0]))
        operands += [jnp.asarray(w2, jnp.float32),
                     jnp.asarray(bias, jnp.float32).reshape(cout, 1),
                     jnp.asarray(sel)]
        prev_lout = sel.shape[2]
        h, w_sp = ho, wo
    return plan, operands, (h, w_sp)


def _prep_input(x_nchw):
    """NCHW -> layer-0 kernel layout: pad 1, space-to-depth (2x2), channels-first
    flatten (channels on sublanes, pixels on lanes), +1 tail element."""
    n, c, h, w = x_nchw.shape
    hk, wk = (h + 2) // 2, (w + 2) // 2
    xp = jnp.pad(x_nchw.astype(jnp.float32), ((0, 0), (0, 0), (1, 1), (1, 1)))
    xs = (xp.reshape(n, c, hk, 2, wk, 2)
            .transpose(0, 3, 5, 1, 2, 4)          # (n, r, s, c, i, j)
            .reshape(n, 4 * c, hk * wk))
    return jnp.pad(xs, ((0, 0), (0, 0), (0, 1)))


def make_nlayer_discriminator(params, input_hw):
    """Returns a jit-able forward(x_nchw) using a single fused pallas_call."""
    H, W = input_hw
    plan, operands, (ho_f, wo_f) = _build_plan(params, H, W)
    cout_f = plan[-1]['cout']
    kernel = functools.partial(_fused_patchgan_kernel, plan=plan)

    in_specs = [pl.BlockSpec((1, plan[0]['ck'], plan[0]['lin']), lambda n: (n, 0, 0))]
    for arr in operands:
        if arr.ndim == 2:
            in_specs.append(pl.BlockSpec(arr.shape, lambda n: (0, 0)))
        else:
            in_specs.append(pl.BlockSpec(arr.shape, lambda n: (0, 0, 0)))

    def forward(x_nchw):
        n = x_nchw.shape[0]
        x0 = _prep_input(x_nchw)
        assert x0.shape == (n, plan[0]['ck'], plan[0]['lin'])
        out = pl.pallas_call(
            kernel,
            out_shape=jax.ShapeDtypeStruct((n, cout_f, ho_f * wo_f), jnp.float32),
            grid=(n,),
            in_specs=in_specs,
            out_specs=pl.BlockSpec((1, cout_f, ho_f * wo_f), lambda i: (i, 0, 0)),
            compiler_params=pltpu.CompilerParams(dimension_semantics=("parallel",)),
        )(x0, *operands)
        return out.reshape(n, cout_f, ho_f, wo_f)

    return forward


# ----------------------------- parameters --------------------------------

def init_params(key, input_nc=3, ndf=8, n_layers=3):
    """Parameters mirroring NLayerDiscriminator(input_nc, ndf, n_layers, BatchNorm2d)."""
    keys = jax.random.split(key, n_layers + 2)

    def conv_w(k, cin, cout):
        fan_in = 4 * 4 * cin
        return jax.random.normal(k, (4, 4, cin, cout), jnp.float32) / np.sqrt(fan_in)

    def bn_params(k, c):
        kg, kb, km, kv = jax.random.split(k, 4)
        return dict(gamma=1.0 + 0.1 * jax.random.normal(kg, (c,), jnp.float32),
                    beta=0.1 * jax.random.normal(kb, (c,), jnp.float32),
                    mean=0.1 * jax.random.normal(km, (c,), jnp.float32),
                    var=jnp.abs(1.0 + 0.1 * jax.random.normal(kv, (c,), jnp.float32)))

    layers = []
    k0a, k0b = jax.random.split(keys[0])
    layers.append(dict(w=conv_w(k0a, input_nc, ndf),
                       b=0.1 * jax.random.normal(k0b, (ndf,), jnp.float32),
                       bn=None, stride=2, act=True))
    nf_mult = 1
    for n in range(1, n_layers):
        nf_prev, nf_mult = nf_mult, min(2 ** n, 8)
        layers.append(dict(w=conv_w(keys[n], ndf * nf_prev, ndf * nf_mult),
                           b=None,  # bias=False with BatchNorm2d
                           bn=bn_params(jax.random.fold_in(keys[n], 1), ndf * nf_mult),
                           stride=2, act=True))
    nf_prev, nf_mult = nf_mult, min(2 ** n_layers, 8)
    layers.append(dict(w=conv_w(keys[n_layers], ndf * nf_prev, ndf * nf_mult),
                       b=None,
                       bn=bn_params(jax.random.fold_in(keys[n_layers], 1), ndf * nf_mult),
                       stride=1, act=True))
    kla, klb = jax.random.split(keys[n_layers + 1])
    layers.append(dict(w=conv_w(kla, ndf * nf_mult, 1),
                       b=0.1 * jax.random.normal(klb, (1,), jnp.float32),
                       bn=None, stride=1, act=False))
    return layers


# ----------------------------- pure-JAX reference --------------------------------

def _conv_layer_ref(x, layer):
    s = layer['stride']
    y = lax.conv_general_dilated(x, layer['w'], (s, s), ((1, 1), (1, 1)),
                                 dimension_numbers=('NHWC', 'HWIO', 'NHWC'))
    if layer['b'] is not None:
        y = y + layer['b']
    if layer['bn'] is not None:
        bn = layer['bn']
        y = (y - bn['mean']) * bn['gamma'] / jnp.sqrt(bn['var'] + EPS) + bn['beta']
    if layer['act']:
        y = jnp.where(y > 0, y, NEG_SLOPE * y)
    return y


def nlayer_discriminator_ref(x_nchw, params):
    x = jnp.transpose(x_nchw, (0, 2, 3, 1)).astype(jnp.float32)
    for layer in params:
        x = _conv_layer_ref(x, layer)
    return jnp.transpose(x, (0, 3, 1, 2))


# ----------------------------- main --------------------------------

if __name__ == "__main__":
    key = jax.random.PRNGKey(0)
    k_x, k_p = jax.random.split(key)

    # small shapes; 32x32 spatial so all five 4x4 convs produce >=1 output pixel
    N, C_in, H, W = 2, 3, 32, 32
    ndf, n_layers = 8, 3

    x = jax.random.normal(k_x, (N, C_in, H, W), jnp.float32)      # NCHW, like PyTorch
    params = init_params(k_p, C_in, ndf, n_layers)

    fwd = jax.jit(make_nlayer_discriminator(params, (H, W)))
    out = jax.block_until_ready(fwd(x))
    ref = jax.block_until_ready(nlayer_discriminator_ref(x, params))

    assert out.shape == (N, 1, 2, 2), out.shape
    np.testing.assert_allclose(np.asarray(out), np.asarray(ref), rtol=2e-3, atol=2e-3)

    print("KERNEL_OK")
</pallas_src>

<mosaic_0001>
module attributes {stable_mosaic.version = 11 : i64} {
  func.func @_fused_patchgan_kernel(%arg0: i32, %arg1: memref<1x12x290xf32, #tpu.memory_space<vmem>>, %arg2: memref<8x48xf32, #tpu.memory_space<vmem>>, %arg3: memref<8x1xf32, #tpu.memory_space<vmem>>, %arg4: memref<4x272x82xf32, #tpu.memory_space<vmem>>, %arg5: memref<16x128xf32, #tpu.memory_space<vmem>>, %arg6: memref<16x1xf32, #tpu.memory_space<vmem>>, %arg7: memref<4x72x26xf32, #tpu.memory_space<vmem>>, %arg8: memref<32x256xf32, #tpu.memory_space<vmem>>, %arg9: memref<32x1xf32, #tpu.memory_space<vmem>>, %arg10: memref<1x20x39xf32, #tpu.memory_space<vmem>>, %arg11: memref<64x512xf32, #tpu.memory_space<vmem>>, %arg12: memref<64x1xf32, #tpu.memory_space<vmem>>, %arg13: memref<1x18x28xf32, #tpu.memory_space<vmem>>, %arg14: memref<1x1024xf32, #tpu.memory_space<vmem>>, %arg15: memref<1x1xf32, #tpu.memory_space<vmem>>, %arg16: memref<1x10x4xf32, #tpu.memory_space<vmem>>, %arg17: memref<1x1x4xf32, #tpu.memory_space<vmem>>) attributes {dimension_semantics = [#tpu.dimension_semantics<parallel>], iteration_bounds = array<i64: 2>, scalar_prefetch = 0 : i64, scratch_operands = 0 : i64, tpu.core_type = #tpu.core_type<tc>, window_params = [{transform_indices = @transform_0, window_bounds = array<i64: 1, 12, 290>}, {pipeline_mode = #tpu.pipeline_mode<synchronous>, transform_indices = @transform_1, window_bounds = array<i64: 8, 48>}, {pipeline_mode = #tpu.pipeline_mode<synchronous>, transform_indices = @transform_2, window_bounds = array<i64: 8, 1>}, {pipeline_mode = #tpu.pipeline_mode<synchronous>, transform_indices = @transform_3, window_bounds = array<i64: 4, 272, 82>}, {pipeline_mode = #tpu.pipeline_mode<synchronous>, transform_indices = @transform_4, window_bounds = array<i64: 16, 128>}, {pipeline_mode = #tpu.pipeline_mode<synchronous>, transform_indices = @transform_5, window_bounds = array<i64: 16, 1>}, {pipeline_mode = #tpu.pipeline_mode<synchronous>, transform_indices = @transform_6, window_bounds = array<i64: 4, 72, 26>}, {pipeline_mode = #tpu.pipeline_mode<synchronous>, transform_indices = @transform_7, window_bounds = array<i64: 32, 256>}, {pipeline_mode = #tpu.pipeline_mode<synchronous>, transform_indices = @transform_8, window_bounds = array<i64: 32, 1>}, {pipeline_mode = #tpu.pipeline_mode<synchronous>, transform_indices = @transform_9, window_bounds = array<i64: 1, 20, 39>}, {pipeline_mode = #tpu.pipeline_mode<synchronous>, transform_indices = @transform_10, window_bounds = array<i64: 64, 512>}, {pipeline_mode = #tpu.pipeline_mode<synchronous>, transform_indices = @transform_11, window_bounds = array<i64: 64, 1>}, {pipeline_mode = #tpu.pipeline_mode<synchronous>, transform_indices = @transform_12, window_bounds = array<i64: 1, 18, 28>}, {pipeline_mode = #tpu.pipeline_mode<synchronous>, transform_indices = @transform_13, window_bounds = array<i64: 1, 1024>}, {pipeline_mode = #tpu.pipeline_mode<synchronous>, transform_indices = @transform_14, window_bounds = array<i64: 1, 1>}, {pipeline_mode = #tpu.pipeline_mode<synchronous>, transform_indices = @transform_15, window_bounds = array<i64: 1, 10, 4>}, {transform_indices = @transform_16, window_bounds = array<i64: 1, 1, 4>}]} {
    %c0 = arith.constant 0 : index
    %c0_0 = arith.constant 0 : index
    %c0_1 = arith.constant 0 : index
    %0 = vector.load %arg1[%c0, %c0_0, %c0_1] : memref<1x12x290xf32, #tpu.memory_space<vmem>>, vector<1x12x290xf32>
    %1 = vector.shape_cast %0 : vector<1x12x290xf32> to vector<12x290xf32>
    %c0_2 = arith.constant 0 : index
    %c0_3 = arith.constant 0 : index
    %2 = vector.load %arg2[%c0_2, %c0_3] : memref<8x48xf32, #tpu.memory_space<vmem>>, vector<8x48xf32>
    %3 = vector.extract_strided_slice %2 {offsets = [0, 0], sizes = [8, 12], strides = [1, 1]} : vector<8x48xf32> to vector<8x12xf32>
    %4 = vector.extract_strided_slice %1 {offsets = [0, 0], sizes = [12, 272], strides = [1, 1]} : vector<12x290xf32> to vector<12x272xf32>
    %cst = arith.constant dense<0.000000e+00> : vector<8x272xf32>
    %5 = tpu.matmul %3, %4, %cst {dimension_numbers = #tpu.dot_dimension_numbers<[1], [0], [0], [1], [0, 0, 1, 1], [], []>} : vector<8x12xf32>, vector<12x272xf32>, vector<8x272xf32> -> vector<8x272xf32>
    %6 = vector.extract_strided_slice %2 {offsets = [0, 12], sizes = [8, 12], strides = [1, 1]} : vector<8x48xf32> to vector<8x12xf32>
    %7 = vector.extract_strided_slice %1 {offsets = [0, 1], sizes = [12, 272], strides = [1, 1]} : vector<12x290xf32> to vector<12x272xf32>
    %cst_4 = arith.constant dense<0.000000e+00> : vector<8x272xf32>
    %8 = tpu.matmul %6, %7, %cst_4 {dimension_numbers = #tpu.dot_dimension_numbers<[1], [0], [0], [1], [0, 0, 1, 1], [], []>} : vector<8x12xf32>, vector<12x272xf32>, vector<8x272xf32> -> vector<8x272xf32>
    %9 = arith.addf %5, %8 : vector<8x272xf32>
    %10 = vector.extract_strided_slice %2 {offsets = [0, 24], sizes = [8, 12], strides = [1, 1]} : vector<8x48xf32> to vector<8x12xf32>
    %11 = vector.extract_strided_slice %1 {offsets = [0, 17], sizes = [12, 272], strides = [1, 1]} : vector<12x290xf32> to vector<12x272xf32>
    %cst_5 = arith.constant dense<0.000000e+00> : vector<8x272xf32>
    %12 = tpu.matmul %10, %11, %cst_5 {dimension_numbers = #tpu.dot_dimension_numbers<[1], [0], [0], [1], [0, 0, 1, 1], [], []>} : vector<8x12xf32>, vector<12x272xf32>, vector<8x272xf32> -> vector<8x272xf32>
    %13 = arith.addf %9, %12 : vector<8x272xf32>
    %14 = vector.extract_strided_slice %2 {offsets = [0, 36], sizes = [8, 12], strides = [1, 1]} : vector<8x48xf32> to vector<8x12xf32>
    %15 = vector.extract_strided_slice %1 {offsets = [0, 18], sizes = [12, 272], strides = [1, 1]} : vector<12x290xf32> to vector<12x272xf32>
    %cst_6 = arith.constant dense<0.000000e+00> : vector<8x272xf32>
    %16 = tpu.matmul %14, %15, %cst_6 {dimension_numbers = #tpu.dot_dimension_numbers<[1], [0], [0], [1], [0, 0, 1, 1], [], []>} : vector<8x12xf32>, vector<12x272xf32>, vector<8x272xf32> -> vector<8x272xf32>
    %17 = arith.addf %13, %16 : vector<8x272xf32>
    %c0_7 = arith.constant 0 : index
    %c0_8 = arith.constant 0 : index
    %18 = vector.load %arg3[%c0_7, %c0_8] : memref<8x1xf32, #tpu.memory_space<vmem>>, vector<8x1xf32>
    %19 = vector.broadcast %18 : vector<8x1xf32> to vector<8x272xf32>
    %20 = arith.addf %17, %19 : vector<8x272xf32>
    %cst_9 = arith.constant 0.000000e+00 : f32
    %21 = vector.broadcast %cst_9 : f32 to vector<8x272xf32>
    %22 = arith.cmpf ogt, %20, %21 : vector<8x272xf32>
    %cst_10 = arith.constant 2.000000e-01 : f32
    %23 = vector.broadcast %cst_10 : f32 to vector<8x272xf32>
    %24 = arith.mulf %23, %20 : vector<8x272xf32>
    %25 = arith.select %22, %20, %24 : vector<8x272xi1>, vector<8x272xf32>
    %c0_11 = arith.constant 0 : index
    %c0_12 = arith.constant 0 : index
    %c0_13 = arith.constant 0 : index
    %26 = vector.load %arg4[%c0_11, %c0_12, %c0_13] : memref<4x272x82xf32, #tpu.memory_space<vmem>>, vector<4x272x82xf32>
    %27 = vector.extract_strided_slice %26 {offsets = [0, 0, 0], sizes = [1, 272, 82], strides = [1, 1, 1]} : vector<4x272x82xf32> to vector<1x272x82xf32>
    %28 = vector.shape_cast %27 : vector<1x272x82xf32> to vector<272x82xf32>
    %cst_14 = arith.constant dense<0.000000e+00> : vector<8x82xf32>
    %29 = tpu.matmul %25, %28, %cst_14 {dimension_numbers = #tpu.dot_dimension_numbers<[1], [0], [0], [1], [0, 0, 1, 1], [], []>} : vector<8x272xf32>, vector<272x82xf32>, vector<8x82xf32> -> vector<8x82xf32>
    %30 = vector.extract_strided_slice %26 {offsets = [1, 0, 0], sizes = [1, 272, 82], strides = [1, 1, 1]} : vector<4x272x82xf32> to vector<1x272x82xf32>
    %31 = vector.shape_cast %30 : vector<1x272x82xf32> to vector<272x82xf32>
    %cst_15 = arith.constant dense<0.000000e+00> : vector<8x82xf32>
    %32 = tpu.matmul %25, %31, %cst_15 {dimension_numbers = #tpu.dot_dimension_numbers<[1], [0], [0], [1], [0, 0, 1, 1], [], []>} : vector<8x272xf32>, vector<272x82xf32>, vector<8x82xf32> -> vector<8x82xf32>
    %33 = vector.extract_strided_slice %26 {offsets = [2, 0, 0], sizes = [1, 272, 82], strides = [1, 1, 1]} : vector<4x272x82xf32> to vector<1x272x82xf32>
    %34 = vector.shape_cast %33 : vector<1x272x82xf32> to vector<272x82xf32>
    %cst_16 = arith.constant dense<0.000000e+00> : vector<8x82xf32>
    %35 = tpu.matmul %25, %34, %cst_16 {dimension_numbers = #tpu.dot_dimension_numbers<[1], [0], [0], [1], [0, 0, 1, 1], [], []>} : vector<8x272xf32>, vector<272x82xf32>, vector<8x82xf32> -> vector<8x82xf32>
    %36 = vector.extract_strided_slice %26 {offsets = [3, 0, 0], sizes = [1, 272, 82], strides = [1, 1, 1]} : vector<4x272x82xf32> to vector<1x272x82xf32>
    %37 = vector.shape_cast %36 : vector<1x272x82xf32> to vector<272x82xf32>
    %cst_17 = arith.constant dense<0.000000e+00> : vector<8x82xf32>
    %38 = tpu.matmul %25, %37, %cst_17 {dimension_numbers = #tpu.dot_dimension_numbers<[1], [0], [0], [1], [0, 0, 1, 1], [], []>} : vector<8x272xf32>, vector<272x82xf32>, vector<8x82xf32> -> vector<8x82xf32>
    %39 = tpu.concatenate %29, %32, %35, %38 in 0 : vector<8x82xf32>, vector<8x82xf32>, vector<8x82xf32>, vector<8x82xf32> -> vector<32x82xf32>
    %c0_18 = arith.constant 0 : index
    %c0_19 = arith.constant 0 : index
    %40 = vector.load %arg5[%c0_18, %c0_19] : memref<16x128xf32, #tpu.memory_space<vmem>>, vector<16x128xf32>
    %41 = vector.extract_strided_slice %40 {offsets = [0, 0], sizes = [16, 32], strides = [1, 1]} : vector<16x128xf32> to vector<16x32xf32>
    %42 = vector.extract_strided_slice %39 {offsets = [0, 0], sizes = [32, 72], strides = [1, 1]} : vector<32x82xf32> to vector<32x72xf32>
    %cst_20 = arith.constant dense<0.000000e+00> : vector<16x72xf32>
    %43 = tpu.matmul %41, %42, %cst_20 {dimension_numbers = #tpu.dot_dimension_numbers<[1], [0], [0], [1], [0, 0, 1, 1], [], []>} : vector<16x32xf32>, vector<32x72xf32>, vector<16x72xf32> -> vector<16x72xf32>
    %44 = vector.extract_strided_slice %40 {offsets = [0, 32], sizes = [16, 32], strides = [1, 1]} : vector<16x128xf32> to vector<16x32xf32>
    %45 = vector.extract_strided_slice %39 {offsets = [0, 1], sizes = [32, 72], strides = [1, 1]} : vector<32x82xf32> to vector<32x72xf32>
    %cst_21 = arith.constant dense<0.000000e+00> : vector<16x72xf32>
    %46 = tpu.matmul %44, %45, %cst_21 {dimension_numbers = #tpu.dot_dimension_numbers<[1], [0], [0], [1], [0, 0, 1, 1], [], []>} : vector<16x32xf32>, vector<32x72xf32>, vector<16x72xf32> -> vector<16x72xf32>
    %47 = arith.addf %43, %46 : vector<16x72xf32>
    %48 = vector.extract_strided_slice %40 {offsets = [0, 64], sizes = [16, 32], strides = [1, 1]} : vector<16x128xf32> to vector<16x32xf32>
    %49 = vector.extract_strided_slice %39 {offsets = [0, 9], sizes = [32, 72], strides = [1, 1]} : vector<32x82xf32> to vector<32x72xf32>
    %cst_22 = arith.constant dense<0.000000e+00> : vector<16x72xf32>
    %50 = tpu.matmul %48, %49, %cst_22 {dimension_numbers = #tpu.dot_dimension_numbers<[1], [0], [0], [1], [0, 0, 1, 1], [], []>} : vector<16x32xf32>, vector<32x72xf32>, vector<16x72xf32> -> vector<16x72xf32>
    %51 = arith.addf %47, %50 : vector<16x72xf32>
    %52 = vector.extract_strided_slice %40 {offsets = [0, 96], sizes = [16, 32], strides = [1, 1]} : vector<16x128xf32> to vector<16x32xf32>
    %53 = vector.extract_strided_slice %39 {offsets = [0, 10], sizes = [32, 72], strides = [1, 1]} : vector<32x82xf32> to vector<32x72xf32>
    %cst_23 = arith.constant dense<0.000000e+00> : vector<16x72xf32>
    %54 = tpu.matmul %52, %53, %cst_23 {dimension_numbers = #tpu.dot_dimension_numbers<[1], [0], [0], [1], [0, 0, 1, 1], [], []>} : vector<16x32xf32>, vector<32x72xf32>, vector<16x72xf32> -> vector<16x72xf32>
    %55 = arith.addf %51, %54 : vector<16x72xf32>
    %c0_24 = arith.constant 0 : index
    %c0_25 = arith.constant 0 : index
    %56 = vector.load %arg6[%c0_24, %c0_25] : memref<16x1xf32, #tpu.memory_space<vmem>>, vector<16x1xf32>
    %57 = vector.broadcast %56 : vector<16x1xf32> to vector<16x72xf32>
    %58 = arith.addf %55, %57 : vector<16x72xf32>
    %cst_26 = arith.constant 0.000000e+00 : f32
    %59 = vector.broadcast %cst_26 : f32 to vector<16x72xf32>
    %60 = arith.cmpf ogt, %58, %59 : vector<16x72xf32>
    %cst_27 = arith.constant 2.000000e-01 : f32
    %61 = vector.broadcast %cst_27 : f32 to vector<16x72xf32>
    %62 = arith.mulf %61, %58 : vector<16x72xf32>
    %63 = arith.select %60, %58, %62 : vector<16x72xi1>, vector<16x72xf32>
    %c0_28 = arith.constant 0 : index
    %c0_29 = arith.constant 0 : index
    %c0_30 = arith.constant 0 : index
    %64 = vector.load %arg7[%c0_28, %c0_29, %c0_30] : memref<4x72x26xf32, #tpu.memory_space<vmem>>, vector<4x72x26xf32>
    %65 = vector.extract_strided_slice %64 {offsets = [0, 0, 0], sizes = [1, 72, 26], strides = [1, 1, 1]} : vector<4x72x26xf32> to vector<1x72x26xf32>
    %66 = vector.shape_cast %65 : vector<1x72x26xf32> to vector<72x26xf32>
    %cst_31 = arith.constant dense<0.000000e+00> : vector<16x26xf32>
    %67 = tpu.matmul %63, %66, %cst_31 {dimension_numbers = #tpu.dot_dimension_numbers<[1], [0], [0], [1], [0, 0, 1, 1], [], []>} : vector<16x72xf32>, vector<72x26xf32>, vector<16x26xf32> -> vector<16x26xf32>
    %68 = vector.extract_strided_slice %64 {offsets = [1, 0, 0], sizes = [1, 72, 26], strides = [1, 1, 1]} : vector<4x72x26xf32> to vector<1x72x26xf32>
    %69 = vector.shape_cast %68 : vector<1x72x26xf32> to vector<72x26xf32>
    %cst_32 = arith.constant dense<0.000000e+00> : vector<16x26xf32>
    %70 = tpu.matmul %63, %69, %cst_32 {dimension_numbers = #tpu.dot_dimension_numbers<[1], [0], [0], [1], [0, 0, 1, 1], [], []>} : vector<16x72xf32>, vector<72x26xf32>, vector<16x26xf32> -> vector<16x26xf32>
    %71 = vector.extract_strided_slice %64 {offsets = [2, 0, 0], sizes = [1, 72, 26], strides = [1, 1, 1]} : vector<4x72x26xf32> to vector<1x72x26xf32>
    %72 = vector.shape_cast %71 : vector<1x72x26xf32> to vector<72x26xf32>
    %cst_33 = arith.constant dense<0.000000e+00> : vector<16x26xf32>
    %73 = tpu.matmul %63, %72, %cst_33 {dimension_numbers = #tpu.dot_dimension_numbers<[1], [0], [0], [1], [0, 0, 1, 1], [], []>} : vector<16x72xf32>, vector<72x26xf32>, vector<16x26xf32> -> vector<16x26xf32>
    %74 = vector.extract_strided_slice %64 {offsets = [3, 0, 0], sizes = [1, 72, 26], strides = [1, 1, 1]} : vector<4x72x26xf32> to vector<1x72x26xf32>
    %75 = vector.shape_cast %74 : vector<1x72x26xf32> to vector<72x26xf32>
    %cst_34 = arith.constant dense<0.000000e+00> : vector<16x26xf32>
    %76 = tpu.matmul %63, %75, %cst_34 {dimension_numbers = #tpu.dot_dimension_numbers<[1], [0], [0], [1], [0, 0, 1, 1], [], []>} : vector<16x72xf32>, vector<72x26xf32>, vector<16x26xf32> -> vector<16x26xf32>
    %77 = tpu.concatenate %67, %70, %73, %76 in 0 : vector<16x26xf32>, vector<16x26xf32>, vector<16x26xf32>, vector<16x26xf32> -> vector<64x26xf32>
    %c0_35 = arith.constant 0 : index
    %c0_36 = arith.constant 0 : index
    %78 = vector.load %arg8[%c0_35, %c0_36] : memref<32x256xf32, #tpu.memory_space<vmem>>, vector<32x256xf32>
    %79 = vector.extract_strided_slice %78 {offsets = [0, 0], sizes = [32, 64], strides = [1, 1]} : vector<32x256xf32> to vector<32x64xf32>
    %80 = vector.extract_strided_slice %77 {offsets = [0, 0], sizes = [64, 20], strides = [1, 1]} : vector<64x26xf32> to vector<64x20xf32>
    %cst_37 = arith.constant dense<0.000000e+00> : vector<32x20xf32>
    %81 = tpu.matmul %79, %80, %cst_37 {dimension_numbers = #tpu.dot_dimension_numbers<[1], [0], [0], [1], [0, 0, 1, 1], [], []>} : vector<32x64xf32>, vector<64x20xf32>, vector<32x20xf32> -> vector<32x20xf32>
    %82 = vector.extract_strided_slice %78 {offsets = [0, 64], sizes = [32, 64], strides = [1, 1]} : vector<32x256xf32> to vector<32x64xf32>
    %83 = vector.extract_strided_slice %77 {offsets = [0, 1], sizes = [64, 20], strides = [1, 1]} : vector<64x26xf32> to vector<64x20xf32>
    %cst_38 = arith.constant dense<0.000000e+00> : vector<32x20xf32>
    %84 = tpu.matmul %82, %83, %cst_38 {dimension_numbers = #tpu.dot_dimension_numbers<[1], [0], [0], [1], [0, 0, 1, 1], [], []>} : vector<32x64xf32>, vector<64x20xf32>, vector<32x20xf32> -> vector<32x20xf32>
    %85 = arith.addf %81, %84 : vector<32x20xf32>
    %86 = vector.extract_strided_slice %78 {offsets = [0, 128], sizes = [32, 64], strides = [1, 1]} : vector<32x256xf32> to vector<32x64xf32>
    %87 = vector.extract_strided_slice %77 {offsets = [0, 5], sizes = [64, 20], strides = [1, 1]} : vector<64x26xf32> to vector<64x20xf32>
    %cst_39 = arith.constant dense<0.000000e+00> : vector<32x20xf32>
    %88 = tpu.matmul %86, %87, %cst_39 {dimension_numbers = #tpu.dot_dimension_numbers<[1], [0], [0], [1], [0, 0, 1, 1], [], []>} : vector<32x64xf32>, vector<64x20xf32>, vector<32x20xf32> -> vector<32x20xf32>
    %89 = arith.addf %85, %88 : vector<32x20xf32>
    %90 = vector.extract_strided_slice %78 {offsets = [0, 192], sizes = [32, 64], strides = [1, 1]} : vector<32x256xf32> to vector<32x64xf32>
    %91 = vector.extract_strided_slice %77 {offsets = [0, 6], sizes = [64, 20], strides = [1, 1]} : vector<64x26xf32> to vector<64x20xf32>
    %cst_40 = arith.constant dense<0.000000e+00> : vector<32x20xf32>
    %92 = tpu.matmul %90, %91, %cst_40 {dimension_numbers = #tpu.dot_dimension_numbers<[1], [0], [0], [1], [0, 0, 1, 1], [], []>} : vector<32x64xf32>, vector<64x20xf32>, vector<32x20xf32> -> vector<32x20xf32>
    %93 = arith.addf %89, %92 : vector<32x20xf32>
    %c0_41 = arith.constant 0 : index
    %c0_42 = arith.constant 0 : index
    %94 = vector.load %arg9[%c0_41, %c0_42] : memref<32x1xf32, #tpu.memory_space<vmem>>, vector<32x1xf32>
    %95 = vector.broadcast %94 : vector<32x1xf32> to vector<32x20xf32>
    %96 = arith.addf %93, %95 : vector<32x20xf32>
    %cst_43 = arith.constant 0.000000e+00 : f32
    %97 = vector.broadcast %cst_43 : f32 to vector<32x20xf32>
    %98 = arith.cmpf ogt, %96, %97 : vector<32x20xf32>
    %cst_44 = arith.constant 2.000000e-01 : f32
    %99 = vector.broadcast %cst_44 : f32 to vector<32x20xf32>
    %100 = arith.mulf %99, %96 : vector<32x20xf32>
    %101 = arith.select %98, %96, %100 : vector<32x20xi1>, vector<32x20xf32>
    %c0_45 = arith.constant 0 : index
    %c0_46 = arith.constant 0 : index
    %c0_47 = arith.constant 0 : index
    %102 = vector.load %arg10[%c0_45, %c0_46, %c0_47] : memref<1x20x39xf32, #tpu.memory_space<vmem>>, vector<1x20x39xf32>
    %103 = vector.shape_cast %102 : vector<1x20x39xf32> to vector<20x39xf32>
    %cst_48 = arith.constant dense<0.000000e+00> : vector<32x39xf32>
    %104 = tpu.matmul %101, %103, %cst_48 {dimension_numbers = #tpu.dot_dimension_numbers<[1], [0], [0], [1], [0, 0, 1, 1], [], []>} : vector<32x20xf32>, vector<20x39xf32>, vector<32x39xf32> -> vector<32x39xf32>
    %c0_49 = arith.constant 0 : index
    %c0_50 = arith.constant 0 : index
    %105 = vector.load %arg11[%c0_49, %c0_50] : memref<64x512xf32, #tpu.memory_space<vmem>>, vector<64x512xf32>
    %106 = vector.extract_strided_slice %105 {offsets = [0, 0], sizes = [64, 32], strides = [1, 1]} : vector<64x512xf32> to vector<64x32xf32>
    %107 = vector.extract_strided_slice %104 {offsets = [0, 0], sizes = [32, 18], strides = [1, 1]} : vector<32x39xf32> to vector<32x18xf32>
    %cst_51 = arith.constant dense<0.000000e+00> : vector<64x18xf32>
    %108 = tpu.matmul %106, %107, %cst_51 {dimension_numbers = #tpu.dot_dimension_numbers<[1], [0], [0], [1], [0, 0, 1, 1], [], []>} : vector<64x32xf32>, vector<32x18xf32>, vector<64x18xf32> -> vector<64x18xf32>
    %109 = vector.extract_strided_slice %105 {offsets = [0, 32], sizes = [64, 32], strides = [1, 1]} : vector<64x512xf32> to vector<64x32xf32>
    %110 = vector.extract_strided_slice %104 {offsets = [0, 1], sizes = [32, 18], strides = [1, 1]} : vector<32x39xf32> to vector<32x18xf32>
    %cst_52 = arith.constant dense<0.000000e+00> : vector<64x18xf32>
    %111 = tpu.matmul %109, %110, %cst_52 {dimension_numbers = #tpu.dot_dimension_numbers<[1], [0], [0], [1], [0, 0, 1, 1], [], []>} : vector<64x32xf32>, vector<32x18xf32>, vector<64x18xf32> -> vector<64x18xf32>
    %112 = arith.addf %108, %111 : vector<64x18xf32>
    %113 = vector.extract_strided_slice %105 {offsets = [0, 64], sizes = [64, 32], strides = [1, 1]} : vector<64x512xf32> to vector<64x32xf32>
    %114 = vector.extract_strided_slice %104 {offsets = [0, 2], sizes = [32, 18], strides = [1, 1]} : vector<32x39xf32> to vector<32x18xf32>
    %cst_53 = arith.constant dense<0.000000e+00> : vector<64x18xf32>
    %115 = tpu.matmul %113, %114, %cst_53 {dimension_numbers = #tpu.dot_dimension_numbers<[1], [0], [0], [1], [0, 0, 1, 1], [], []>} : vector<64x32xf32>, vector<32x18xf32>, vector<64x18xf32> -> vector<64x18xf32>
    %116 = arith.addf %112, %115 : vector<64x18xf32>
    %117 = vector.extract_strided_slice %105 {offsets = [0, 96], sizes = [64, 32], strides = [1, 1]} : vector<64x512xf32> to vector<64x32xf32>
    %118 = vector.extract_strided_slice %104 {offsets = [0, 3], sizes = [32, 18], strides = [1, 1]} : vector<32x39xf32> to vector<32x18xf32>
    %cst_54 = arith.constant dense<0.000000e+00> : vector<64x18xf32>
    %119 = tpu.matmul %117, %118, %cst_54 {dimension_numbers = #tpu.dot_dimension_numbers<[1], [0], [0], [1], [0, 0, 1, 1], [], []>} : vector<64x32xf32>, vector<32x18xf32>, vector<64x18xf32> -> vector<64x18xf32>
    %120 = arith.addf %116, %119 : vector<64x18xf32>
    %121 = vector.extract_strided_slice %105 {offsets = [0, 128], sizes = [64, 32], strides = [1, 1]} : vector<64x512xf32> to vector<64x32xf32>
    %122 = vector.extract_strided_slice %104 {offsets = [0, 6], sizes = [32, 18], strides = [1, 1]} : vector<32x39xf32> to vector<32x18xf32>
    %cst_55 = arith.constant dense<0.000000e+00> : vector<64x18xf32>
    %123 = tpu.matmul %121, %122, %cst_55 {dimension_numbers = #tpu.dot_dimension_numbers<[1], [0], [0], [1], [0, 0, 1, 1], [], []>} : vector<64x32xf32>, vector<32x18xf32>, vector<64x18xf32> -> vector<64x18xf32>
    %124 = arith.addf %120, %123 : vector<64x18xf32>
    %125 = vector.extract_strided_slice %105 {offsets = [0, 160], sizes = [64, 32], strides = [1, 1]} : vector<64x512xf32> to vector<64x32xf32>
    %126 = vector.extract_strided_slice %104 {offsets = [0, 7], sizes = [32, 18], strides = [1, 1]} : vector<32x39xf32> to vector<32x18xf32>
    %cst_56 = arith.constant dense<0.000000e+00> : vector<64x18xf32>
    %127 = tpu.matmul %125, %126, %cst_56 {dimension_numbers = #tpu.dot_dimension_numbers<[1], [0], [0], [1], [0, 0, 1, 1], [], []>} : vector<64x32xf32>, vector<32x18xf32>, vector<64x18xf32> -> vector<64x18xf32>
    %128 = arith.addf %124, %127 : vector<64x18xf32>
    %129 = vector.extract_strided_slice %105 {offsets = [0, 192], sizes = [64, 32], strides = [1, 1]} : vector<64x512xf32> to vector<64x32xf32>
    %130 = vector.extract_strided_slice %104 {offsets = [0, 8], sizes = [32, 18], strides = [1, 1]} : vector<32x39xf32> to vector<32x18xf32>
    %cst_57 = arith.constant dense<0.000000e+00> : vector<64x18xf32>
    %131 = tpu.matmul %129, %130, %cst_57 {dimension_numbers = #tpu.dot_dimension_numbers<[1], [0], [0], [1], [0, 0, 1, 1], [], []>} : vector<64x32xf32>, vector<32x18xf32>, vector<64x18xf32> -> vector<64x18xf32>
    %132 = arith.addf %128, %131 : vector<64x18xf32>
    %133 = vector.extract_strided_slice %105 {offsets = [0, 224], sizes = [64, 32], strides = [1, 1]} : vector<64x512xf32> to vector<64x32xf32>
    %134 = vector.extract_strided_slice %104 {offsets = [0, 9], sizes = [32, 18], strides = [1, 1]} : vector<32x39xf32> to vector<32x18xf32>
    %cst_58 = arith.constant dense<0.000000e+00> : vector<64x18xf32>
    %135 = tpu.matmul %133, %134, %cst_58 {dimension_numbers = #tpu.dot_dimension_numbers<[1], [0], [0], [1], [0, 0, 1, 1], [], []>} : vector<64x32xf32>, vector<32x18xf32>, vector<64x18xf32> -> vector<64x18xf32>
    %136 = arith.addf %132, %135 : vector<64x18xf32>
    %137 = vector.extract_strided_slice %105 {offsets = [0, 256], sizes = [64, 32], strides = [1, 1]} : vector<64x512xf32> to vector<64x32xf32>
    %138 = vector.extract_strided_slice %104 {offsets = [0, 12], sizes = [32, 18], strides = [1, 1]} : vector<32x39xf32> to vector<32x18xf32>
    %cst_59 = arith.constant dense<0.000000e+00> : vector<64x18xf32>
    %139 = tpu.matmul %137, %138, %cst_59 {dimension_numbers = #tpu.dot_dimension_numbers<[1], [0], [0], [1], [0, 0, 1, 1], [], []>} : vector<64x32xf32>, vector<32x18xf32>, vector<64x18xf32> -> vector<64x18xf32>
    %140 = arith.addf %136, %139 : vector<64x18xf32>
    %141 = vector.extract_strided_slice %105 {offsets = [0, 288], sizes = [64, 32], strides = [1, 1]} : vector<64x512xf32> to vector<64x32xf32>
    %142 = vector.extract_strided_slice %104 {offsets = [0, 13], sizes = [32, 18], strides = [1, 1]} : vector<32x39xf32> to vector<32x18xf32>
    %cst_60 = arith.constant dense<0.000000e+00> : vector<64x18xf32>
    %143 = tpu.matmul %141, %142, %cst_60 {dimension_numbers = #tpu.dot_dimension_numbers<[1], [0], [0], [1], [0, 0, 1, 1], [], []>} : vector<64x32xf32>, vector<32x18xf32>, vector<64x18xf32> -> vector<64x18xf32>
    %144 = arith.addf %140, %143 : vector<64x18xf32>
    %145 = vector.extract_strided_slice %105 {offsets = [0, 320], sizes = [64, 32], strides = [1, 1]} : vector<64x512xf32> to vector<64x32xf32>
    %146 = vector.extract_strided_slice %104 {offsets = [0, 14], sizes = [32, 18], strides = [1, 1]} : vector<32x39xf32> to vector<32x18xf32>
    %cst_61 = arith.constant dense<0.000000e+00> : vector<64x18xf32>
    %147 = tpu.matmul %145, %146, %cst_61 {dimension_numbers = #tpu.dot_dimension_numbers<[1], [0], [0], [1], [0, 0, 1, 1], [], []>} : vector<64x32xf32>, vector<32x18xf32>, vector<64x18xf32> -> vector<64x18xf32>
    %148 = arith.addf %144, %147 : vector<64x18xf32>
    %149 = vector.extract_strided_slice %105 {offsets = [0, 352], sizes = [64, 32], strides = [1, 1]} : vector<64x512xf32> to vector<64x32xf32>
    %150 = vector.extract_strided_slice %104 {offsets = [0, 15], sizes = [32, 18], strides = [1, 1]} : vector<32x39xf32> to vector<32x18xf32>
    %cst_62 = arith.constant dense<0.000000e+00> : vector<64x18xf32>
    %151 = tpu.matmul %149, %150, %cst_62 {dimension_numbers = #tpu.dot_dimension_numbers<[1], [0], [0], [1], [0, 0, 1, 1], [], []>} : vector<64x32xf32>, vector<32x18xf32>, vector<64x18xf32> -> vector<64x18xf32>
    %152 = arith.addf %148, %151 : vector<64x18xf32>
    %153 = vector.extract_strided_slice %105 {offsets = [0, 384], sizes = [64, 32], strides = [1, 1]} : vector<64x512xf32> to vector<64x32xf32>
    %154 = vector.extract_strided_slice %104 {offsets = [0, 18], sizes = [32, 18], strides = [1, 1]} : vector<32x39xf32> to vector<32x18xf32>
    %cst_63 = arith.constant dense<0.000000e+00> : vector<64x18xf32>
    %155 = tpu.matmul %153, %154, %cst_63 {dimension_numbers = #tpu.dot_dimension_numbers<[1], [0], [0], [1], [0, 0, 1, 1], [], []>} : vector<64x32xf32>, vector<32x18xf32>, vector<64x18xf32> -> vector<64x18xf32>
    %156 = arith.addf %152, %155 : vector<64x18xf32>
    %157 = vector.extract_strided_slice %105 {offsets = [0, 416], sizes = [64, 32], strides = [1, 1]} : vector<64x512xf32> to vector<64x32xf32>
    %158 = vector.extract_strided_slice %104 {offsets = [0, 19], sizes = [32, 18], strides = [1, 1]} : vector<32x39xf32> to vector<32x18xf32>
    %cst_64 = arith.constant dense<0.000000e+00> : vector<64x18xf32>
    %159 = tpu.matmul %157, %158, %cst_64 {dimension_numbers = #tpu.dot_dimension_numbers<[1], [0], [0], [1], [0, 0, 1, 1], [], []>} : vector<64x32xf32>, vector<32x18xf32>, vector<64x18xf32> -> vector<64x18xf32>
    %160 = arith.addf %156, %159 : vector<64x18xf32>
    %161 = vector.extract_strided_slice %105 {offsets = [0, 448], sizes = [64, 32], strides = [1, 1]} : vector<64x512xf32> to vector<64x32xf32>
    %162 = vector.extract_strided_slice %104 {offsets = [0, 20], sizes = [32, 18], strides = [1, 1]} : vector<32x39xf32> to vector<32x18xf32>
    %cst_65 = arith.constant dense<0.000000e+00> : vector<64x18xf32>
    %163 = tpu.matmul %161, %162, %cst_65 {dimension_numbers = #tpu.dot_dimension_numbers<[1], [0], [0], [1], [0, 0, 1, 1], [], []>} : vector<64x32xf32>, vector<32x18xf32>, vector<64x18xf32> -> vector<64x18xf32>
    %164 = arith.addf %160, %163 : vector<64x18xf32>
    %165 = vector.extract_strided_slice %105 {offsets = [0, 480], sizes = [64, 32], strides = [1, 1]} : vector<64x512xf32> to vector<64x32xf32>
    %166 = vector.extract_strided_slice %104 {offsets = [0, 21], sizes = [32, 18], strides = [1, 1]} : vector<32x39xf32> to vector<32x18xf32>
    %cst_66 = arith.constant dense<0.000000e+00> : vector<64x18xf32>
    %167 = tpu.matmul %165, %166, %cst_66 {dimension_numbers = #tpu.dot_dimension_numbers<[1], [0], [0], [1], [0, 0, 1, 1], [], []>} : vector<64x32xf32>, vector<32x18xf32>, vector<64x18xf32> -> vector<64x18xf32>
    %168 = arith.addf %164, %167 : vector<64x18xf32>
    %c0_67 = arith.constant 0 : index
    %c0_68 = arith.constant 0 : index
    %169 = vector.load %arg12[%c0_67, %c0_68] : memref<64x1xf32, #tpu.memory_space<vmem>>, vector<64x1xf32>
    %170 = vector.broadcast %169 : vector<64x1xf32> to vector<64x18xf32>
    %171 = arith.addf %168, %170 : vector<64x18xf32>
    %cst_69 = arith.constant 0.000000e+00 : f32
    %172 = vector.broadcast %cst_69 : f32 to vector<64x18xf32>
    %173 = arith.cmpf ogt, %171, %172 : vector<64x18xf32>
    %cst_70 = arith.constant 2.000000e-01 : f32
    %174 = vector.broadcast %cst_70 : f32 to vector<64x18xf32>
    %175 = arith.mulf %174, %171 : vector<64x18xf32>
    %176 = arith.select %173, %171, %175 : vector<64x18xi1>, vector<64x18xf32>
    %c0_71 = arith.constant 0 : index
    %c0_72 = arith.constant 0 : index
    %c0_73 = arith.constant 0 : index
    %177 = vector.load %arg13[%c0_71, %c0_72, %c0_73] : memref<1x18x28xf32, #tpu.memory_space<vmem>>, vector<1x18x28xf32>
    %178 = vector.shape_cast %177 : vector<1x18x28xf32> to vector<18x28xf32>
    %cst_74 = arith.constant dense<0.000000e+00> : vector<64x28xf32>
    %179 = tpu.matmul %176, %178, %cst_74 {dimension_numbers = #tpu.dot_dimension_numbers<[1], [0], [0], [1], [0, 0, 1, 1], [], []>} : vector<64x18xf32>, vector<18x28xf32>, vector<64x28xf32> -> vector<64x28xf32>
    %c0_75 = arith.constant 0 : index
    %c0_76 = arith.constant 0 : index
    %180 = vector.load %arg14[%c0_75, %c0_76] : memref<1x1024xf32, #tpu.memory_space<vmem>>, vector<1x1024xf32>
    %181 = vector.extract_strided_slice %180 {offsets = [0, 0], sizes = [1, 64], strides = [1, 1]} : vector<1x1024xf32> to vector<1x64xf32>
    %182 = vector.extract_strided_slice %179 {offsets = [0, 0], sizes = [64, 10], strides = [1, 1]} : vector<64x28xf32> to vector<64x10xf32>
    %cst_77 = arith.constant dense<0.000000e+00> : vector<1x10xf32>
    %183 = tpu.matmul %181, %182, %cst_77 {dimension_numbers = #tpu.dot_dimension_numbers<[1], [0], [0], [1], [0, 0, 1, 1], [], []>} : vector<1x64xf32>, vector<64x10xf32>, vector<1x10xf32> -> vector<1x10xf32>
    %184 = vector.extract_strided_slice %180 {offsets = [0, 64], sizes = [1, 64], strides = [1, 1]} : vector<1x1024xf32> to vector<1x64xf32>
    %185 = vector.extract_strided_slice %179 {offsets = [0, 1], sizes = [64, 10], strides = [1, 1]} : vector<64x28xf32> to vector<64x10xf32>
    %cst_78 = arith.constant dense<0.000000e+00> : vector<1x10xf32>
    %186 = tpu.matmul %184, %185, %cst_78 {dimension_numbers = #tpu.dot_dimension_numbers<[1], [0], [0], [1], [0, 0, 1, 1], [], []>} : vector<1x64xf32>, vector<64x10xf32>, vector<1x10xf32> -> vector<1x10xf32>
    %187 = arith.addf %183, %186 : vector<1x10xf32>
    %188 = vector.extract_strided_slice %180 {offsets = [0, 128], sizes = [1, 64], strides = [1, 1]} : vector<1x1024xf32> to vector<1x64xf32>
    %189 = vector.extract_strided_slice %179 {offsets = [0, 2], sizes = [64, 10], strides = [1, 1]} : vector<64x28xf32> to vector<64x10xf32>
    %cst_79 = arith.constant dense<0.000000e+00> : vector<1x10xf32>
    %190 = tpu.matmul %188, %189, %cst_79 {dimension_numbers = #tpu.dot_dimension_numbers<[1], [0], [0], [1], [0, 0, 1, 1], [], []>} : vector<1x64xf32>, vector<64x10xf32>, vector<1x10xf32> -> vector<1x10xf32>
    %191 = arith.addf %187, %190 : vector<1x10xf32>
    %192 = vector.extract_strided_slice %180 {offsets = [0, 192], sizes = [1, 64], strides = [1, 1]} : vector<1x1024xf32> to vector<1x64xf32>
    %193 = vector.extract_strided_slice %179 {offsets = [0, 3], sizes = [64, 10], strides = [1, 1]} : vector<64x28xf32> to vector<64x10xf32>
    %cst_80 = arith.constant dense<0.000000e+00> : vector<1x10xf32>
    %194 = tpu.matmul %192, %193, %cst_80 {dimension_numbers = #tpu.dot_dimension_numbers<[1], [0], [0], [1], [0, 0, 1, 1], [], []>} : vector<1x64xf32>, vector<64x10xf32>, vector<1x10xf32> -> vector<1x10xf32>
    %195 = arith.addf %191, %194 : vector<1x10xf32>
    %196 = vector.extract_strided_slice %180 {offsets = [0, 256], sizes = [1, 64], strides = [1, 1]} : vector<1x1024xf32> to vector<1x64xf32>
    %197 = vector.extract_strided_slice %179 {offsets = [0, 5], sizes = [64, 10], strides = [1, 1]} : vector<64x28xf32> to vector<64x10xf32>
    %cst_81 = arith.constant dense<0.000000e+00> : vector<1x10xf32>
    %198 = tpu.matmul %196, %197, %cst_81 {dimension_numbers = #tpu.dot_dimension_numbers<[1], [0], [0], [1], [0, 0, 1, 1], [], []>} : vector<1x64xf32>, vector<64x10xf32>, vector<1x10xf32> -> vector<1x10xf32>
    %199 = arith.addf %195, %198 : vector<1x10xf32>
    %200 = vector.extract_strided_slice %180 {offsets = [0, 320], sizes = [1, 64], strides = [1, 1]} : vector<1x1024xf32> to vector<1x64xf32>
    %201 = vector.extract_strided_slice %179 {offsets = [0, 6], sizes = [64, 10], strides = [1, 1]} : vector<64x28xf32> to vector<64x10xf32>
    %cst_82 = arith.constant dense<0.000000e+00> : vector<1x10xf32>
    %202 = tpu.matmul %200, %201, %cst_82 {dimension_numbers = #tpu.dot_dimension_numbers<[1], [0], [0], [1], [0, 0, 1, 1], [], []>} : vector<1x64xf32>, vector<64x10xf32>, vector<1x10xf32> -> vector<1x10xf32>
    %203 = arith.addf %199, %202 : vector<1x10xf32>
    %204 = vector.extract_strided_slice %180 {offsets = [0, 384], sizes = [1, 64], strides = [1, 1]} : vector<1x1024xf32> to vector<1x64xf32>
    %205 = vector.extract_strided_slice %179 {offsets = [0, 7], sizes = [64, 10], strides = [1, 1]} : vector<64x28xf32> to vector<64x10xf32>
    %cst_83 = arith.constant dense<0.000000e+00> : vector<1x10xf32>
    %206 = tpu.matmul %204, %205, %cst_83 {dimension_numbers = #tpu.dot_dimension_numbers<[1], [0], [0], [1], [0, 0, 1, 1], [], []>} : vector<1x64xf32>, vector<64x10xf32>, vector<1x10xf32> -> vector<1x10xf32>
    %207 = arith.addf %203, %206 : vector<1x10xf32>
    %208 = vector.extract_strided_slice %180 {offsets = [0, 448], sizes = [1, 64], strides = [1, 1]} : vector<1x1024xf32> to vector<1x64xf32>
    %209 = vector.extract_strided_slice %179 {offsets = [0, 8], sizes = [64, 10], strides = [1, 1]} : vector<64x28xf32> to vector<64x10xf32>
    %cst_84 = arith.constant dense<0.000000e+00> : vector<1x10xf32>
    %210 = tpu.matmul %208, %209, %cst_84 {dimension_numbers = #tpu.dot_dimension_numbers<[1], [0], [0], [1], [0, 0, 1, 1], [], []>} : vector<1x64xf32>, vector<64x10xf32>, vector<1x10xf32> -> vector<1x10xf32>
    %211 = arith.addf %207, %210 : vector<1x10xf32>
    %212 = vector.extract_strided_slice %180 {offsets = [0, 512], sizes = [1, 64], strides = [1, 1]} : vector<1x1024xf32> to vector<1x64xf32>
    %213 = vector.extract_strided_slice %179 {offsets = [0, 10], sizes = [64, 10], strides = [1, 1]} : vector<64x28xf32> to vector<64x10xf32>
    %cst_85 = arith.constant dense<0.000000e+00> : vector<1x10xf32>
    %214 = tpu.matmul %212, %213, %cst_85 {dimension_numbers = #tpu.dot_dimension_numbers<[1], [0], [0], [1], [0, 0, 1, 1], [], []>} : vector<1x64xf32>, vector<64x10xf32>, vector<1x10xf32> -> vector<1x10xf32>
    %215 = arith.addf %211, %214 : vector<1x10xf32>
    %216 = vector.extract_strided_slice %180 {offsets = [0, 576], sizes = [1, 64], strides = [1, 1]} : vector<1x1024xf32> to vector<1x64xf32>
    %217 = vector.extract_strided_slice %179 {offsets = [0, 11], sizes = [64, 10], strides = [1, 1]} : vector<64x28xf32> to vector<64x10xf32>
    %cst_86 = arith.constant dense<0.000000e+00> : vector<1x10xf32>
    %218 = tpu.matmul %216, %217, %cst_86 {dimension_numbers = #tpu.dot_dimension_numbers<[1], [0], [0], [1], [0, 0, 1, 1], [], []>} : vector<1x64xf32>, vector<64x10xf32>, vector<1x10xf32> -> vector<1x10xf32>
    %219 = arith.addf %215, %218 : vector<1x10xf32>
    %220 = vector.extract_strided_slice %180 {offsets = [0, 640], sizes = [1, 64], strides = [1, 1]} : vector<1x1024xf32> to vector<1x64xf32>
    %221 = vector.extract_strided_slice %179 {offsets = [0, 12], sizes = [64, 10], strides = [1, 1]} : vector<64x28xf32> to vector<64x10xf32>
    %cst_87 = arith.constant dense<0.000000e+00> : vector<1x10xf32>
    %222 = tpu.matmul %220, %221, %cst_87 {dimension_numbers = #tpu.dot_dimension_numbers<[1], [0], [0], [1], [0, 0, 1, 1], [], []>} : vector<1x64xf32>, vector<64x10xf32>, vector<1x10xf32> -> vector<1x10xf32>
    %223 = arith.addf %219, %222 : vector<1x10xf32>
    %224 = vector.extract_strided_slice %180 {offsets = [0, 704], sizes = [1, 64], strides = [1, 1]} : vector<1x1024xf32> to vector<1x64xf32>
    %225 = vector.extract_strided_slice %179 {offsets = [0, 13], sizes = [64, 10], strides = [1, 1]} : vector<64x28xf32> to vector<64x10xf32>
    %cst_88 = arith.constant dense<0.000000e+00> : vector<1x10xf32>
    %226 = tpu.matmul %224, %225, %cst_88 {dimension_numbers = #tpu.dot_dimension_numbers<[1], [0], [0], [1], [0, 0, 1, 1], [], []>} : vector<1x64xf32>, vector<64x10xf32>, vector<1x10xf32> -> vector<1x10xf32>
    %227 = arith.addf %223, %226 : vector<1x10xf32>
    %228 = vector.extract_strided_slice %180 {offsets = [0, 768], sizes = [1, 64], strides = [1, 1]} : vector<1x1024xf32> to vector<1x64xf32>
    %229 = vector.extract_strided_slice %179 {offsets = [0, 15], sizes = [64, 10], strides = [1, 1]} : vector<64x28xf32> to vector<64x10xf32>
    %cst_89 = arith.constant dense<0.000000e+00> : vector<1x10xf32>
    %230 = tpu.matmul %228, %229, %cst_89 {dimension_numbers = #tpu.dot_dimension_numbers<[1], [0], [0], [1], [0, 0, 1, 1], [], []>} : vector<1x64xf32>, vector<64x10xf32>, vector<1x10xf32> -> vector<1x10xf32>
    %231 = arith.addf %227, %230 : vector<1x10xf32>
    %232 = vector.extract_strided_slice %180 {offsets = [0, 832], sizes = [1, 64], strides = [1, 1]} : vector<1x1024xf32> to vector<1x64xf32>
    %233 = vector.extract_strided_slice %179 {offsets = [0, 16], sizes = [64, 10], strides = [1, 1]} : vector<64x28xf32> to vector<64x10xf32>
    %cst_90 = arith.constant dense<0.000000e+00> : vector<1x10xf32>
    %234 = tpu.matmul %232, %233, %cst_90 {dimension_numbers = #tpu.dot_dimension_numbers<[1], [0], [0], [1], [0, 0, 1, 1], [], []>} : vector<1x64xf32>, vector<64x10xf32>, vector<1x10xf32> -> vector<1x10xf32>
    %235 = arith.addf %231, %234 : vector<1x10xf32>
    %236 = vector.extract_strided_slice %180 {offsets = [0, 896], sizes = [1, 64], strides = [1, 1]} : vector<1x1024xf32> to vector<1x64xf32>
    %237 = vector.extract_strided_slice %179 {offsets = [0, 17], sizes = [64, 10], strides = [1, 1]} : vector<64x28xf32> to vector<64x10xf32>
    %cst_91 = arith.constant dense<0.000000e+00> : vector<1x10xf32>
    %238 = tpu.matmul %236, %237, %cst_91 {dimension_numbers = #tpu.dot_dimension_numbers<[1], [0], [0], [1], [0, 0, 1, 1], [], []>} : vector<1x64xf32>, vector<64x10xf32>, vector<1x10xf32> -> vector<1x10xf32>
    %239 = arith.addf %235, %238 : vector<1x10xf32>
    %240 = vector.extract_strided_slice %180 {offsets = [0, 960], sizes = [1, 64], strides = [1, 1]} : vector<1x1024xf32> to vector<1x64xf32>
    %241 = vector.extract_strided_slice %179 {offsets = [0, 18], sizes = [64, 10], strides = [1, 1]} : vector<64x28xf32> to vector<64x10xf32>
    %cst_92 = arith.constant dense<0.000000e+00> : vector<1x10xf32>
    %242 = tpu.matmul %240, %241, %cst_92 {dimension_numbers = #tpu.dot_dimension_numbers<[1], [0], [0], [1], [0, 0, 1, 1], [], []>} : vector<1x64xf32>, vector<64x10xf32>, vector<1x10xf32> -> vector<1x10xf32>
    %243 = arith.addf %239, %242 : vector<1x10xf32>
    %c0_93 = arith.constant 0 : index
    %c0_94 = arith.constant 0 : index
    %244 = vector.load %arg15[%c0_93, %c0_94] : memref<1x1xf32, #tpu.memory_space<vmem>>, vector<1x1xf32>
    %245 = vector.broadcast %244 : vector<1x1xf32> to vector<1x10xf32>
    %246 = arith.addf %243, %245 : vector<1x10xf32>
    %c0_95 = arith.constant 0 : index
    %c0_96 = arith.constant 0 : index
    %c0_97 = arith.constant 0 : index
    %247 = vector.load %arg16[%c0_95, %c0_96, %c0_97] : memref<1x10x4xf32, #tpu.memory_space<vmem>>, vector<1x10x4xf32>
    %248 = vector.shape_cast %247 : vector<1x10x4xf32> to vector<10x4xf32>
    %cst_98 = arith.constant dense<0.000000e+00> : vector<1x4xf32>
    %249 = tpu.matmul %246, %248, %cst_98 {dimension_numbers = #tpu.dot_dimension_numbers<[1], [0], [0], [1], [0, 0, 1, 1], [], []>} : vector<1x10xf32>, vector<10x4xf32>, vector<1x4xf32> -> vector<1x4xf32>
    %c0_99 = arith.constant 0 : index
    %c0_100 = arith.constant 0 : index
    %c0_101 = arith.constant 0 : index
    %250 = vector.load %arg17[%c0_99, %c0_100, %c0_101] : memref<1x1x4xf32, #tpu.memory_space<vmem>>, vector<1x1x4xf32>
    %251 = vector.shape_cast %250 : vector<1x1x4xf32> to vector<1x4xf32>
    %252 = vector.shape_cast %249 : vector<1x4xf32> to vector<1x1x4xf32>
    tpu.vector_store %arg17[%c0_99, %c0_100, %c0_101], %252 {strides = array<i32>} : memref<1x1x4xf32, #tpu.memory_space<vmem>>, vector<1x1x4xf32>,
    return
  }
  func.func @transform_0(%arg0: i32) -> (i32, i32, i32) {
    %c0_i32 = arith.constant 0 : i32
    %c0_i32_0 = arith.constant 0 : i32
    %c0_i32_1 = arith.constant 0 : i32
    return %arg0, %c0_i32, %c0_i32_0 : i32, i32, i32
  }
  func.func @transform_1(%arg0: i32) -> (i32, i32) {
    %c0_i32 = arith.constant 0 : i32
    %c0_i32_0 = arith.constant 0 : i32
    %c0_i32_1 = arith.constant 0 : i32
    return %c0_i32, %c0_i32_0 : i32, i32
  }
  func.func @transform_2(%arg0: i32) -> (i32, i32) {
    %c0_i32 = arith.constant 0 : i32
    %c0_i32_0 = arith.constant 0 : i32
    %c0_i32_1 = arith.constant 0 : i32
    return %c0_i32, %c0_i32_0 : i32, i32
  }
  func.func @transform_3(%arg0: i32) -> (i32, i32, i32) {
    %c0_i32 = arith.constant 0 : i32
    %c0_i32_0 = arith.constant 0 : i32
    %c0_i32_1 = arith.constant 0 : i32
    %c0_i32_2 = arith.constant 0 : i32
    return %c0_i32, %c0_i32_0, %c0_i32_1 : i32, i32, i32
  }
  func.func @transform_4(%arg0: i32) -> (i32, i32) {
    %c0_i32 = arith.constant 0 : i32
    %c0_i32_0 = arith.constant 0 : i32
    %c0_i32_1 = arith.constant 0 : i32
    return %c0_i32, %c0_i32_0 : i32, i32
  }
  func.func @transform_5(%arg0: i32) -> (i32, i32) {
    %c0_i32 = arith.constant 0 : i32
    %c0_i32_0 = arith.constant 0 : i32
    %c0_i32_1 = arith.constant 0 : i32
    return %c0_i32, %c0_i32_0 : i32, i32
  }
  func.func @transform_6(%arg0: i32) -> (i32, i32, i32) {
    %c0_i32 = arith.constant 0 : i32
    %c0_i32_0 = arith.constant 0 : i32
    %c0_i32_1 = arith.constant 0 : i32
    %c0_i32_2 = arith.constant 0 : i32
    return %c0_i32, %c0_i32_0, %c0_i32_1 : i32, i32, i32
  }
  func.func @transform_7(%arg0: i32) -> (i32, i32) {
    %c0_i32 = arith.constant 0 : i32
    %c0_i32_0 = arith.constant 0 : i32
    %c0_i32_1 = arith.constant 0 : i32
    return %c0_i32, %c0_i32_0 : i32, i32
  }
  func.func @transform_8(%arg0: i32) -> (i32, i32) {
    %c0_i32 = arith.constant 0 : i32
    %c0_i32_0 = arith.constant 0 : i32
    %c0_i32_1 = arith.constant 0 : i32
    return %c0_i32, %c0_i32_0 : i32, i32
  }
  func.func @transform_9(%arg0: i32) -> (i32, i32, i32) {
    %c0_i32 = arith.constant 0 : i32
    %c0_i32_0 = arith.constant 0 : i32
    %c0_i32_1 = arith.constant 0 : i32
    %c0_i32_2 = arith.constant 0 : i32
    return %c0_i32, %c0_i32_0, %c0_i32_1 : i32, i32, i32
  }
  func.func @transform_10(%arg0: i32) -> (i32, i32) {
    %c0_i32 = arith.constant 0 : i32
    %c0_i32_0 = arith.constant 0 : i32
    %c0_i32_1 = arith.constant 0 : i32
    return %c0_i32, %c0_i32_0 : i32, i32
  }
  func.func @transform_11(%arg0: i32) -> (i32, i32) {
    %c0_i32 = arith.constant 0 : i32
    %c0_i32_0 = arith.constant 0 : i32
    %c0_i32_1 = arith.constant 0 : i32
    return %c0_i32, %c0_i32_0 : i32, i32
  }
  func.func @transform_12(%arg0: i32) -> (i32, i32, i32) {
    %c0_i32 = arith.constant 0 : i32
    %c0_i32_0 = arith.constant 0 : i32
    %c0_i32_1 = arith.constant 0 : i32
    %c0_i32_2 = arith.constant 0 : i32
    return %c0_i32, %c0_i32_0, %c0_i32_1 : i32, i32, i32
  }
  func.func @transform_13(%arg0: i32) -> (i32, i32) {
    %c0_i32 = arith.constant 0 : i32
    %c0_i32_0 = arith.constant 0 : i32
    %c0_i32_1 = arith.constant 0 : i32
    return %c0_i32, %c0_i32_0 : i32, i32
  }
  func.func @transform_14(%arg0: i32) -> (i32, i32) {
    %c0_i32 = arith.constant 0 : i32
    %c0_i32_0 = arith.constant 0 : i32
    %c0_i32_1 = arith.constant 0 : i32
    return %c0_i32, %c0_i32_0 : i32, i32
  }
  func.func @transform_15(%arg0: i32) -> (i32, i32, i32) {
    %c0_i32 = arith.constant 0 : i32
    %c0_i32_0 = arith.constant 0 : i32
    %c0_i32_1 = arith.constant 0 : i32
    %c0_i32_2 = arith.constant 0 : i32
    return %c0_i32, %c0_i32_0, %c0_i32_1 : i32, i32, i32
  }
  func.func @transform_16(%arg0: i32) -> (i32, i32, i32) {
    %c0_i32 = arith.constant 0 : i32
    %c0_i32_0 = arith.constant 0 : i32
    %c0_i32_1 = arith.constant 0 : i32
    return %arg0, %c0_i32, %c0_i32_0 : i32, i32, i32
  }
}

</mosaic_0001>

<llo_original>
// kernel: forward.1
$region0: #{forward.1}
  #allocation0 [shape = 'u32[]', space=smem, size = 0x4, offset = 0x4, fixed_abs, tag = 'smem constant byte address 0x4 - core index']
  #allocation1 [shape = 'u32[72,128]{1,0:T(1,128)}', space=vmem, size = 0x9000, scoped, tag = 'internal scratch']
  #allocation2 [shape = 'f32[1,1]{1,0:T(1,128)S(1)}', space=vmem, size = 0x200, scoped, tag = 'scoped memory for forward.1']
  %s0 = inlined_call_operand.vmem [shape: f32[2,12,290], index: 0, kind: input, shape index: {}]
  %s1 = inlined_call_operand.vmem [shape: f32[8,48], index: 1, kind: input, shape index: {}]
  %s2 = inlined_call_operand.vmem [shape: f32[8,1], index: 2, kind: input, shape index: {}]
  %s3 = inlined_call_operand.vmem [shape: f32[4,272,82], index: 3, kind: input, shape index: {}]
  %s4 = inlined_call_operand.vmem [shape: f32[16,128], index: 4, kind: input, shape index: {}]
  %s5 = inlined_call_operand.vmem [shape: f32[16,1], index: 5, kind: input, shape index: {}]
  %s6 = inlined_call_operand.vmem [shape: f32[4,72,26], index: 6, kind: input, shape index: {}]
  %s7 = inlined_call_operand.vmem [shape: f32[32,256], index: 7, kind: input, shape index: {}]
  %s8 = inlined_call_operand.vmem [shape: f32[32,1], index: 8, kind: input, shape index: {}]
  %s9 = inlined_call_operand.vmem [shape: f32[1,20,39], index: 9, kind: input, shape index: {}]
  %s10 = inlined_call_operand.vmem [shape: f32[64,512], index: 10, kind: input, shape index: {}]
  %s11 = inlined_call_operand.vmem [shape: f32[64,1], index: 11, kind: input, shape index: {}]
  %s12 = inlined_call_operand.vmem [shape: f32[1,18,28], index: 12, kind: input, shape index: {}]
  %s13 = inlined_call_operand.vmem [shape: f32[1,1024], index: 13, kind: input, shape index: {}]
  %s14 = inlined_call_operand.<no memory space> [shape: f32[1,1], index: 14, kind: input, shape index: {}]
  %s15 = inlined_call_operand.vmem [shape: f32[1,10,4], index: 15, kind: input, shape index: {}]
  %s16 = inlined_call_operand.vmem [shape: f32[2,1,4], index: 16, kind: output, shape index: {}]
  %s17 = sld [smem:[#allocation0]]
  $region97: #{forward.1} parent=0
    _
  %s19 = ssub.s32 1, %s17
  %s20 = scalar_select 0, %s19, %s17
  %v21 = vstv %s14
  %22 = vst [vmem:[#allocation2] sm:$0x1] %v21
  loop: start=0, step=1, limit=4
  $region2: #{forward.1} parent=0 // loop_pre_header
    _
  $region3: #{forward.1} parent=0 // loop_header
    %s24 = sphi 0, %s28
    %p25 = scmp.ge.s32.totalorder %s24, 4
    %s34 = sphi 0, %s36
    %s37 = sphi 0, %s34
    %s38 = sphi 0, %s37
    %s54 = sphi 0, %s38
    %s58 = sphi 0, %s58
    %s60 = sphi 0, %s58
    %s61 = sphi 0, %s60
    %s75 = sphi 0, %s61
    %s79 = sphi 0, %s79
    %s81 = sphi 0, %s79
    %s82 = sphi 0, %s81
    %s96 = sphi 0, %s82
    %s100 = sphi 0, %s100
    %s102 = sphi 0, %s100
    %s103 = sphi 0, %s102
    %s117 = sphi 0, %s103
    %s121 = sphi 0, %s121
    %s123 = sphi 0, %s121
    %s124 = sphi 0, %s123
    %s138 = sphi 0, %s124
    %s142 = sphi 0, %s142
    %s144 = sphi 0, %s142
    %s145 = sphi 0, %s144
    %s159 = sphi 0, %s145
    %s163 = sphi 0, %s163
    %s165 = sphi 0, %s163
    %s166 = sphi 0, %s165
    %s180 = sphi 0, %s166
    %s184 = sphi 0, %s184
    %s186 = sphi 0, %s184
    %s187 = sphi 0, %s186
    %s201 = sphi 0, %s187
    %s205 = sphi 0, %s205
    %s207 = sphi 0, %s205
    %s208 = sphi 0, %s207
    %s222 = sphi 0, %s208
    %s226 = sphi 0, %s226
    %s228 = sphi 0, %s226
    %s229 = sphi 0, %s228
    %s243 = sphi 0, %s229
    %s247 = sphi 0, %s247
    %s249 = sphi 0, %s247
    %s250 = sphi 0, %s249
    %s264 = sphi 0, %s250
    %s268 = sphi 0, %s268
    %s270 = sphi 0, %s268
    %s271 = sphi 0, %s270
    %s285 = sphi 0, %s271
    %s289 = sphi 0, %s289
    %s291 = sphi 0, %s289
    %s292 = sphi 0, %s291
    %s306 = sphi 0, %s292
    %s310 = sphi 0, %s310
    %s312 = sphi 0, %s310
    %s313 = sphi 0, %s312
    %s327 = sphi 0, %s313
    %s331 = sphi 0, %s331
    %s333 = sphi 0, %s331
    %s334 = sphi 0, %s333
    %s348 = sphi 0, %s334
    %s352 = sphi 0, %s352
    %s354 = sphi 0, %s352
    %s355 = sphi 0, %s354
    %s369 = sphi 0, %s355
    %s375 = sphi 0, %s377
    %s378 = sphi 0, %s375
    %s379 = sphi 0, %s378
    %s395 = sphi 0, %s379
  $region4: #{forward.1} parent=0 // loop_header_branch
    %27 = sbr.rel (%p25) target = $region8
  $region5: #{forward.1} parent=0 // loop_body
    %s29 = ssub.s32 %s24, 1
    %s30 = ssub.s32 %s24, 2
    %s31 = sadd.s32 %s24, 1
    %s32 = ssub.s32 %s24, %s31
    %p33 = scmp.eq.s32.totalorder %s32, 0
    %s35 = sadd.s32 %s34, 1
    %s36 = scalar_select %p33, %s34, %s35
    %p39 = pneg %p33
    %p40 = scmp.eq.s32.totalorder %s24, 1
    %p41 = por %p39, %p40
    %p42 = scmp.ne.s32.totalorder %s34, %s37
    %p43 = scmp.eq.s32.totalorder %s24, 0
    %p44 = por %p42, %p43
    %p45 = scmp.ne.s32.totalorder %s34, %s37
    %p46 = scmp.eq.s32.totalorder %s29, 1
    %p47 = por %p45, %p46
    %p48 = scmp.ne.s32.totalorder %s37, %s38
    %p49 = scmp.eq.s32.totalorder %s29, 0
    %p50 = por %p48, %p49
    %p51 = scmp.ne.s32.totalorder %s37, %s38
    %p52 = scmp.eq.s32.totalorder %s30, 1
    %p53 = por %p51, %p52
    %p55 = scmp.ne.s32.totalorder %s38, %s54
    %p56 = scmp.eq.s32.totalorder %s30, 0
    %p57 = por %p55, %p56
    %s59 = sadd.s32 %s58, 1
    %p62 = scmp.eq.s32.totalorder %s24, 1
    %p63 = scmp.ne.s32.totalorder %s58, %s60
    %p64 = scmp.eq.s32.totalorder %s24, 0
    %p65 = por %p63, %p64
    %p66 = scmp.ne.s32.totalorder %s58, %s60
    %p67 = scmp.eq.s32.totalorder %s29, 1
    %p68 = por %p66, %p67
    %p69 = scmp.ne.s32.totalorder %s60, %s61
    %p70 = scmp.eq.s32.totalorder %s29, 0
    %p71 = por %p69, %p70
    %p72 = scmp.ne.s32.totalorder %s60, %s61
    %p73 = scmp.eq.s32.totalorder %s30, 1
    %p74 = por %p72, %p73
    %p76 = scmp.ne.s32.totalorder %s61, %s75
    %p77 = scmp.eq.s32.totalorder %s30, 0
    %p78 = por %p76, %p77
    %s80 = sadd.s32 %s79, 1
    %p83 = scmp.eq.s32.totalorder %s24, 1
    %p84 = scmp.ne.s32.totalorder %s79, %s81
    %p85 = scmp.eq.s32.totalorder %s24, 0
    %p86 = por %p84, %p85
    %p87 = scmp.ne.s32.totalorder %s79, %s81
    %p88 = scmp.eq.s32.totalorder %s29, 1
    %p89 = por %p87, %p88
    %p90 = scmp.ne.s32.totalorder %s81, %s82
    %p91 = scmp.eq.s32.totalorder %s29, 0
    %p92 = por %p90, %p91
    %p93 = scmp.ne.s32.totalorder %s81, %s82
    %p94 = scmp.eq.s32.totalorder %s30, 1
    %p95 = por %p93, %p94
    %p97 = scmp.ne.s32.totalorder %s82, %s96
    %p98 = scmp.eq.s32.totalorder %s30, 0
    %p99 = por %p97, %p98
    %s101 = sadd.s32 %s100, 1
    %p104 = scmp.eq.s32.totalorder %s24, 1
    %p105 = scmp.ne.s32.totalorder %s100, %s102
    %p106 = scmp.eq.s32.totalorder %s24, 0
    %p107 = por %p105, %p106
    %p108 = scmp.ne.s32.totalorder %s100, %s102
    %p109 = scmp.eq.s32.totalorder %s29, 1
    %p110 = por %p108, %p109
    %p111 = scmp.ne.s32.totalorder %s102, %s103
    %p112 = scmp.eq.s32.totalorder %s29, 0
    %p113 = por %p111, %p112
    %p114 = scmp.ne.s32.totalorder %s102, %s103
    %p115 = scmp.eq.s32.totalorder %s30, 1
    %p116 = por %p114, %p115
    %p118 = scmp.ne.s32.totalorder %s103, %s117
    %p119 = scmp.eq.s32.totalorder %s30, 0
    %p120 = por %p118, %p119
    %s122 = sadd.s32 %s121, 1
    %p125 = scmp.eq.s32.totalorder %s24, 1
    %p126 = scmp.ne.s32.totalorder %s121, %s123
    %p127 = scmp.eq.s32.totalorder %s24, 0
    %p128 = por %p126, %p127
    %p129 = scmp.ne.s32.totalorder %s121, %s123
    %p130 = scmp.eq.s32.totalorder %s29, 1
    %p131 = por %p129, %p130
    %p132 = scmp.ne.s32.totalorder %s123, %s124
    %p133 = scmp.eq.s32.totalorder %s29, 0
    %p134 = por %p132, %p133
    %p135 = scmp.ne.s32.totalorder %s123, %s124
    %p136 = scmp.eq.s32.totalorder %s30, 1
    %p137 = por %p135, %p136
    %p139 = scmp.ne.s32.totalorder %s124, %s138
    %p140 = scmp.eq.s32.totalorder %s30, 0
    %p141 = por %p139, %p140
    %s143 = sadd.s32 %s142, 1
    %p146 = scmp.eq.s32.totalorder %s24, 1
    %p147 = scmp.ne.s32.totalorder %s142, %s144
    %p148 = scmp.eq.s32.totalorder %s24, 0
    %p149 = por %p147, %p148
    %p150 = scmp.ne.s32.totalorder %s142, %s144
    %p151 = scmp.eq.s32.totalorder %s29, 1
    %p152 = por %p150, %p151
    %p153 = scmp.ne.s32.totalorder %s144, %s145
    %p154 = scmp.eq.s32.totalorder %s29, 0
    %p155 = por %p153, %p154
    %p156 = scmp.ne.s32.totalorder %s144, %s145
    %p157 = scmp.eq.s32.totalorder %s30, 1
    %p158 = por %p156, %p157
    %p160 = scmp.ne.s32.totalorder %s145, %s159
    %p161 = scmp.eq.s32.totalorder %s30, 0
    %p162 = por %p160, %p161
    %s164 = sadd.s32 %s163, 1
    %p167 = scmp.eq.s32.totalorder %s24, 1
    %p168 = scmp.ne.s32.totalorder %s163, %s165
    %p169 = scmp.eq.s32.totalorder %s24, 0
    %p170 = por %p168, %p169
    %p171 = scmp.ne.s32.totalorder %s163, %s165
    %p172 = scmp.eq.s32.totalorder %s29, 1
    %p173 = por %p171, %p172
    %p174 = scmp.ne.s32.totalorder %s165, %s166
    %p175 = scmp.eq.s32.totalorder %s29, 0
    %p176 = por %p174, %p175
    %p177 = scmp.ne.s32.totalorder %s165, %s166
    %p178 = scmp.eq.s32.totalorder %s30, 1
    %p179 = por %p177, %p178
    %p181 = scmp.ne.s32.totalorder %s166, %s180
    %p182 = scmp.eq.s32.totalorder %s30, 0
    %p183 = por %p181, %p182
    %s185 = sadd.s32 %s184, 1
    %p188 = scmp.eq.s32.totalorder %s24, 1
    %p189 = scmp.ne.s32.totalorder %s184, %s186
    %p190 = scmp.eq.s32.totalorder %s24, 0
    %p191 = por %p189, %p190
    %p192 = scmp.ne.s32.totalorder %s184, %s186
    %p193 = scmp.eq.s32.totalorder %s29, 1
    %p194 = por %p192, %p193
    %p195 = scmp.ne.s32.totalorder %s186, %s187
    %p196 = scmp.eq.s32.totalorder %s29, 0
    %p197 = por %p195, %p196
    %p198 = scmp.ne.s32.totalorder %s186, %s187
    %p199 = scmp.eq.s32.totalorder %s30, 1
    %p200 = por %p198, %p199
    %p202 = scmp.ne.s32.totalorder %s187, %s201
    %p203 = scmp.eq.s32.totalorder %s30, 0
    %p204 = por %p202, %p203
    %s206 = sadd.s32 %s205, 1
    %p209 = scmp.eq.s32.totalorder %s24, 1
    %p210 = scmp.ne.s32.totalorder %s205, %s207
    %p211 = scmp.eq.s32.totalorder %s24, 0
    %p212 = por %p210, %p211
    %p213 = scmp.ne.s32.totalorder %s205, %s207
    %p214 = scmp.eq.s32.totalorder %s29, 1
    %p215 = por %p213, %p214
    %p216 = scmp.ne.s32.totalorder %s207, %s208
    %p217 = scmp.eq.s32.totalorder %s29, 0
    %p218 = por %p216, %p217
    %p219 = scmp.ne.s32.totalorder %s207, %s208
    %p220 = scmp.eq.s32.totalorder %s30, 1
    %p221 = por %p219, %p220
    %p223 = scmp.ne.s32.totalorder %s208, %s222
    %p224 = scmp.eq.s32.totalorder %s30, 0
    %p225 = por %p223, %p224
    %s227 = sadd.s32 %s226, 1
    %p230 = scmp.eq.s32.totalorder %s24, 1
    %p231 = scmp.ne.s32.totalorder %s226, %s228
    %p232 = scmp.eq.s32.totalorder %s24, 0
    %p233 = por %p231, %p232
    %p234 = scmp.ne.s32.totalorder %s226, %s228
    %p235 = scmp.eq.s32.totalorder %s29, 1
    %p236 = por %p234, %p235
    %p237 = scmp.ne.s32.totalorder %s228, %s229
    %p238 = scmp.eq.s32.totalorder %s29, 0
    %p239 = por %p237, %p238
    %p240 = scmp.ne.s32.totalorder %s228, %s229
    %p241 = scmp.eq.s32.totalorder %s30, 1
    %p242 = por %p240, %p241
    %p244 = scmp.ne.s32.totalorder %s229, %s243
    %p245 = scmp.eq.s32.totalorder %s30, 0
    %p246 = por %p244, %p245
    %s248 = sadd.s32 %s247, 1
    %p251 = scmp.eq.s32.totalorder %s24, 1
    %p252 = scmp.ne.s32.totalorder %s247, %s249
    %p253 = scmp.eq.s32.totalorder %s24, 0
    %p254 = por %p252, %p253
    %p255 = scmp.ne.s32.totalorder %s247, %s249
    %p256 = scmp.eq.s32.totalorder %s29, 1
    %p257 = por %p255, %p256
    %p258 = scmp.ne.s32.totalorder %s249, %s250
    %p259 = scmp.eq.s32.totalorder %s29, 0
    %p260 = por %p258, %p259
    %p261 = scmp.ne.s32.totalorder %s249, %s250
    %p262 = scmp.eq.s32.totalorder %s30, 1
    %p263 = por %p261, %p262
    %p265 = scmp.ne.s32.totalorder %s250, %s264
    %p266 = scmp.eq.s32.totalorder %s30, 0
    %p267 = por %p265, %p266
    %s269 = sadd.s32 %s268, 1
    %p272 = scmp.eq.s32.totalorder %s24, 1
    %p273 = scmp.ne.s32.totalorder %s268, %s270
    %p274 = scmp.eq.s32.totalorder %s24, 0
    %p275 = por %p273, %p274
    %p276 = scmp.ne.s32.totalorder %s268, %s270
    %p277 = scmp.eq.s32.totalorder %s29, 1
    %p278 = por %p276, %p277
    %p279 = scmp.ne.s32.totalorder %s270, %s271
    %p280 = scmp.eq.s32.totalorder %s29, 0
    %p281 = por %p279, %p280
    %p282 = scmp.ne.s32.totalorder %s270, %s271
    %p283 = scmp.eq.s32.totalorder %s30, 1
    %p284 = por %p282, %p283
    %p286 = scmp.ne.s32.totalorder %s271, %s285
    %p287 = scmp.eq.s32.totalorder %s30, 0
    %p288 = por %p286, %p287
    %s290 = sadd.s32 %s289, 1
    %p293 = scmp.eq.s32.totalorder %s24, 1
    %p294 = scmp.ne.s32.totalorder %s289, %s291
    %p295 = scmp.eq.s32.totalorder %s24, 0
    %p296 = por %p294, %p295
    %p297 = scmp.ne.s32.totalorder %s289, %s291
    %p298 = scmp.eq.s32.totalorder %s29, 1
    %p299 = por %p297, %p298
    %p300 = scmp.ne.s32.totalorder %s291, %s292
    %p301 = scmp.eq.s32.totalorder %s29, 0
    %p302 = por %p300, %p301
    %p303 = scmp.ne.s32.totalorder %s291, %s292
    %p304 = scmp.eq.s32.totalorder %s30, 1
    %p305 = por %p303, %p304
    %p307 = scmp.ne.s32.totalorder %s292, %s306
    %p308 = scmp.eq.s32.totalorder %s30, 0
    %p309 = por %p307, %p308
    %s311 = sadd.s32 %s310, 1
    %p314 = scmp.eq.s32.totalorder %s24, 1
    %p315 = scmp.ne.s32.totalorder %s310, %s312
    %p316 = scmp.eq.s32.totalorder %s24, 0
    %p317 = por %p315, %p316
    %p318 = scmp.ne.s32.totalorder %s310, %s312
    %p319 = scmp.eq.s32.totalorder %s29, 1
    %p320 = por %p318, %p319
    %p321 = scmp.ne.s32.totalorder %s312, %s313
    %p322 = scmp.eq.s32.totalorder %s29, 0
    %p323 = por %p321, %p322
    %p324 = scmp.ne.s32.totalorder %s312, %s313
    %p325 = scmp.eq.s32.totalorder %s30, 1
    %p326 = por %p324, %p325
    %p328 = scmp.ne.s32.totalorder %s313, %s327
    %p329 = scmp.eq.s32.totalorder %s30, 0
    %p330 = por %p328, %p329
    %s332 = sadd.s32 %s331, 1
    %p335 = scmp.eq.s32.totalorder %s24, 1
    %p336 = scmp.ne.s32.totalorder %s331, %s333
    %p337 = scmp.eq.s32.totalorder %s24, 0
    %p338 = por %p336, %p337
    %p339 = scmp.ne.s32.totalorder %s331, %s333
    %p340 = scmp.eq.s32.totalorder %s29, 1
    %p341 = por %p339, %p340
    %p342 = scmp.ne.s32.totalorder %s333, %s334
    %p343 = scmp.eq.s32.totalorder %s29, 0
    %p344 = por %p342, %p343
    %p345 = scmp.ne.s32.totalorder %s333, %s334
    %p346 = scmp.eq.s32.totalorder %s30, 1
    %p347 = por %p345, %p346
    %p349 = scmp.ne.s32.totalorder %s334, %s348
    %p350 = scmp.eq.s32.totalorder %s30, 0
    %p351 = por %p349, %p350
    %s353 = sadd.s32 %s352, 1
    %p356 = scmp.eq.s32.totalorder %s24, 1
    %p357 = scmp.ne.s32.totalorder %s352, %s354
    %p358 = scmp.eq.s32.totalorder %s24, 0
    %p359 = por %p357, %p358
    %p360 = scmp.ne.s32.totalorder %s352, %s354
    %p361 = scmp.eq.s32.totalorder %s29, 1
    %p362 = por %p360, %p361
    %p363 = scmp.ne.s32.totalorder %s354, %s355
    %p364 = scmp.eq.s32.totalorder %s29, 0
    %p365 = por %p363, %p364
    %p366 = scmp.ne.s32.totalorder %s354, %s355
    %p367 = scmp.eq.s32.totalorder %s30, 1
    %p368 = por %p366, %p367
    %p370 = scmp.ne.s32.totalorder %s355, %s369
    %p371 = scmp.eq.s32.totalorder %s30, 0
    %p372 = por %p370, %p371
    %s373 = ssub.s32 %s24, %s31
    %p374 = scmp.eq.s32.totalorder %s373, 0
    %s376 = sadd.s32 %s375, 1
    %s377 = scalar_select %p374, %s375, %s376
    %p380 = pneg %p374
    %p381 = scmp.eq.s32.totalorder %s24, 1
    %p382 = por %p380, %p381
    %p383 = scmp.ne.s32.totalorder %s375, %s378
    %p384 = scmp.eq.s32.totalorder %s24, 0
    %p385 = por %p383, %p384
    %p386 = scmp.ne.s32.totalorder %s375, %s378
    %p387 = scmp.eq.s32.totalorder %s29, 1
    %p388 = por %p386, %p387
    %p389 = scmp.ne.s32.totalorder %s378, %s379
    %p390 = scmp.eq.s32.totalorder %s29, 0
    %p391 = por %p389, %p390
    %p392 = scmp.ne.s32.totalorder %s378, %s379
    %p393 = scmp.eq.s32.totalorder %s30, 1
    %p394 = por %p392, %p393
    %p396 = scmp.ne.s32.totalorder %s379, %s395
    %p397 = scmp.eq.s32.totalorder %s30, 0
    %p398 = por %p396, %p397
    %p399 = scmp.le.s32.totalorder 1, %s24
    %p400 = scmp.lt.s32.totalorder %s24, 3
    %p401 = pnand %p399, %p400
    %p402 = pneg %p401
    // Predicated region
    $region9: #{forward.1} parent=5 // pred_check
      _
    $region10: #{forward.1} parent=5 // pred_check_branch
      %404 = sbr.rel (%p401) target = $region12
    $region11: #{forward.1} parent=5 // pred_region
      %s405 = ssub.s32 %s24, 1
      // Predicated region
      $region13: #{forward.1} parent=11 // pred_check
        %p406 = pneg %p71
      $region14: #{forward.1} parent=11 // pred_check_branch
        %408 = sbr.rel (%p406) target = $region16
      $region15: #{forward.1} parent=11 // pred_region
        _
      $region16: #{forward.1} parent=11 // pred_fallthru
        _
      // Predicated region
      $region17: #{forward.1} parent=11 // pred_check
        %p409 = pneg %p92
      $region18: #{forward.1} parent=11 // pred_check_branch
        %411 = sbr.rel (%p409) target = $region20
      $region19: #{forward.1} parent=11 // pred_region
        _
      $region20: #{forward.1} parent=11 // pred_fallthru
        _
      // Predicated region
      $region21: #{forward.1} parent=11 // pred_check
        %p412 = pneg %p113
      $region22: #{forward.1} parent=11 // pred_check_branch
        %414 = sbr.rel (%p412) target = $region24
      $region23: #{forward.1} parent=11 // pred_region
        _
      $region24: #{forward.1} parent=11 // pred_fallthru
        _
      // Predicated region
      $region25: #{forward.1} parent=11 // pred_check
        %p415 = pneg %p134
      $region26: #{forward.1} parent=11 // pred_check_branch
        %417 = sbr.rel (%p415) target = $region28
      $region27: #{forward.1} parent=11 // pred_region
        _
      $region28: #{forward.1} parent=11 // pred_fallthru
        _
      // Predicated region
      $region29: #{forward.1} parent=11 // pred_check
        %p418 = pneg %p155
      $region30: #{forward.1} parent=11 // pred_check_branch
        %420 = sbr.rel (%p418) target = $region32
      $region31: #{forward.1} parent=11 // pred_region
        _
      $region32: #{forward.1} parent=11 // pred_fallthru
        _
      // Predicated region
      $region33: #{forward.1} parent=11 // pred_check
        %p421 = pneg %p176
      $region34: #{forward.1} parent=11 // pred_check_branch
        %423 = sbr.rel (%p421) target = $region36
      $region35: #{forward.1} parent=11 // pred_region
        _
      $region36: #{forward.1} parent=11 // pred_fallthru
        _
      // Predicated region
      $region37: #{forward.1} parent=11 // pred_check
        %p424 = pneg %p197
      $region38: #{forward.1} parent=11 // pred_check_branch
        %426 = sbr.rel (%p424) target = $region40
      $region39: #{forward.1} parent=11 // pred_region
        _
      $region40: #{forward.1} parent=11 // pred_fallthru
        _
      // Predicated region
      $region41: #{forward.1} parent=11 // pred_check
        %p427 = pneg %p218
      $region42: #{forward.1} parent=11 // pred_check_branch
        %429 = sbr.rel (%p427) target = $region44
      $region43: #{forward.1} parent=11 // pred_region
        _
      $region44: #{forward.1} parent=11 // pred_fallthru
        _
      // Predicated region
      $region45: #{forward.1} parent=11 // pred_check
        %p430 = pneg %p239
      $region46: #{forward.1} parent=11 // pred_check_branch
        %432 = sbr.rel (%p430) target = $region48
      $region47: #{forward.1} parent=11 // pred_region
        _
      $region48: #{forward.1} parent=11 // pred_fallthru
        _
      // Predicated region
      $region49: #{forward.1} parent=11 // pred_check
        %p433 = pneg %p260
      $region50: #{forward.1} parent=11 // pred_check_branch
        %435 = sbr.rel (%p433) target = $region52
      $region51: #{forward.1} parent=11 // pred_region
        _
      $region52: #{forward.1} parent=11 // pred_fallthru
        _
      // Predicated region
      $region53: #{forward.1} parent=11 // pred_check
        %p436 = pneg %p281
      $region54: #{forward.1} parent=11 // pred_check_branch
        %438 = sbr.rel (%p436) target = $region56
      $region55: #{forward.1} parent=11 // pred_region
        _
      $region56: #{forward.1} parent=11 // pred_fallthru
        _
      // Predicated region
      $region57: #{forward.1} parent=11 // pred_check
        %p439 = pneg %p302
      $region58: #{forward.1} parent=11 // pred_check_branch
        %441 = sbr.rel (%p439) target = $region60
      $region59: #{forward.1} parent=11 // pred_region
        _
      $region60: #{forward.1} parent=11 // pred_fallthru
        _
      // Predicated region
      $region61: #{forward.1} parent=11 // pred_check
        %p442 = pneg %p323
      $region62: #{forward.1} parent=11 // pred_check_branch
        %444 = sbr.rel (%p442) target = $region64
      $region63: #{forward.1} parent=11 // pred_region
        _
      $region64: #{forward.1} parent=11 // pred_fallthru
        _
      // Predicated region
      $region65: #{forward.1} parent=11 // pred_check
        %p445 = pneg %p344
      $region66: #{forward.1} parent=11 // pred_check_branch
        %447 = sbr.rel (%p445) target = $region68
      $region67: #{forward.1} parent=11 // pred_region
        _
      $region68: #{forward.1} parent=11 // pred_fallthru
        _
      // Predicated region
      $region69: #{forward.1} parent=11 // pred_check
        %p448 = pneg %p365
      $region70: #{forward.1} parent=11 // pred_check_branch
        %450 = sbr.rel (%p448) target = $region72
      $region71: #{forward.1} parent=11 // pred_region
        _
      $region72: #{forward.1} parent=11 // pred_fallthru
        _
    $region12: #{forward.1} parent=5 // pred_fallthru
      _
    %p451 = scmp.lt.s32.totalorder %s24, 2
    // Predicated region
    $region73: #{forward.1} parent=5 // pred_check
      %p452 = pneg %p451
    $region74: #{forward.1} parent=5 // pred_check_branch
      %454 = sbr.rel (%p452) target = $region76
    $region75: #{forward.1} parent=5 // pred_region
      // Predicated region
      $region77: #{forward.1} parent=75 // pred_check
        %p455 = pneg %p44
      $region78: #{forward.1} parent=75 // pred_check_branch
        %457 = sbr.rel (%p455) target = $region80
      $region79: #{forward.1} parent=75 // pred_region
        %p458 = scmp.lt.s32.totalorder %s24, 1
        %s459 = scalar_select %p458, %s24, 1
        %s460 = smul.addr %s459, 6
        %s461 = smul.addr %s460, 8
        %s462 = scalar_lea.vmem %s0, %s461
      $region80: #{forward.1} parent=75 // pred_fallthru
        _
    $region76: #{forward.1} parent=5 // pred_fallthru
      _
    %p463 = scmp.le.s32.totalorder 1, %s24
    %p464 = scmp.lt.s32.totalorder %s24, 3
    %p465 = pnand %p463, %p464
    %p466 = pneg %p465
    // Predicated region
    $region81: #{forward.1} parent=5 // pred_check
      _
    $region82: #{forward.1} parent=5 // pred_check_branch
      %468 = sbr.rel (%p465) target = $region84
    $region83: #{forward.1} parent=5 // pred_region
      %s469 = ssub.s32 %s24, 1
      %p470 = scmp.lt.s32.totalorder %s29, 1
      %s471 = scalar_select %p470, %s29, 1
      %s472 = smul.addr %s471, 6
      %s473 = smul.addr %s472, 8
      %s474 = scalar_lea.vmem %s0, %s473
      %p475 = pneg %p50
      %p476 = pneg %p47
      %p477 = pneg %p71
      %p478 = pneg %p68
      %p479 = pneg %p92
      %p480 = pneg %p89
      %p481 = pneg %p113
      %p482 = pneg %p110
      %p483 = pneg %p134
      %p484 = pneg %p131
      %p485 = pneg %p155
      %p486 = pneg %p152
      %p487 = pneg %p176
      %p488 = pneg %p173
      %p489 = pneg %p197
      %p490 = pneg %p194
      %p491 = pneg %p218
      %p492 = pneg %p215
      %p493 = pneg %p239
      %p494 = pneg %p236
      %p495 = pneg %p260
      %p496 = pneg %p257
      %p497 = pneg %p281
      %p498 = pneg %p278
      %p499 = pneg %p302
      %p500 = pneg %p299
      %p501 = pneg %p323
      %p502 = pneg %p320
      %p503 = pneg %p344
      %p504 = pneg %p341
      %p505 = pneg %p365
      %p506 = pneg %p362
      %p507 = pneg %p391
      %p508 = pneg %p388
      %p509 = scmp.lt.s32.totalorder %s29, 1
      %s510 = scalar_select %p509, %s29, 1
      %s511 = scalar_lea.vmem %s16, %s510
      %p512 = scmp.lt.s32.totalorder %s29, 1
      %s513 = scalar_select %p512, %s29, 1
      %s514 = smul.addr %s513, 6
      %s515 = smul.addr %s514, 8
      %s516 = scalar_lea.vmem %s0, %s515
      %p517 = scmp.lt.s32.totalorder %s29, 1
      %s518 = scalar_select %p517, %s29, 1
      %s519 = scalar_lea.vmem %s16, %s518
      %v520 = vld [vmem:[%s516] sm:$0xff]
      %v521 = vld [vmem:[%s516 + $0x8] sm:$0xff]
      %v522 = vld [vmem:[%s516 + $0x10] sm:$0xff]
      %v523 = vld [vmem:[%s516 + $0x18] sm:$0xf]
      %v524 = vld [vmem:[%s516 + $0x20] sm:$0xf]
      %v525 = vld [vmem:[%s516 + $0x28] sm:$0xf]
      %v526 = vld [vmem:[%s1] sm:$0xff]
      %528 = vrot.lane.b32.xlu0 %v526, 116
      %v529 = vpop.permute.xlu0 %528
      %536 = vrot.lane.b32.xlu0 %v520, 127
      %v537 = vpop.permute.xlu0 %536
      %538 = vrot.lane.b32.xlu0 %v521, 127
      %v539 = vpop.permute.xlu0 %538
      %540 = vrot.lane.b32.xlu0 %v522, 127
      %v541 = vpop.permute.xlu0 %540
      %542 = vrot.lane.b32.xlu0 %v523, 127
      %v543 = vpop.permute.xlu0 %542
      %544 = vrot.lane.b32.xlu0 %v524, 127
      %v545 = vpop.permute.xlu0 %544
      %546 = vrot.lane.b32.xlu0 %v525, 127
      %v547 = vpop.permute.xlu0 %546
      %vm548 = vcmask 1039360
      %v549 = vsel %vm548, %v537, %v539
      %v550 = vsel %vm548, %v539, %v541
      %v551 = vsel %vm548, %v543, %v545
      %v552 = vsel %vm548, %v545, %v547
      %vm556 = vcmask 97280
      %v557 = vsel %vm556, %v529, 0
      %vm559 = vcmask 1043456
      %v560 = vsel %vm559, %v551, 0
      %v562 = vsel %vm559, %v552, 0
      %v564 = vsel %vm559, %v547, 0
      %566 = vmatpush.msra.mxu0 0.0
      %567 = vmatpush.msra.mxu0 0.0
      %568 = vmatpush.msra.mxu0 0.0
      %569 = vmatpush.msra.mxu0 0.0
      %570 = vmatpush.msra.mxu0 0.0
      %571 = vmatpush.msra.mxu0 0.0
      %572 = vmatpush.msra.mxu0 0.0
      %573 = vmatpush.msra.mxu0 0.0
      %574 = vmatpush.msra.mxu0 0.0
      %575 = vmatpush.msra.mxu0 0.0
      %576 = vmatpush.msra.mxu0 0.0
      %577 = vmatpush.msra.mxu0 0.0
      %578 = vmatpush.msra.mxu0 0.0
      %579 = vmatpush.msra.mxu0 0.0
      %580 = vmatpush.msra.mxu0 %v560
      %581 = vmatpush.msra.mxu0 %v549
      %582 = vmatmul.f32.gmra.mxu0 %v557
      %v583 = vpop.f32.mrf.mxu0
      %v584 = vadd.f32 0.0, %v583
      %585 = vdwg.mxu0
      %586 = vmatpush.msra.mxu0 0.0
      %587 = vmatpush.msra.mxu0 0.0
      %588 = vmatpush.msra.mxu0 0.0
      %589 = vmatpush.msra.mxu0 0.0
      %590 = vmatpush.msra.mxu0 0.0
      %591 = vmatpush.msra.mxu0 0.0
      %592 = vmatpush.msra.mxu0 0.0
      %593 = vmatpush.msra.mxu0 0.0
      %594 = vmatpush.msra.mxu0 0.0
      %595 = vmatpush.msra.mxu0 0.0
      %596 = vmatpush.msra.mxu0 0.0
      %597 = vmatpush.msra.mxu0 0.0
      %598 = vmatpush.msra.mxu0 0.0
      %599 = vmatpush.msra.mxu0 0.0
      %600 = vmatpush.msra.mxu0 %v562
      %601 = vmatpush.msra.mxu0 %v550
      %602 = vmatmul.f32.gmra.mxu0 %v557
      %v603 = vpop.f32.mrf.mxu0
      %v604 = vadd.f32 0.0, %v603
      %605 = vdwg.mxu0
      %606 = vmatpush.msra.mxu0 0.0
      %607 = vmatpush.msra.mxu0 0.0
      %608 = vmatpush.msra.mxu0 0.0
      %609 = vmatpush.msra.mxu0 0.0
      %610 = vmatpush.msra.mxu0 0.0
      %611 = vmatpush.msra.mxu0 0.0
      %612 = vmatpush.msra.mxu0 0.0
      %613 = vmatpush.msra.mxu0 0.0
      %614 = vmatpush.msra.mxu0 0.0
      %615 = vmatpush.msra.mxu0 0.0
      %616 = vmatpush.msra.mxu0 0.0
      %617 = vmatpush.msra.mxu0 0.0
      %618 = vmatpush.msra.mxu0 0.0
      %619 = vmatpush.msra.mxu0 0.0
      %620 = vmatpush.msra.mxu0 %v564
      %621 = vmatpush.msra.mxu0 %v541
      %622 = vmatmul.f32.gmra.mxu0 %v557
      %v623 = vpop.f32.mrf.mxu0
      %v624 = vadd.f32 0.0, %v623
      %625 = vdwg.mxu0
      %v626 = vsel %vm556, %v526, 0
      %v628 = vsel %vm559, %v523, 0
      %v630 = vsel %vm559, %v524, 0
      %v632 = vsel %vm559, %v525, 0
      %634 = vmatpush.msra.mxu0 0.0
      %635 = vmatpush.msra.mxu0 0.0
      %636 = vmatpush.msra.mxu0 0.0
      %637 = vmatpush.msra.mxu0 0.0
      %638 = vmatpush.msra.mxu0 0.0
      %639 = vmatpush.msra.mxu0 0.0
      %640 = vmatpush.msra.mxu0 0.0
      %641 = vmatpush.msra.mxu0 0.0
      %642 = vmatpush.msra.mxu0 0.0
      %643 = vmatpush.msra.mxu0 0.0
      %644 = vmatpush.msra.mxu0 0.0
      %645 = vmatpush.msra.mxu0 0.0
      %646 = vmatpush.msra.mxu0 0.0
      %647 = vmatpush.msra.mxu0 0.0
      %648 = vmatpush.msra.mxu0 %v628
      %649 = vmatpush.msra.mxu0 %v520
      %650 = vmatmul.f32.gmra.mxu0 %v626
      %v651 = vpop.f32.mrf.mxu0
      %v652 = vadd.f32 %v584, %v651
      %653 = vdwg.mxu0
      %654 = vmatpush.msra.mxu0 0.0
      %655 = vmatpush.msra.mxu0 0.0
      %656 = vmatpush.msra.mxu0 0.0
      %657 = vmatpush.msra.mxu0 0.0
      %658 = vmatpush.msra.mxu0 0.0
      %659 = vmatpush.msra.mxu0 0.0
      %660 = vmatpush.msra.mxu0 0.0
      %661 = vmatpush.msra.mxu0 0.0
      %662 = vmatpush.msra.mxu0 0.0
      %663 = vmatpush.msra.mxu0 0.0
      %664 = vmatpush.msra.mxu0 0.0
      %665 = vmatpush.msra.mxu0 0.0
      %666 = vmatpush.msra.mxu0 0.0
      %667 = vmatpush.msra.mxu0 0.0
      %668 = vmatpush.msra.mxu0 %v630
      %669 = vmatpush.msra.mxu0 %v521
      %670 = vmatmul.f32.gmra.mxu0 %v626
      %v671 = vpop.f32.mrf.mxu0
      %v672 = vadd.f32 %v604, %v671
      %673 = vdwg.mxu0
      %674 = vmatpush.msra.mxu0 0.0
      %675 = vmatpush.msra.mxu0 0.0
      %676 = vmatpush.msra.mxu0 0.0
      %677 = vmatpush.msra.mxu0 0.0
      %678 = vmatpush.msra.mxu0 0.0
      %679 = vmatpush.msra.mxu0 0.0
      %680 = vmatpush.msra.mxu0 0.0
      %681 = vmatpush.msra.mxu0 0.0
      %682 = vmatpush.msra.mxu0 0.0
      %683 = vmatpush.msra.mxu0 0.0
      %684 = vmatpush.msra.mxu0 0.0
      %685 = vmatpush.msra.mxu0 0.0
      %686 = vmatpush.msra.mxu0 0.0
      %687 = vmatpush.msra.mxu0 0.0
      %688 = vmatpush.msra.mxu0 %v632
      %689 = vmatpush.msra.mxu0 %v522
      %690 = vmatmul.f32.gmra.mxu0 %v626
      %v691 = vpop.f32.mrf.mxu0
      %v692 = vadd.f32 %v624, %v691
      %693 = vdwg.mxu0
      %694 = vrot.lane.b32.xlu0 %v526, 104
      %v695 = vpop.permute.xlu0 %694
      %696 = vrot.lane.b32.xlu0 %v520, 111
      %v697 = vpop.permute.xlu0 %696
      %698 = vrot.lane.b32.xlu0 %v521, 111
      %v699 = vpop.permute.xlu0 %698
      %700 = vrot.lane.b32.xlu0 %v522, 111
      %v701 = vpop.permute.xlu0 %700
      %702 = vrot.lane.b32.xlu0 %v523, 111
      %v703 = vpop.permute.xlu0 %702
      %704 = vrot.lane.b32.xlu0 %v524, 111
      %v705 = vpop.permute.xlu0 %704
      %706 = vrot.lane.b32.xlu0 %v525, 111
      %v707 = vpop.permute.xlu0 %706
      %vm708 = vcmask 908288
      %v709 = vsel %vm708, %v697, %v699
      %v710 = vsel %vm708, %v699, %v701
      %v711 = vsel %vm708, %v703, %v705
      %v712 = vsel %vm708, %v705, %v707
      %v716 = vsel %vm556, %v695, 0
      %v718 = vsel %vm559, %v711, 0
      %v720 = vsel %vm559, %v712, 0
      %v722 = vsel %vm559, %v707, 0
      %724 = vmatpush.msra.mxu0 0.0
      %725 = vmatpush.msra.mxu0 0.0
      %726 = vmatpush.msra.mxu0 0.0
      %727 = vmatpush.msra.mxu0 0.0
      %728 = vmatpush.msra.mxu0 0.0
      %729 = vmatpush.msra.mxu0 0.0
      %730 = vmatpush.msra.mxu0 0.0
      %731 = vmatpush.msra.mxu0 0.0
      %732 = vmatpush.msra.mxu0 0.0
      %733 = vmatpush.msra.mxu0 0.0
      %734 = vmatpush.msra.mxu0 0.0
      %735 = vmatpush.msra.mxu0 0.0
      %736 = vmatpush.msra.mxu0 0.0
      %737 = vmatpush.msra.mxu0 0.0
      %738 = vmatpush.msra.mxu0 %v718
      %739 = vmatpush.msra.mxu0 %v709
      %740 = vmatmul.f32.gmra.mxu0 %v716
      %v741 = vpop.f32.mrf.mxu0
      %v742 = vadd.f32 0.0, %v741
      %743 = vdwg.mxu0
      %744 = vmatpush.msra.mxu0 0.0
      %745 = vmatpush.msra.mxu0 0.0
      %746 = vmatpush.msra.mxu0 0.0
      %747 = vmatpush.msra.mxu0 0.0
      %748 = vmatpush.msra.mxu0 0.0
      %749 = vmatpush.msra.mxu0 0.0
      %750 = vmatpush.msra.mxu0 0.0
      %751 = vmatpush.msra.mxu0 0.0
      %752 = vmatpush.msra.mxu0 0.0
      %753 = vmatpush.msra.mxu0 0.0
      %754 = vmatpush.msra.mxu0 0.0
      %755 = vmatpush.msra.mxu0 0.0
      %756 = vmatpush.msra.mxu0 0.0
      %757 = vmatpush.msra.mxu0 0.0
      %758 = vmatpush.msra.mxu0 %v720
      %759 = vmatpush.msra.mxu0 %v710
      %760 = vmatmul.f32.gmra.mxu0 %v716
      %v761 = vpop.f32.mrf.mxu0
      %v762 = vadd.f32 0.0, %v761
      %763 = vdwg.mxu0
      %764 = vmatpush.msra.mxu0 0.0
      %765 = vmatpush.msra.mxu0 0.0
      %766 = vmatpush.msra.mxu0 0.0
      %767 = vmatpush.msra.mxu0 0.0
      %768 = vmatpush.msra.mxu0 0.0
      %769 = vmatpush.msra.mxu0 0.0
      %770 = vmatpush.msra.mxu0 0.0
      %771 = vmatpush.msra.mxu0 0.0
      %772 = vmatpush.msra.mxu0 0.0
      %773 = vmatpush.msra.mxu0 0.0
      %774 = vmatpush.msra.mxu0 0.0
      %775 = vmatpush.msra.mxu0 0.0
      %776 = vmatpush.msra.mxu0 0.0
      %777 = vmatpush.msra.mxu0 0.0
      %778 = vmatpush.msra.mxu0 %v722
      %779 = vmatpush.msra.mxu0 %v701
      %780 = vmatmul.f32.gmra.mxu0 %v716
      %v781 = vpop.f32.mrf.mxu0
      %v782 = vadd.f32 0.0, %v781
      %783 = vdwg.mxu0
      %v784 = vadd.f32 %v652, %v742
      %v785 = vadd.f32 %v672, %v762
      %v786 = vadd.f32 %v692, %v782
      %787 = vrot.lane.b32.xlu0 %v526, 92
      %v788 = vpop.permute.xlu0 %787
      %789 = vrot.lane.b32.xlu0 %v520, 110
      %v790 = vpop.permute.xlu0 %789
      %791 = vrot.lane.b32.xlu0 %v521, 110
      %v792 = vpop.permute.xlu0 %791
      %793 = vrot.lane.b32.xlu0 %v522, 110
      %v794 = vpop.permute.xlu0 %793
      %795 = vrot.lane.b32.xlu0 %v523, 110
      %v796 = vpop.permute.xlu0 %795
      %797 = vrot.lane.b32.xlu0 %v524, 110
      %v798 = vpop.permute.xlu0 %797
      %799 = vrot.lane.b32.xlu0 %v525, 110
      %v800 = vpop.permute.xlu0 %799
      %vm801 = vcmask 900096
      %v802 = vsel %vm801, %v790, %v792
      %v803 = vsel %vm801, %v792, %v794
      %v804 = vsel %vm801, %v796, %v798
      %v805 = vsel %vm801, %v798, %v800
      %v809 = vsel %vm556, %v788, 0
      %v811 = vsel %vm559, %v804, 0
      %v813 = vsel %vm559, %v805, 0
      %v815 = vsel %vm559, %v800, 0
      %817 = vmatpush.msra.mxu0 0.0
      %818 = vmatpush.msra.mxu0 0.0
      %819 = vmatpush.msra.mxu0 0.0
      %820 = vmatpush.msra.mxu0 0.0
      %821 = vmatpush.msra.mxu0 0.0
      %822 = vmatpush.msra.mxu0 0.0
      %823 = vmatpush.msra.mxu0 0.0
      %824 = vmatpush.msra.mxu0 0.0
      %825 = vmatpush.msra.mxu0 0.0
      %826 = vmatpush.msra.mxu0 0.0
      %827 = vmatpush.msra.mxu0 0.0
      %828 = vmatpush.msra.mxu0 0.0
      %829 = vmatpush.msra.mxu0 0.0
      %830 = vmatpush.msra.mxu0 0.0
      %831 = vmatpush.msra.mxu0 %v811
      %832 = vmatpush.msra.mxu0 %v802
      %833 = vmatmul.f32.gmra.mxu0 %v809
      %v834 = vpop.f32.mrf.mxu0
      %v835 = vadd.f32 0.0, %v834
      %836 = vdwg.mxu0
      %837 = vmatpush.msra.mxu0 0.0
      %838 = vmatpush.msra.mxu0 0.0
      %839 = vmatpush.msra.mxu0 0.0
      %840 = vmatpush.msra.mxu0 0.0
      %841 = vmatpush.msra.mxu0 0.0
      %842 = vmatpush.msra.mxu0 0.0
      %843 = vmatpush.msra.mxu0 0.0
      %844 = vmatpush.msra.mxu0 0.0
      %845 = vmatpush.msra.mxu0 0.0
      %846 = vmatpush.msra.mxu0 0.0
      %847 = vmatpush.msra.mxu0 0.0
      %848 = vmatpush.msra.mxu0 0.0
      %849 = vmatpush.msra.mxu0 0.0
      %850 = vmatpush.msra.mxu0 0.0
      %851 = vmatpush.msra.mxu0 %v813
      %852 = vmatpush.msra.mxu0 %v803
      %853 = vmatmul.f32.gmra.mxu0 %v809
      %v854 = vpop.f32.mrf.mxu0
      %v855 = vadd.f32 0.0, %v854
      %856 = vdwg.mxu0
      %857 = vmatpush.msra.mxu0 0.0
      %858 = vmatpush.msra.mxu0 0.0
      %859 = vmatpush.msra.mxu0 0.0
      %860 = vmatpush.msra.mxu0 0.0
      %861 = vmatpush.msra.mxu0 0.0
      %862 = vmatpush.msra.mxu0 0.0
      %863 = vmatpush.msra.mxu0 0.0
      %864 = vmatpush.msra.mxu0 0.0
      %865 = vmatpush.msra.mxu0 0.0
      %866 = vmatpush.msra.mxu0 0.0
      %867 = vmatpush.msra.mxu0 0.0
      %868 = vmatpush.msra.mxu0 0.0
      %869 = vmatpush.msra.mxu0 0.0
      %870 = vmatpush.msra.mxu0 0.0
      %871 = vmatpush.msra.mxu0 %v815
      %872 = vmatpush.msra.mxu0 %v794
      %873 = vmatmul.f32.gmra.mxu0 %v809
      %v874 = vpop.f32.mrf.mxu0
      %v875 = vadd.f32 0.0, %v874
      %876 = vdwg.mxu0
      %v877 = vadd.f32 %v784, %v835
      %v878 = vadd.f32 %v785, %v855
      %v879 = vadd.f32 %v786, %v875
      %v880 = vld [vmem:[%s2] sm:$0xff]
      %882 = vset.pattern.permute.xlu0 0
      %883 = vperm.xlu0 %882, %v880
      %v884 = vpop.permute.xlu0 %883
      %v886 = vadd.f32 %v877, %v884
      %v887 = vadd.f32 %v878, %v884
      %v888 = vadd.f32 %v879, %v884
      %vm889 = vcmp.gt.f32.partialorder %v886, 0.0
      %vm890 = vcmp.gt.f32.partialorder %v887, 0.0
      %vm891 = vcmp.gt.f32.partialorder %v888, 0.0
      %v892 = vmul.f32 %v886, 0.2
      %v893 = vmul.f32 %v887, 0.2
      %v894 = vmul.f32 %v888, 0.2
      %v895 = vsel %vm889, %v886, %v892
      %v896 = vsel %vm890, %v887, %v893
      %v897 = vsel %vm891, %v888, %v894
      %v898 = vld [vmem:[%s3] sm:$0xff]
      %v899 = vld [vmem:[%s3 + $0x8] sm:$0xff]
      %v900 = vld [vmem:[%s3 + $0x10] sm:$0xff]
      %v901 = vld [vmem:[%s3 + $0x18] sm:$0xff]
      %v902 = vld [vmem:[%s3 + $0x20] sm:$0xff]
      %v903 = vld [vmem:[%s3 + $0x28] sm:$0xff]
      %v904 = vld [vmem:[%s3 + $0x30] sm:$0xff]
      %v905 = vld [vmem:[%s3 + $0x38] sm:$0xff]
      %v906 = vld [vmem:[%s3 + $0x40] sm:$0xff]
      %v907 = vld [vmem:[%s3 + $0x48] sm:$0xff]
      %v908 = vld [vmem:[%s3 + $0x50] sm:$0xff]
      %v909 = vld [vmem:[%s3 + $0x58] sm:$0xff]
      %v910 = vld [vmem:[%s3 + $0x60] sm:$0xff]
      %v911 = vld [vmem:[%s3 + $0x68] sm:$0xff]
      %v912 = vld [vmem:[%s3 + $0x70] sm:$0xff]
      %v913 = vld [vmem:[%s3 + $0x78] sm:$0xff]
      %v914 = vld [vmem:[%s3 + $0x80] sm:$0xff]
      %v915 = vld [vmem:[%s3 + $0x88] sm:$0xff]
      %v916 = vld [vmem:[%s3 + $0x90] sm:$0xff]
      %v917 = vld [vmem:[%s3 + $0x98] sm:$0xff]
      %v918 = vld [vmem:[%s3 + $0xa0] sm:$0xff]
      %v919 = vld [vmem:[%s3 + $0xa8] sm:$0xff]
      %v920 = vld [vmem:[%s3 + $0xb0] sm:$0xff]
      %v921 = vld [vmem:[%s3 + $0xb8] sm:$0xff]
      %v922 = vld [vmem:[%s3 + $0xc0] sm:$0xff]
      %v923 = vld [vmem:[%s3 + $0xc8] sm:$0xff]
      %v924 = vld [vmem:[%s3 + $0xd0] sm:$0xff]
      %v925 = vld [vmem:[%s3 + $0xd8] sm:$0xff]
      %v926 = vld [vmem:[%s3 + $0xe0] sm:$0xff]
      %v927 = vld [vmem:[%s3 + $0xe8] sm:$0xff]
      %v928 = vld [vmem:[%s3 + $0xf0] sm:$0xff]
      %v929 = vld [vmem:[%s3 + $0xf8] sm:$0xff]
      %v930 = vld [vmem:[%s3 + $0x100] sm:$0xff]
      %v931 = vld [vmem:[%s3 + $0x108] sm:$0xff]
      %v932 = vld [vmem:[%s3 + $0x110] sm:$0xff]
      %v933 = vld [vmem:[%s3 + $0x118] sm:$0xff]
      %v934 = vld [vmem:[%s3 + $0x120] sm:$0xff]
      %v935 = vld [vmem:[%s3 + $0x128] sm:$0xff]
      %v936 = vld [vmem:[%s3 + $0x130] sm:$0xff]
      %v937 = vld [vmem:[%s3 + $0x138] sm:$0xff]
      %v938 = vld [vmem:[%s3 + $0x140] sm:$0xff]
      %v939 = vld [vmem:[%s3 + $0x148] sm:$0xff]
      %v940 = vld [vmem:[%s3 + $0x150] sm:$0xff]
      %v941 = vld [vmem:[%s3 + $0x158] sm:$0xff]
      %v942 = vld [vmem:[%s3 + $0x160] sm:$0xff]
      %v943 = vld [vmem:[%s3 + $0x168] sm:$0xff]
      %v944 = vld [vmem:[%s3 + $0x170] sm:$0xff]
      %v945 = vld [vmem:[%s3 + $0x178] sm:$0xff]
      %v946 = vld [vmem:[%s3 + $0x180] sm:$0xff]
      %v947 = vld [vmem:[%s3 + $0x188] sm:$0xff]
      %v948 = vld [vmem:[%s3 + $0x190] sm:$0xff]
      %v949 = vld [vmem:[%s3 + $0x198] sm:$0xff]
      %v950 = vld [vmem:[%s3 + $0x1a0] sm:$0xff]
      %v951 = vld [vmem:[%s3 + $0x1a8] sm:$0xff]
      %v952 = vld [vmem:[%s3 + $0x1b0] sm:$0xff]
      %v953 = vld [vmem:[%s3 + $0x1b8] sm:$0xff]
      %v954 = vld [vmem:[%s3 + $0x1c0] sm:$0xff]
      %v955 = vld [vmem:[%s3 + $0x1c8] sm:$0xff]
      %v956 = vld [vmem:[%s3 + $0x1d0] sm:$0xff]
      %v957 = vld [vmem:[%s3 + $0x1d8] sm:$0xff]
      %v958 = vld [vmem:[%s3 + $0x1e0] sm:$0xff]
      %v959 = vld [vmem:[%s3 + $0x1e8] sm:$0xff]
      %v960 = vld [vmem:[%s3 + $0x1f0] sm:$0xff]
      %v961 = vld [vmem:[%s3 + $0x1f8] sm:$0xff]
      %v962 = vld [vmem:[%s3 + $0x200] sm:$0xff]
      %v963 = vld [vmem:[%s3 + $0x208] sm:$0xff]
      %v964 = vld [vmem:[%s3 + $0x210] sm:$0xff]
      %v965 = vld [vmem:[%s3 + $0x218] sm:$0xff]
      %v966 = vld [vmem:[%s3 + $0x220] sm:$0xff]
      %v967 = vld [vmem:[%s3 + $0x228] sm:$0xff]
      %v968 = vld [vmem:[%s3 + $0x230] sm:$0xff]
      %v969 = vld [vmem:[%s3 + $0x238] sm:$0xff]
      %v970 = vld [vmem:[%s3 + $0x240] sm:$0xff]
      %v971 = vld [vmem:[%s3 + $0x248] sm:$0xff]
      %v972 = vld [vmem:[%s3 + $0x250] sm:$0xff]
      %v973 = vld [vmem:[%s3 + $0x258] sm:$0xff]
      %v974 = vld [vmem:[%s3 + $0x260] sm:$0xff]
      %v975 = vld [vmem:[%s3 + $0x268] sm:$0xff]
      %v976 = vld [vmem:[%s3 + $0x270] sm:$0xff]
      %v977 = vld [vmem:[%s3 + $0x278] sm:$0xff]
      %v978 = vld [vmem:[%s3 + $0x280] sm:$0xff]
      %v979 = vld [vmem:[%s3 + $0x288] sm:$0xff]
      %v980 = vld [vmem:[%s3 + $0x290] sm:$0xff]
      %v981 = vld [vmem:[%s3 + $0x298] sm:$0xff]
      %v982 = vld [vmem:[%s3 + $0x2a0] sm:$0xff]
      %v983 = vld [vmem:[%s3 + $0x2a8] sm:$0xff]
      %v984 = vld [vmem:[%s3 + $0x2b0] sm:$0xff]
      %v985 = vld [vmem:[%s3 + $0x2b8] sm:$0xff]
      %v986 = vld [vmem:[%s3 + $0x2c0] sm:$0xff]
      %v987 = vld [vmem:[%s3 + $0x2c8] sm:$0xff]
      %v988 = vld [vmem:[%s3 + $0x2d0] sm:$0xff]
      %v989 = vld [vmem:[%s3 + $0x2d8] sm:$0xff]
      %v990 = vld [vmem:[%s3 + $0x2e0] sm:$0xff]
      %v991 = vld [vmem:[%s3 + $0x2e8] sm:$0xff]
      %v992 = vld [vmem:[%s3 + $0x2f0] sm:$0xff]
      %v993 = vld [vmem:[%s3 + $0x2f8] sm:$0xff]
      %v994 = vld [vmem:[%s3 + $0x300] sm:$0xff]
      %v995 = vld [vmem:[%s3 + $0x308] sm:$0xff]
      %v996 = vld [vmem:[%s3 + $0x310] sm:$0xff]
      %v997 = vld [vmem:[%s3 + $0x318] sm:$0xff]
      %v998 = vld [vmem:[%s3 + $0x320] sm:$0xff]
      %v999 = vld [vmem:[%s3 + $0x328] sm:$0xff]
      %v1000 = vld [vmem:[%s3 + $0x330] sm:$0xff]
      %v1001 = vld [vmem:[%s3 + $0x338] sm:$0xff]
      %v1002 = vld [vmem:[%s3 + $0x340] sm:$0xff]
      %v1003 = vld [vmem:[%s3 + $0x348] sm:$0xff]
      %v1004 = vld [vmem:[%s3 + $0x350] sm:$0xff]
      %v1005 = vld [vmem:[%s3 + $0x358] sm:$0xff]
      %v1006 = vld [vmem:[%s3 + $0x360] sm:$0xff]
      %v1007 = vld [vmem:[%s3 + $0x368] sm:$0xff]
      %v1008 = vld [vmem:[%s3 + $0x370] sm:$0xff]
      %v1009 = vld [vmem:[%s3 + $0x378] sm:$0xff]
      %v1010 = vld [vmem:[%s3 + $0x380] sm:$0xff]
      %v1011 = vld [vmem:[%s3 + $0x388] sm:$0xff]
      %v1012 = vld [vmem:[%s3 + $0x390] sm:$0xff]
      %v1013 = vld [vmem:[%s3 + $0x398] sm:$0xff]
      %v1014 = vld [vmem:[%s3 + $0x3a0] sm:$0xff]
      %v1015 = vld [vmem:[%s3 + $0x3a8] sm:$0xff]
      %v1016 = vld [vmem:[%s3 + $0x3b0] sm:$0xff]
      %v1017 = vld [vmem:[%s3 + $0x3b8] sm:$0xff]
      %v1018 = vld [vmem:[%s3 + $0x3c0] sm:$0xff]
      %v1019 = vld [vmem:[%s3 + $0x3c8] sm:$0xff]
      %v1020 = vld [vmem:[%s3 + $0x3d0] sm:$0xff]
      %v1021 = vld [vmem:[%s3 + $0x3d8] sm:$0xff]
      %v1022 = vld [vmem:[%s3 + $0x3e0] sm:$0xff]
      %v1023 = vld [vmem:[%s3 + $0x3e8] sm:$0xff]
      %v1024 = vld [vmem:[%s3 + $0x3f0] sm:$0xff]
      %v1025 = vld [vmem:[%s3 + $0x3f8] sm:$0xff]
      %v1026 = vld [vmem:[%s3 + $0x400] sm:$0xff]
      %v1027 = vld [vmem:[%s3 + $0x408] sm:$0xff]
      %v1028 = vld [vmem:[%s3 + $0x410] sm:$0xff]
      %v1029 = vld [vmem:[%s3 + $0x418] sm:$0xff]
      %v1030 = vld [vmem:[%s3 + $0x420] sm:$0xff]
      %v1031 = vld [vmem:[%s3 + $0x428] sm:$0xff]
      %v1032 = vld [vmem:[%s3 + $0x430] sm:$0xff]
      %v1033 = vld [vmem:[%s3 + $0x438] sm:$0xff]
      %vm1034 = vcmask 130048
      %v1036 = vsel %vm1034, %v897, 0
      %1038 = vmatpush.msra.mxu0 %v913
      %1039 = vmatpush.msra.mxu0 %v912
      %1040 = vmatpush.msra.mxu0 %v911
      %1041 = vmatpush.msra.mxu0 %v910
      %1042 = vmatpush.msra.mxu0 %v909
      %1043 = vmatpush.msra.mxu0 %v908
      %1044 = vmatpush.msra.mxu0 %v907
      %1045 = vmatpush.msra.mxu0 %v906
      %1046 = vmatpush.msra.mxu0 %v905
      %1047 = vmatpush.msra.mxu0 %v904
      %1048 = vmatpush.msra.mxu0 %v903
      %1049 = vmatpush.msra.mxu0 %v902
      %1050 = vmatpush.msra.mxu0 %v901
      %1051 = vmatpush.msra.mxu0 %v900
      %1052 = vmatpush.msra.mxu0 %v899
      %1053 = vmatpush.msra.mxu0 %v898
      %1054 = vmatmul.f32.gmra.mxu0 %v895
      %v1055 = vpop.f32.mrf.mxu0
      %v1056 = vadd.f32 0.0, %v1055
      %1057 = vdwg.mxu0
      %1058 = vmatpush.msra.mxu0 %v929
      %1059 = vmatpush.msra.mxu0 %v928
      %1060 = vmatpush.msra.mxu0 %v927
      %1061 = vmatpush.msra.mxu0 %v926
      %1062 = vmatpush.msra.mxu0 %v925
      %1063 = vmatpush.msra.mxu0 %v924
      %1064 = vmatpush.msra.mxu0 %v923
      %1065 = vmatpush.msra.mxu0 %v922
      %1066 = vmatpush.msra.mxu0 %v921
      %1067 = vmatpush.msra.mxu0 %v920
      %1068 = vmatpush.msra.mxu0 %v919
      %1069 = vmatpush.msra.mxu0 %v918
      %1070 = vmatpush.msra.mxu0 %v917
      %1071 = vmatpush.msra.mxu0 %v916
      %1072 = vmatpush.msra.mxu0 %v915
      %1073 = vmatpush.msra.mxu0 %v914
      %1074 = vmatmul.f32.gmra.mxu0 %v896
      %v1075 = vpop.f32.mrf.mxu0
      %v1076 = vadd.f32 %v1056, %v1075
      %1077 = vdwg.mxu0
      %1078 = vmatpush.msra.mxu0 0.0
      %1079 = vmatpush.msra.mxu0 0.0
      %1080 = vmatpush.msra.mxu0 0.0
      %1081 = vmatpush.msra.mxu0 0.0
      %1082 = vmatpush.msra.mxu0 0.0
      %1083 = vmatpush.msra.mxu0 0.0
      %1084 = vmatpush.msra.mxu0 0.0
      %1085 = vmatpush.msra.mxu0 0.0
      %1086 = vmatpush.msra.mxu0 0.0
      %1087 = vmatpush.msra.mxu0 0.0
      %1088 = vmatpush.msra.mxu0 0.0
      %1089 = vmatpush.msra.mxu0 0.0
      %1090 = vmatpush.msra.mxu0 0.0
      %1091 = vmatpush.msra.mxu0 0.0
      %1092 = vmatpush.msra.mxu0 %v931
      %1093 = vmatpush.msra.mxu0 %v930
      %1094 = vmatmul.f32.gmra.mxu0 %v1036
      %v1095 = vpop.f32.mrf.mxu0
      %v1096 = vadd.f32 %v1076, %v1095
      %1097 = vdwg.mxu0
      %1098 = vmatpush.msra.mxu0 %v947
      %1099 = vmatpush.msra.mxu0 %v946
      %1100 = vmatpush.msra.mxu0 %v945
      %1101 = vmatpush.msra.mxu0 %v944
      %1102 = vmatpush.msra.mxu0 %v943
      %1103 = vmatpush.msra.mxu0 %v942
      %1104 = vmatpush.msra.mxu0 %v941
      %1105 = vmatpush.msra.mxu0 %v940
      %1106 = vmatpush.msra.mxu0 %v939
      %1107 = vmatpush.msra.mxu0 %v938
      %1108 = vmatpush.msra.mxu0 %v937
      %1109 = vmatpush.msra.mxu0 %v936
      %1110 = vmatpush.msra.mxu0 %v935
      %1111 = vmatpush.msra.mxu0 %v934
      %1112 = vmatpush.msra.mxu0 %v933
      %1113 = vmatpush.msra.mxu0 %v932
      %1114 = vmatmul.f32.gmra.mxu0 %v895
      %v1115 = vpop.f32.mrf.mxu0
      %v1116 = vadd.f32 0.0, %v1115
      %1117 = vdwg.mxu0
      %1118 = vmatpush.msra.mxu0 %v963
      %1119 = vmatpush.msra.mxu0 %v962
      %1120 = vmatpush.msra.mxu0 %v961
      %1121 = vmatpush.msra.mxu0 %v960
      %1122 = vmatpush.msra.mxu0 %v959
      %1123 = vmatpush.msra.mxu0 %v958
      %1124 = vmatpush.msra.mxu0 %v957
      %1125 = vmatpush.msra.mxu0 %v956
      %1126 = vmatpush.msra.mxu0 %v955
      %1127 = vmatpush.msra.mxu0 %v954
      %1128 = vmatpush.msra.mxu0 %v953
      %1129 = vmatpush.msra.mxu0 %v952
      %1130 = vmatpush.msra.mxu0 %v951
      %1131 = vmatpush.msra.mxu0 %v950
      %1132 = vmatpush.msra.mxu0 %v949
      %1133 = vmatpush.msra.mxu0 %v948
      %1134 = vmatmul.f32.gmra.mxu0 %v896
      %v1135 = vpop.f32.mrf.mxu0
      %v1136 = vadd.f32 %v1116, %v1135
      %1137 = vdwg.mxu0
      %1138 = vmatpush.msra.mxu0 0.0
      %1139 = vmatpush.msra.mxu0 0.0
      %1140 = vmatpush.msra.mxu0 0.0
      %1141 = vmatpush.msra.mxu0 0.0
      %1142 = vmatpush.msra.mxu0 0.0
      %1143 = vmatpush.msra.mxu0 0.0
      %1144 = vmatpush.msra.mxu0 0.0
      %1145 = vmatpush.msra.mxu0 0.0
      %1146 = vmatpush.msra.mxu0 0.0
      %1147 = vmatpush.msra.mxu0 0.0
      %1148 = vmatpush.msra.mxu0 0.0
      %1149 = vmatpush.msra.mxu0 0.0
      %1150 = vmatpush.msra.mxu0 0.0
      %1151 = vmatpush.msra.mxu0 0.0
      %1152 = vmatpush.msra.mxu0 %v965
      %1153 = vmatpush.msra.mxu0 %v964
      %1154 = vmatmul.f32.gmra.mxu0 %v1036
      %v1155 = vpop.f32.mrf.mxu0
      %v1156 = vadd.f32 %v1136, %v1155
      %1157 = vdwg.mxu0
      %1158 = vmatpush.msra.mxu0 %v981
      %1159 = vmatpush.msra.mxu0 %v980
      %1160 = vmatpush.msra.mxu0 %v979
      %1161 = vmatpush.msra.mxu0 %v978
      %1162 = vmatpush.msra.mxu0 %v977
      %1163 = vmatpush.msra.mxu0 %v976
      %1164 = vmatpush.msra.mxu0 %v975
      %1165 = vmatpush.msra.mxu0 %v974
      %1166 = vmatpush.msra.mxu0 %v973
      %1167 = vmatpush.msra.mxu0 %v972
      %1168 = vmatpush.msra.mxu0 %v971
      %1169 = vmatpush.msra.mxu0 %v970
      %1170 = vmatpush.msra.mxu0 %v969
      %1171 = vmatpush.msra.mxu0 %v968
      %1172 = vmatpush.msra.mxu0 %v967
      %1173 = vmatpush.msra.mxu0 %v966
      %1174 = vmatmul.f32.gmra.mxu0 %v895
      %v1175 = vpop.f32.mrf.mxu0
      %v1176 = vadd.f32 0.0, %v1175
      %1177 = vdwg.mxu0
      %1178 = vmatpush.msra.mxu0 %v997
      %1179 = vmatpush.msra.mxu0 %v996
      %1180 = vmatpush.msra.mxu0 %v995
      %1181 = vmatpush.msra.mxu0 %v994
      %1182 = vmatpush.msra.mxu0 %v993
      %1183 = vmatpush.msra.mxu0 %v992
      %1184 = vmatpush.msra.mxu0 %v991
      %1185 = vmatpush.msra.mxu0 %v990
      %1186 = vmatpush.msra.mxu0 %v989
      %1187 = vmatpush.msra.mxu0 %v988
      %1188 = vmatpush.msra.mxu0 %v987
      %1189 = vmatpush.msra.mxu0 %v986
      %1190 = vmatpush.msra.mxu0 %v985
      %1191 = vmatpush.msra.mxu0 %v984
      %1192 = vmatpush.msra.mxu0 %v983
      %1193 = vmatpush.msra.mxu0 %v982
      %1194 = vmatmul.f32.gmra.mxu0 %v896
      %v1195 = vpop.f32.mrf.mxu0
      %v1196 = vadd.f32 %v1176, %v1195
      %1197 = vdwg.mxu0
      %1198 = vmatpush.msra.mxu0 0.0
      %1199 = vmatpush.msra.mxu0 0.0
      %1200 = vmatpush.msra.mxu0 0.0
      %1201 = vmatpush.msra.mxu0 0.0
      %1202 = vmatpush.msra.mxu0 0.0
      %1203 = vmatpush.msra.mxu0 0.0
      %1204 = vmatpush.msra.mxu0 0.0
      %1205 = vmatpush.msra.mxu0 0.0
      %1206 = vmatpush.msra.mxu0 0.0
      %1207 = vmatpush.msra.mxu0 0.0
      %1208 = vmatpush.msra.mxu0 0.0
      %1209 = vmatpush.msra.mxu0 0.0
      %1210 = vmatpush.msra.mxu0 0.0
      %1211 = vmatpush.msra.mxu0 0.0
      %1212 = vmatpush.msra.mxu0 %v999
      %1213 = vmatpush.msra.mxu0 %v998
      %1214 = vmatmul.f32.gmra.mxu0 %v1036
      %v1215 = vpop.f32.mrf.mxu0
      %v1216 = vadd.f32 %v1196, %v1215
      %1217 = vdwg.mxu0
      %1218 = vmatpush.msra.mxu0 %v1015
      %1219 = vmatpush.msra.mxu0 %v1014
      %1220 = vmatpush.msra.mxu0 %v1013
      %1221 = vmatpush.msra.mxu0 %v1012
      %1222 = vmatpush.msra.mxu0 %v1011
      %1223 = vmatpush.msra.mxu0 %v1010
      %1224 = vmatpush.msra.mxu0 %v1009
      %1225 = vmatpush.msra.mxu0 %v1008
      %1226 = vmatpush.msra.mxu0 %v1007
      %1227 = vmatpush.msra.mxu0 %v1006
      %1228 = vmatpush.msra.mxu0 %v1005
      %1229 = vmatpush.msra.mxu0 %v1004
      %1230 = vmatpush.msra.mxu0 %v1003
      %1231 = vmatpush.msra.mxu0 %v1002
      %1232 = vmatpush.msra.mxu0 %v1001
      %1233 = vmatpush.msra.mxu0 %v1000
      %1234 = vmatmul.f32.gmra.mxu0 %v895
      %v1235 = vpop.f32.mrf.mxu0
      %v1236 = vadd.f32 0.0, %v1235
      %1237 = vdwg.mxu0
      %1238 = vmatpush.msra.mxu0 %v1031
      %1239 = vmatpush.msra.mxu0 %v1030
      %1240 = vmatpush.msra.mxu0 %v1029
      %1241 = vmatpush.msra.mxu0 %v1028
      %1242 = vmatpush.msra.mxu0 %v1027
      %1243 = vmatpush.msra.mxu0 %v1026
      %1244 = vmatpush.msra.mxu0 %v1025
      %1245 = vmatpush.msra.mxu0 %v1024
      %1246 = vmatpush.msra.mxu0 %v1023
      %1247 = vmatpush.msra.mxu0 %v1022
      %1248 = vmatpush.msra.mxu0 %v1021
      %1249 = vmatpush.msra.mxu0 %v1020
      %1250 = vmatpush.msra.mxu0 %v1019
      %1251 = vmatpush.msra.mxu0 %v1018
      %1252 = vmatpush.msra.mxu0 %v1017
      %1253 = vmatpush.msra.mxu0 %v1016
      %1254 = vmatmul.f32.gmra.mxu0 %v896
      %v1255 = vpop.f32.mrf.mxu0
      %v1256 = vadd.f32 %v1236, %v1255
      %1257 = vdwg.mxu0
      %1258 = vmatpush.msra.mxu0 0.0
      %1259 = vmatpush.msra.mxu0 0.0
      %1260 = vmatpush.msra.mxu0 0.0
      %1261 = vmatpush.msra.mxu0 0.0
      %1262 = vmatpush.msra.mxu0 0.0
      %1263 = vmatpush.msra.mxu0 0.0
      %1264 = vmatpush.msra.mxu0 0.0
      %1265 = vmatpush.msra.mxu0 0.0
      %1266 = vmatpush.msra.mxu0 0.0
      %1267 = vmatpush.msra.mxu0 0.0
      %1268 = vmatpush.msra.mxu0 0.0
      %1269 = vmatpush.msra.mxu0 0.0
      %1270 = vmatpush.msra.mxu0 0.0
      %1271 = vmatpush.msra.mxu0 0.0
      %1272 = vmatpush.msra.mxu0 %v1033
      %1273 = vmatpush.msra.mxu0 %v1032
      %1274 = vmatmul.f32.gmra.mxu0 %v1036
      %v1275 = vpop.f32.mrf.mxu0
      %v1276 = vadd.f32 %v1256, %v1275
      %1277 = vdwg.mxu0
      %v1278 = vld [vmem:[%s4] sm:$0xff]
      %v1279 = vld [vmem:[%s4 + $0x8] sm:$0xff]
      %1282 = vrot.lane.b32.xlu0 %v1278, 96
      %v1283 = vpop.permute.xlu0 %1282
      %1284 = vrot.lane.b32.xlu0 %v1279, 96
      %v1285 = vpop.permute.xlu0 %1284
      %1290 = vrot.lane.b32.xlu0 %v1096, 127
      %v1291 = vpop.permute.xlu0 %1290
      %1292 = vrot.lane.b32.xlu0 %v1156, 127
      %v1293 = vpop.permute.xlu0 %1292
      %1294 = vrot.lane.b32.xlu0 %v1216, 127
      %v1295 = vpop.permute.xlu0 %1294
      %1296 = vrot.lane.b32.xlu0 %v1276, 127
      %v1297 = vpop.permute.xlu0 %1296
      %vm1302 = vcmask 261120
      %v1303 = vsel %vm1302, %v1283, 0
      %v1305 = vsel %vm1302, %v1285, 0
      %1307 = vmatpush.msra.mxu0 0.0
      %1308 = vmatpush.msra.mxu0 0.0
      %1309 = vmatpush.msra.mxu0 0.0
      %1310 = vmatpush.msra.mxu0 0.0
      %1311 = vmatpush.msra.mxu0 0.0
      %1312 = vmatpush.msra.mxu0 0.0
      %1313 = vmatpush.msra.mxu0 0.0
      %1314 = vmatpush.msra.mxu0 0.0
      %1315 = vmatpush.msra.mxu0 0.0
      %1316 = vmatpush.msra.mxu0 0.0
      %1317 = vmatpush.msra.mxu0 0.0
      %1318 = vmatpush.msra.mxu0 0.0
      %1319 = vmatpush.msra.mxu0 %v1297
      %1320 = vmatpush.msra.mxu0 %v1295
      %1321 = vmatpush.msra.mxu0 %v1293
      %1322 = vmatpush.msra.mxu0 %v1291
      %1323 = vmatmul.f32.gmra.mxu0 %v1303
      %v1324 = vpop.f32.mrf.mxu0
      %v1325 = vadd.f32 0.0, %v1324
      %1326 = vmatmul.f32.gmra.mxu0 %v1305
      %v1327 = vpop.f32.mrf.mxu0
      %v1328 = vadd.f32 0.0, %v1327
      %1329 = vdwg.mxu0
      %v1330 = vsel %vm1302, %v1278, 0
      %v1332 = vsel %vm1302, %v1279, 0
      %1334 = vmatpush.msra.mxu0 0.0
      %1335 = vmatpush.msra.mxu0 0.0
      %1336 = vmatpush.msra.mxu0 0.0
      %1337 = vmatpush.msra.mxu0 0.0
      %1338 = vmatpush.msra.mxu0 0.0
      %1339 = vmatpush.msra.mxu0 0.0
      %1340 = vmatpush.msra.mxu0 0.0
      %1341 = vmatpush.msra.mxu0 0.0
      %1342 = vmatpush.msra.mxu0 0.0
      %1343 = vmatpush.msra.mxu0 0.0
      %1344 = vmatpush.msra.mxu0 0.0
      %1345 = vmatpush.msra.mxu0 0.0
      %1346 = vmatpush.msra.mxu0 %v1276
      %1347 = vmatpush.msra.mxu0 %v1216
      %1348 = vmatpush.msra.mxu0 %v1156
      %1349 = vmatpush.msra.mxu0 %v1096
      %1350 = vmatmul.f32.gmra.mxu0 %v1330
      %v1351 = vpop.f32.mrf.mxu0
      %v1352 = vadd.f32 %v1325, %v1351
      %1353 = vmatmul.f32.gmra.mxu0 %v1332
      %v1354 = vpop.f32.mrf.mxu0
      %v1355 = vadd.f32 %v1328, %v1354
      %1356 = vdwg.mxu0
      %1357 = vrot.lane.b32.xlu0 %v1278, 64
      %v1358 = vpop.permute.xlu0 %1357
      %1359 = vrot.lane.b32.xlu0 %v1279, 64
      %v1360 = vpop.permute.xlu0 %1359
      %1361 = vrot.lane.b32.xlu0 %v1096, 119
      %v1362 = vpop.permute.xlu0 %1361
      %1363 = vrot.lane.b32.xlu0 %v1156, 119
      %v1364 = vpop.permute.xlu0 %1363
      %1365 = vrot.lane.b32.xlu0 %v1216, 119
      %v1366 = vpop.permute.xlu0 %1365
      %1367 = vrot.lane.b32.xlu0 %v1276, 119
      %v1368 = vpop.permute.xlu0 %1367
      %v1373 = vsel %vm1302, %v1358, 0
      %v1375 = vsel %vm1302, %v1360, 0
      %1377 = vmatpush.msra.mxu0 0.0
      %1378 = vmatpush.msra.mxu0 0.0
      %1379 = vmatpush.msra.mxu0 0.0
      %1380 = vmatpush.msra.mxu0 0.0
      %1381 = vmatpush.msra.mxu0 0.0
      %1382 = vmatpush.msra.mxu0 0.0
      %1383 = vmatpush.msra.mxu0 0.0
      %1384 = vmatpush.msra.mxu0 0.0
      %1385 = vmatpush.msra.mxu0 0.0
      %1386 = vmatpush.msra.mxu0 0.0
      %1387 = vmatpush.msra.mxu0 0.0
      %1388 = vmatpush.msra.mxu0 0.0
      %1389 = vmatpush.msra.mxu0 %v1368
      %1390 = vmatpush.msra.mxu0 %v1366
      %1391 = vmatpush.msra.mxu0 %v1364
      %1392 = vmatpush.msra.mxu0 %v1362
      %1393 = vmatmul.f32.gmra.mxu0 %v1373
      %v1394 = vpop.f32.mrf.mxu0
      %v1395 = vadd.f32 0.0, %v1394
      %1396 = vmatmul.f32.gmra.mxu0 %v1375
      %v1397 = vpop.f32.mrf.mxu0
      %v1398 = vadd.f32 0.0, %v1397
      %1399 = vdwg.mxu0
      %v1400 = vadd.f32 %v1352, %v1395
      %v1401 = vadd.f32 %v1355, %v1398
      %1402 = vrot.lane.b32.xlu0 %v1278, 32
      %v1403 = vpop.permute.xlu0 %1402
      %1404 = vrot.lane.b32.xlu0 %v1279, 32
      %v1405 = vpop.permute.xlu0 %1404
      %1406 = vrot.lane.b32.xlu0 %v1096, 118
      %v1407 = vpop.permute.xlu0 %1406
      %1408 = vrot.lane.b32.xlu0 %v1156, 118
      %v1409 = vpop.permute.xlu0 %1408
      %1410 = vrot.lane.b32.xlu0 %v1216, 118
      %v1411 = vpop.permute.xlu0 %1410
      %1412 = vrot.lane.b32.xlu0 %v1276, 118
      %v1413 = vpop.permute.xlu0 %1412
      %v1418 = vsel %vm1302, %v1403, 0
      %v1420 = vsel %vm1302, %v1405, 0
      %1422 = vmatpush.msra.mxu0 0.0
      %1423 = vmatpush.msra.mxu0 0.0
      %1424 = vmatpush.msra.mxu0 0.0
      %1425 = vmatpush.msra.mxu0 0.0
      %1426 = vmatpush.msra.mxu0 0.0
      %1427 = vmatpush.msra.mxu0 0.0
      %1428 = vmatpush.msra.mxu0 0.0
      %1429 = vmatpush.msra.mxu0 0.0
      %1430 = vmatpush.msra.mxu0 0.0
      %1431 = vmatpush.msra.mxu0 0.0
      %1432 = vmatpush.msra.mxu0 0.0
      %1433 = vmatpush.msra.mxu0 0.0
      %1434 = vmatpush.msra.mxu0 %v1413
      %1435 = vmatpush.msra.mxu0 %v1411
      %1436 = vmatpush.msra.mxu0 %v1409
      %1437 = vmatpush.msra.mxu0 %v1407
      %1438 = vmatmul.f32.gmra.mxu0 %v1418
      %v1439 = vpop.f32.mrf.mxu0
      %v1440 = vadd.f32 0.0, %v1439
      %1441 = vmatmul.f32.gmra.mxu0 %v1420
      %v1442 = vpop.f32.mrf.mxu0
      %v1443 = vadd.f32 0.0, %v1442
      %1444 = vdwg.mxu0
      %v1445 = vadd.f32 %v1400, %v1440
      %v1446 = vadd.f32 %v1401, %v1443
      %v1447 = vld [vmem:[%s5] sm:$0xff]
      %v1448 = vld [vmem:[%s5 + $0x8] sm:$0xff]
      %1450 = vset.pattern.permute.xlu0 0
      %1451 = vperm.xlu0 %1450, %v1447
      %v1452 = vpop.permute.xlu0 %1451
      %1455 = vset.pattern.permute.xlu0 0
      %1456 = vperm.xlu0 %1455, %v1448
      %v1457 = vpop.permute.xlu0 %1456
      %v1459 = vadd.f32 %v1445, %v1452
      %v1460 = vadd.f32 %v1446, %v1457
      %vm1461 = vcmp.gt.f32.partialorder %v1459, 0.0
      %vm1462 = vcmp.gt.f32.partialorder %v1460, 0.0
      %v1463 = vmul.f32 %v1459, 0.2
      %v1464 = vmul.f32 %v1460, 0.2
      %v1465 = vsel %vm1461, %v1459, %v1463
      %v1466 = vsel %vm1462, %v1460, %v1464
      %v1467 = vld [vmem:[%s6] sm:$0xff]
      %v1468 = vld [vmem:[%s6 + $0x8] sm:$0xff]
      %v1469 = vld [vmem:[%s6 + $0x10] sm:$0xff]
      %v1470 = vld [vmem:[%s6 + $0x18] sm:$0xff]
      %v1471 = vld [vmem:[%s6 + $0x20] sm:$0xff]
      %v1472 = vld [vmem:[%s6 + $0x28] sm:$0xff]
      %v1473 = vld [vmem:[%s6 + $0x30] sm:$0xff]
      %v1474 = vld [vmem:[%s6 + $0x38] sm:$0xff]
      %v1475 = vld [vmem:[%s6 + $0x40] sm:$0xff]
      %v1476 = vld [vmem:[%s6 + $0x48] sm:$0xff]
      %v1477 = vld [vmem:[%s6 + $0x50] sm:$0xff]
      %v1478 = vld [vmem:[%s6 + $0x58] sm:$0xff]
      %v1479 = vld [vmem:[%s6 + $0x60] sm:$0xff]
      %v1480 = vld [vmem:[%s6 + $0x68] sm:$0xff]
      %v1481 = vld [vmem:[%s6 + $0x70] sm:$0xff]
      %v1482 = vld [vmem:[%s6 + $0x78] sm:$0xff]
      %v1483 = vld [vmem:[%s6 + $0x80] sm:$0xff]
      %v1484 = vld [vmem:[%s6 + $0x88] sm:$0xff]
      %v1485 = vld [vmem:[%s6 + $0x90] sm:$0xff]
      %v1486 = vld [vmem:[%s6 + $0x98] sm:$0xff]
      %v1487 = vld [vmem:[%s6 + $0xa0] sm:$0xff]
      %v1488 = vld [vmem:[%s6 + $0xa8] sm:$0xff]
      %v1489 = vld [vmem:[%s6 + $0xb0] sm:$0xff]
      %v1490 = vld [vmem:[%s6 + $0xb8] sm:$0xff]
      %v1491 = vld [vmem:[%s6 + $0xc0] sm:$0xff]
      %v1492 = vld [vmem:[%s6 + $0xc8] sm:$0xff]
      %v1493 = vld [vmem:[%s6 + $0xd0] sm:$0xff]
      %v1494 = vld [vmem:[%s6 + $0xd8] sm:$0xff]
      %v1495 = vld [vmem:[%s6 + $0xe0] sm:$0xff]
      %v1496 = vld [vmem:[%s6 + $0xe8] sm:$0xff]
      %v1497 = vld [vmem:[%s6 + $0xf0] sm:$0xff]
      %v1498 = vld [vmem:[%s6 + $0xf8] sm:$0xff]
      %v1499 = vld [vmem:[%s6 + $0x100] sm:$0xff]
      %v1500 = vld [vmem:[%s6 + $0x108] sm:$0xff]
      %v1501 = vld [vmem:[%s6 + $0x110] sm:$0xff]
      %v1502 = vld [vmem:[%s6 + $0x118] sm:$0xff]
      %vm1503 = vcmask 588800
      %v1505 = vsel %vm1503, %v1465, 0
      %v1508 = vsel %vm1503, %v1466, 0
      %1510 = vmatpush.msra.mxu0 0.0
      %1511 = vmatpush.msra.mxu0 0.0
      %1512 = vmatpush.msra.mxu0 0.0
      %1513 = vmatpush.msra.mxu0 0.0
      %1514 = vmatpush.msra.mxu0 0.0
      %1515 = vmatpush.msra.mxu0 0.0
      %1516 = vmatpush.msra.mxu0 0.0
      %1517 = vmatpush.msra.mxu0 %v1475
      %1518 = vmatpush.msra.mxu0 %v1474
      %1519 = vmatpush.msra.mxu0 %v1473
      %1520 = vmatpush.msra.mxu0 %v1472
      %1521 = vmatpush.msra.mxu0 %v1471
      %1522 = vmatpush.msra.mxu0 %v1470
      %1523 = vmatpush.msra.mxu0 %v1469
      %1524 = vmatpush.msra.mxu0 %v1468
      %1525 = vmatpush.msra.mxu0 %v1467
      %1526 = vmatmul.f32.gmra.mxu0 %v1505
      %v1527 = vpop.f32.mrf.mxu0
      %v1528 = vadd.f32 0.0, %v1527
      %1529 = vmatmul.f32.gmra.mxu0 %v1508
      %v1530 = vpop.f32.mrf.mxu0
      %v1531 = vadd.f32 0.0, %v1530
      %1532 = vdwg.mxu0
      %1533 = vmatpush.msra.mxu0 0.0
      %1534 = vmatpush.msra.mxu0 0.0
      %1535 = vmatpush.msra.mxu0 0.0
      %1536 = vmatpush.msra.mxu0 0.0
      %1537 = vmatpush.msra.mxu0 0.0
      %1538 = vmatpush.msra.mxu0 0.0
      %1539 = vmatpush.msra.mxu0 0.0
      %1540 = vmatpush.msra.mxu0 %v1484
      %1541 = vmatpush.msra.mxu0 %v1483
      %1542 = vmatpush.msra.mxu0 %v1482
      %1543 = vmatpush.msra.mxu0 %v1481
      %1544 = vmatpush.msra.mxu0 %v1480
      %1545 = vmatpush.msra.mxu0 %v1479
      %1546 = vmatpush.msra.mxu0 %v1478
      %1547 = vmatpush.msra.mxu0 %v1477
      %1548 = vmatpush.msra.mxu0 %v1476
      %1549 = vmatmul.f32.gmra.mxu0 %v1505
      %v1550 = vpop.f32.mrf.mxu0
      %v1551 = vadd.f32 0.0, %v1550
      %1552 = vmatmul.f32.gmra.mxu0 %v1508
      %v1553 = vpop.f32.mrf.mxu0
      %v1554 = vadd.f32 0.0, %v1553
      %1555 = vdwg.mxu0
      %1556 = vmatpush.msra.mxu0 0.0
      %1557 = vmatpush.msra.mxu0 0.0
      %1558 = vmatpush.msra.mxu0 0.0
      %1559 = vmatpush.msra.mxu0 0.0
      %1560 = vmatpush.msra.mxu0 0.0
      %1561 = vmatpush.msra.mxu0 0.0
      %1562 = vmatpush.msra.mxu0 0.0
      %1563 = vmatpush.msra.mxu0 %v1493
      %1564 = vmatpush.msra.mxu0 %v1492
      %1565 = vmatpush.msra.mxu0 %v1491
      %1566 = vmatpush.msra.mxu0 %v1490
      %1567 = vmatpush.msra.mxu0 %v1489
      %1568 = vmatpush.msra.mxu0 %v1488
      %1569 = vmatpush.msra.mxu0 %v1487
      %1570 = vmatpush.msra.mxu0 %v1486
      %1571 = vmatpush.msra.mxu0 %v1485
      %1572 = vmatmul.f32.gmra.mxu0 %v1505
      %v1573 = vpop.f32.mrf.mxu0
      %v1574 = vadd.f32 0.0, %v1573
      %1575 = vmatmul.f32.gmra.mxu0 %v1508
      %v1576 = vpop.f32.mrf.mxu0
      %v1577 = vadd.f32 0.0, %v1576
      %1578 = vdwg.mxu0
      %1579 = vmatpush.msra.mxu0 0.0
      %1580 = vmatpush.msra.mxu0 0.0
      %1581 = vmatpush.msra.mxu0 0.0
      %1582 = vmatpush.msra.mxu0 0.0
      %1583 = vmatpush.msra.mxu0 0.0
      %1584 = vmatpush.msra.mxu0 0.0
      %1585 = vmatpush.msra.mxu0 0.0
      %1586 = vmatpush.msra.mxu0 %v1502
      %1587 = vmatpush.msra.mxu0 %v1501
      %1588 = vmatpush.msra.mxu0 %v1500
      %1589 = vmatpush.msra.mxu0 %v1499
      %1590 = vmatpush.msra.mxu0 %v1498
      %1591 = vmatpush.msra.mxu0 %v1497
      %1592 = vmatpush.msra.mxu0 %v1496
      %1593 = vmatpush.msra.mxu0 %v1495
      %1594 = vmatpush.msra.mxu0 %v1494
      %1595 = vmatmul.f32.gmra.mxu0 %v1505
      %v1596 = vpop.f32.mrf.mxu0
      %v1597 = vadd.f32 0.0, %v1596
      %1598 = vmatmul.f32.gmra.mxu0 %v1508
      %v1599 = vpop.f32.mrf.mxu0
      %v1600 = vadd.f32 0.0, %v1599
      %1601 = vdwg.mxu0
      %v1602 = vld [vmem:[%s7] sm:$0xff]
      %v1603 = vld [vmem:[%s7 + $0x8] sm:$0xff]
      %v1604 = vld [vmem:[%s7 + $0x10] sm:$0xff]
      %v1605 = vld [vmem:[%s7 + $0x18] sm:$0xff]
      %v1606 = vld [vmem:[%s7 + $0x20] sm:$0xff]
      %v1607 = vld [vmem:[%s7 + $0x28] sm:$0xff]
      %v1608 = vld [vmem:[%s7 + $0x30] sm:$0xff]
      %v1609 = vld [vmem:[%s7 + $0x38] sm:$0xff]
      %1614 = vrot.lane.b32.xlu0 %v1602, 64
      %v1615 = vpop.permute.xlu0 %1614
      %1616 = vrot.lane.b32.xlu0 %v1604, 64
      %v1617 = vpop.permute.xlu0 %1616
      %1618 = vrot.lane.b32.xlu0 %v1606, 64
      %v1619 = vpop.permute.xlu0 %1618
      %1620 = vrot.lane.b32.xlu0 %v1608, 64
      %v1621 = vpop.permute.xlu0 %1620
      %1630 = vrot.lane.b32.xlu0 %v1528, 127
      %v1631 = vpop.permute.xlu0 %1630
      %1632 = vrot.lane.b32.xlu0 %v1531, 127
      %v1633 = vpop.permute.xlu0 %1632
      %1634 = vrot.lane.b32.xlu0 %v1551, 127
      %v1635 = vpop.permute.xlu0 %1634
      %1636 = vrot.lane.b32.xlu0 %v1554, 127
      %v1637 = vpop.permute.xlu0 %1636
      %1638 = vrot.lane.b32.xlu0 %v1574, 127
      %v1639 = vpop.permute.xlu0 %1638
      %1640 = vrot.lane.b32.xlu0 %v1577, 127
      %v1641 = vpop.permute.xlu0 %1640
      %1642 = vrot.lane.b32.xlu0 %v1597, 127
      %v1643 = vpop.permute.xlu0 %1642
      %1644 = vrot.lane.b32.xlu0 %v1600, 127
      %v1645 = vpop.permute.xlu0 %1644
      %vm1654 = vcmask 523264
      %v1655 = vsel %vm1654, %v1615, 0
      %v1657 = vsel %vm1654, %v1617, 0
      %v1659 = vsel %vm1654, %v1619, 0
      %v1661 = vsel %vm1654, %v1621, 0
      %1663 = vmatpush.msra.mxu0 0.0
      %1664 = vmatpush.msra.mxu0 0.0
      %1665 = vmatpush.msra.mxu0 0.0
      %1666 = vmatpush.msra.mxu0 0.0
      %1667 = vmatpush.msra.mxu0 0.0
      %1668 = vmatpush.msra.mxu0 0.0
      %1669 = vmatpush.msra.mxu0 0.0
      %1670 = vmatpush.msra.mxu0 0.0
      %1671 = vmatpush.msra.mxu0 %v1645
      %1672 = vmatpush.msra.mxu0 %v1643
      %1673 = vmatpush.msra.mxu0 %v1641
      %1674 = vmatpush.msra.mxu0 %v1639
      %1675 = vmatpush.msra.mxu0 %v1637
      %1676 = vmatpush.msra.mxu0 %v1635
      %1677 = vmatpush.msra.mxu0 %v1633
      %1678 = vmatpush.msra.mxu0 %v1631
      %1679 = vmatmul.f32.gmra.mxu0 %v1655
      %v1680 = vpop.f32.mrf.mxu0
      %v1681 = vadd.f32 0.0, %v1680
      %1682 = vmatmul.f32.gmra.mxu0 %v1657
      %v1683 = vpop.f32.mrf.mxu0
      %v1684 = vadd.f32 0.0, %v1683
      %1685 = vmatmul.f32.gmra.mxu0 %v1659
      %v1686 = vpop.f32.mrf.mxu0
      %v1687 = vadd.f32 0.0, %v1686
      %1688 = vmatmul.f32.gmra.mxu0 %v1661
      %v1689 = vpop.f32.mrf.mxu0
      %v1690 = vadd.f32 0.0, %v1689
      %1691 = vdwg.mxu0
      %v1692 = vsel %vm1654, %v1602, 0
      %v1694 = vsel %vm1654, %v1604, 0
      %v1696 = vsel %vm1654, %v1606, 0
      %v1698 = vsel %vm1654, %v1608, 0
      %1700 = vmatpush.msra.mxu0 0.0
      %1701 = vmatpush.msra.mxu0 0.0
      %1702 = vmatpush.msra.mxu0 0.0
      %1703 = vmatpush.msra.mxu0 0.0
      %1704 = vmatpush.msra.mxu0 0.0
      %1705 = vmatpush.msra.mxu0 0.0
      %1706 = vmatpush.msra.mxu0 0.0
      %1707 = vmatpush.msra.mxu0 0.0
      %1708 = vmatpush.msra.mxu0 %v1600
      %1709 = vmatpush.msra.mxu0 %v1597
      %1710 = vmatpush.msra.mxu0 %v1577
      %1711 = vmatpush.msra.mxu0 %v1574
      %1712 = vmatpush.msra.mxu0 %v1554
      %1713 = vmatpush.msra.mxu0 %v1551
      %1714 = vmatpush.msra.mxu0 %v1531
      %1715 = vmatpush.msra.mxu0 %v1528
      %1716 = vmatmul.f32.gmra.mxu0 %v1692
      %v1717 = vpop.f32.mrf.mxu0
      %v1718 = vadd.f32 %v1681, %v1717
      %1719 = vmatmul.f32.gmra.mxu0 %v1694
      %v1720 = vpop.f32.mrf.mxu0
      %v1721 = vadd.f32 %v1684, %v1720
      %1722 = vmatmul.f32.gmra.mxu0 %v1696
      %v1723 = vpop.f32.mrf.mxu0
      %v1724 = vadd.f32 %v1687, %v1723
      %1725 = vmatmul.f32.gmra.mxu0 %v1698
      %v1726 = vpop.f32.mrf.mxu0
      %v1727 = vadd.f32 %v1690, %v1726
      %1728 = vdwg.mxu0
      %1729 = vrot.lane.b32.xlu0 %v1528, 123
      %v1730 = vpop.permute.xlu0 %1729
      %1731 = vrot.lane.b32.xlu0 %v1531, 123
      %v1732 = vpop.permute.xlu0 %1731
      %1733 = vrot.lane.b32.xlu0 %v1551, 123
      %v1734 = vpop.permute.xlu0 %1733
      %1735 = vrot.lane.b32.xlu0 %v1554, 123
      %v1736 = vpop.permute.xlu0 %1735
      %1737 = vrot.lane.b32.xlu0 %v1574, 123
      %v1738 = vpop.permute.xlu0 %1737
      %1739 = vrot.lane.b32.xlu0 %v1577, 123
      %v1740 = vpop.permute.xlu0 %1739
      %1741 = vrot.lane.b32.xlu0 %v1597, 123
      %v1742 = vpop.permute.xlu0 %1741
      %1743 = vrot.lane.b32.xlu0 %v1600, 123
      %v1744 = vpop.permute.xlu0 %1743
      %v1754 = vsel %vm1654, %v1603, 0
      %v1757 = vsel %vm1654, %v1605, 0
      %v1760 = vsel %vm1654, %v1607, 0
      %v1763 = vsel %vm1654, %v1609, 0
      %1765 = vmatpush.msra.mxu0 0.0
      %1766 = vmatpush.msra.mxu0 0.0
      %1767 = vmatpush.msra.mxu0 0.0
      %1768 = vmatpush.msra.mxu0 0.0
      %1769 = vmatpush.msra.mxu0 0.0
      %1770 = vmatpush.msra.mxu0 0.0
      %1771 = vmatpush.msra.mxu0 0.0
      %1772 = vmatpush.msra.mxu0 0.0
      %1773 = vmatpush.msra.mxu0 %v1744
      %1774 = vmatpush.msra.mxu0 %v1742
      %1775 = vmatpush.msra.mxu0 %v1740
      %1776 = vmatpush.msra.mxu0 %v1738
      %1777 = vmatpush.msra.mxu0 %v1736
      %1778 = vmatpush.msra.mxu0 %v1734
      %1779 = vmatpush.msra.mxu0 %v1732
      %1780 = vmatpush.msra.mxu0 %v1730
      %1781 = vmatmul.f32.gmra.mxu0 %v1754
      %v1782 = vpop.f32.mrf.mxu0
      %v1783 = vadd.f32 0.0, %v1782
      %1784 = vmatmul.f32.gmra.mxu0 %v1757
      %v1785 = vpop.f32.mrf.mxu0
      %v1786 = vadd.f32 0.0, %v1785
      %1787 = vmatmul.f32.gmra.mxu0 %v1760
      %v1788 = vpop.f32.mrf.mxu0
      %v1789 = vadd.f32 0.0, %v1788
      %1790 = vmatmul.f32.gmra.mxu0 %v1763
      %v1791 = vpop.f32.mrf.mxu0
      %v1792 = vadd.f32 0.0, %v1791
      %1793 = vdwg.mxu0
      %v1794 = vadd.f32 %v1718, %v1783
      %v1795 = vadd.f32 %v1721, %v1786
      %v1796 = vadd.f32 %v1724, %v1789
      %v1797 = vadd.f32 %v1727, %v1792
      %1798 = vrot.lane.b32.xlu0 %v1603, 64
      %v1799 = vpop.permute.xlu0 %1798
      %1800 = vrot.lane.b32.xlu0 %v1605, 64
      %v1801 = vpop.permute.xlu0 %1800
      %1802 = vrot.lane.b32.xlu0 %v1607, 64
      %v1803 = vpop.permute.xlu0 %1802
      %1804 = vrot.lane.b32.xlu0 %v1609, 64
      %v1805 = vpop.permute.xlu0 %1804
      %1806 = vrot.lane.b32.xlu0 %v1528, 122
      %v1807 = vpop.permute.xlu0 %1806
      %1808 = vrot.lane.b32.xlu0 %v1531, 122
      %v1809 = vpop.permute.xlu0 %1808
      %1810 = vrot.lane.b32.xlu0 %v1551, 122
      %v1811 = vpop.permute.xlu0 %1810
      %1812 = vrot.lane.b32.xlu0 %v1554, 122
      %v1813 = vpop.permute.xlu0 %1812
      %1814 = vrot.lane.b32.xlu0 %v1574, 122
      %v1815 = vpop.permute.xlu0 %1814
      %1816 = vrot.lane.b32.xlu0 %v1577, 122
      %v1817 = vpop.permute.xlu0 %1816
      %1818 = vrot.lane.b32.xlu0 %v1597, 122
      %v1819 = vpop.permute.xlu0 %1818
      %1820 = vrot.lane.b32.xlu0 %v1600, 122
      %v1821 = vpop.permute.xlu0 %1820
      %v1830 = vsel %vm1654, %v1799, 0
      %v1832 = vsel %vm1654, %v1801, 0
      %v1834 = vsel %vm1654, %v1803, 0
      %v1836 = vsel %vm1654, %v1805, 0
      %1838 = vmatpush.msra.mxu0 0.0
      %1839 = vmatpush.msra.mxu0 0.0
      %1840 = vmatpush.msra.mxu0 0.0
      %1841 = vmatpush.msra.mxu0 0.0
      %1842 = vmatpush.msra.mxu0 0.0
      %1843 = vmatpush.msra.mxu0 0.0
      %1844 = vmatpush.msra.mxu0 0.0
      %1845 = vmatpush.msra.mxu0 0.0
      %1846 = vmatpush.msra.mxu0 %v1821
      %1847 = vmatpush.msra.mxu0 %v1819
      %1848 = vmatpush.msra.mxu0 %v1817
      %1849 = vmatpush.msra.mxu0 %v1815
      %1850 = vmatpush.msra.mxu0 %v1813
      %1851 = vmatpush.msra.mxu0 %v1811
      %1852 = vmatpush.msra.mxu0 %v1809
      %1853 = vmatpush.msra.mxu0 %v1807
      %1854 = vmatmul.f32.gmra.mxu0 %v1830
      %v1855 = vpop.f32.mrf.mxu0
      %v1856 = vadd.f32 0.0, %v1855
      %1857 = vmatmul.f32.gmra.mxu0 %v1832
      %v1858 = vpop.f32.mrf.mxu0
      %v1859 = vadd.f32 0.0, %v1858
      %1860 = vmatmul.f32.gmra.mxu0 %v1834
      %v1861 = vpop.f32.mrf.mxu0
      %v1862 = vadd.f32 0.0, %v1861
      %1863 = vmatmul.f32.gmra.mxu0 %v1836
      %v1864 = vpop.f32.mrf.mxu0
      %v1865 = vadd.f32 0.0, %v1864
      %1866 = vdwg.mxu0
      %v1867 = vadd.f32 %v1794, %v1856
      %v1868 = vadd.f32 %v1795, %v1859
      %v1869 = vadd.f32 %v1796, %v1862
      %v1870 = vadd.f32 %v1797, %v1865
      %v1871 = vld [vmem:[%s8] sm:$0xff]
      %v1872 = vld [vmem:[%s8 + $0x8] sm:$0xff]
      %v1873 = vld [vmem:[%s8 + $0x10] sm:$0xff]
      %v1874 = vld [vmem:[%s8 + $0x18] sm:$0xff]
      %1876 = vset.pattern.permute.xlu0 0
      %1877 = vperm.xlu0 %1876, %v1871
      %v1878 = vpop.permute.xlu0 %1877
      %1881 = vset.pattern.permute.xlu0 0
      %1882 = vperm.xlu0 %1881, %v1872
      %v1883 = vpop.permute.xlu0 %1882
      %1886 = vset.pattern.permute.xlu0 0
      %1887 = vperm.xlu0 %1886, %v1873
      %v1888 = vpop.permute.xlu0 %1887
      %1891 = vset.pattern.permute.xlu0 0
      %1892 = vperm.xlu0 %1891, %v1874
      %v1893 = vpop.permute.xlu0 %1892
      %v1895 = vadd.f32 %v1867, %v1878
      %v1896 = vadd.f32 %v1868, %v1883
      %v1897 = vadd.f32 %v1869, %v1888
      %v1898 = vadd.f32 %v1870, %v1893
      %vm1899 = vcmp.gt.f32.partialorder %v1895, 0.0
      %vm1900 = vcmp.gt.f32.partialorder %v1896, 0.0
      %vm1901 = vcmp.gt.f32.partialorder %v1897, 0.0
      %vm1902 = vcmp.gt.f32.partialorder %v1898, 0.0
      %v1903 = vmul.f32 %v1895, 0.2
      %v1904 = vmul.f32 %v1896, 0.2
      %v1905 = vmul.f32 %v1897, 0.2
      %v1906 = vmul.f32 %v1898, 0.2
      %v1907 = vsel %vm1899, %v1895, %v1903
      %v1908 = vsel %vm1900, %v1896, %v1904
      %v1909 = vsel %vm1901, %v1897, %v1905
      %v1910 = vsel %vm1902, %v1898, %v1906
      %v1911 = vld [vmem:[%s9] sm:$0xff]
      %v1912 = vld [vmem:[%s9 + $0x8] sm:$0xff]
      %v1913 = vld [vmem:[%s9 + $0x10] sm:$0xf]
      %vm1914 = vcmask 162816
      %v1916 = vsel %vm1914, %v1907, 0
      %v1919 = vsel %vm1914, %v1908, 0
      %v1922 = vsel %vm1914, %v1909, 0
      %v1925 = vsel %vm1914, %v1910, 0
      %v1928 = vsel %vm559, %v1913, 0
      %1930 = vmatpush.msra.mxu0 0.0
      %1931 = vmatpush.msra.mxu0 0.0
      %1932 = vmatpush.msra.mxu0 0.0
      %1933 = vmatpush.msra.mxu0 0.0
      %1934 = vmatpush.msra.mxu0 0.0
      %1935 = vmatpush.msra.mxu0 0.0
      %1936 = vmatpush.msra.mxu0 0.0
      %1937 = vmatpush.msra.mxu0 0.0
      %1938 = vmatpush.msra.mxu0 0.0
      %1939 = vmatpush.msra.mxu0 0.0
      %1940 = vmatpush.msra.mxu0 0.0
      %1941 = vmatpush.msra.mxu0 0.0
      %1942 = vmatpush.msra.mxu0 0.0
      %1943 = vmatpush.msra.mxu0 %v1928
      %1944 = vmatpush.msra.mxu0 %v1912
      %1945 = vmatpush.msra.mxu0 %v1911
      %1946 = vmatmul.f32.gmra.mxu0 %v1916
      %v1947 = vpop.f32.mrf.mxu0
      %v1948 = vadd.f32 0.0, %v1947
      %1949 = vmatmul.f32.gmra.mxu0 %v1919
      %v1950 = vpop.f32.mrf.mxu0
      %v1951 = vadd.f32 0.0, %v1950
      %1952 = vmatmul.f32.gmra.mxu0 %v1922
      %v1953 = vpop.f32.mrf.mxu0
      %v1954 = vadd.f32 0.0, %v1953
      %1955 = vmatmul.f32.gmra.mxu0 %v1925
      %v1956 = vpop.f32.mrf.mxu0
      %v1957 = vadd.f32 0.0, %v1956
      %1958 = vdwg.mxu0
      %v1959 = vld [vmem:[%s10] sm:$0xff]
      %v1960 = vld [vmem:[%s10 + $0x8] sm:$0xff]
      %v1961 = vld [vmem:[%s10 + $0x10] sm:$0xff]
      %v1962 = vld [vmem:[%s10 + $0x18] sm:$0xff]
      %v1963 = vld [vmem:[%s10 + $0x20] sm:$0xff]
      %v1964 = vld [vmem:[%s10 + $0x28] sm:$0xff]
      %v1965 = vld [vmem:[%s10 + $0x30] sm:$0xff]
      %v1966 = vld [vmem:[%s10 + $0x38] sm:$0xff]
      %v1967 = vld [vmem:[%s10 + $0x40] sm:$0xff]
      %v1968 = vld [vmem:[%s10 + $0x48] sm:$0xff]
      %v1969 = vld [vmem:[%s10 + $0x50] sm:$0xff]
      %v1970 = vld [vmem:[%s10 + $0x58] sm:$0xff]
      %v1971 = vld [vmem:[%s10 + $0x60] sm:$0xff]
      %v1972 = vld [vmem:[%s10 + $0x68] sm:$0xff]
      %v1973 = vld [vmem:[%s10 + $0x70] sm:$0xff]
      %v1974 = vld [vmem:[%s10 + $0x78] sm:$0xff]
      %v1975 = vld [vmem:[%s10 + $0x80] sm:$0xff]
      %v1976 = vld [vmem:[%s10 + $0x88] sm:$0xff]
      %v1977 = vld [vmem:[%s10 + $0x90] sm:$0xff]
      %v1978 = vld [vmem:[%s10 + $0x98] sm:$0xff]
      %v1979 = vld [vmem:[%s10 + $0xa0] sm:$0xff]
      %v1980 = vld [vmem:[%s10 + $0xa8] sm:$0xff]
      %v1981 = vld [vmem:[%s10 + $0xb0] sm:$0xff]
      %v1982 = vld [vmem:[%s10 + $0xb8] sm:$0xff]
      %v1983 = vld [vmem:[%s10 + $0xc0] sm:$0xff]
      %v1984 = vld [vmem:[%s10 + $0xc8] sm:$0xff]
      %v1985 = vld [vmem:[%s10 + $0xd0] sm:$0xff]
      %v1986 = vld [vmem:[%s10 + $0xd8] sm:$0xff]
      %v1987 = vld [vmem:[%s10 + $0xe0] sm:$0xff]
      %v1988 = vld [vmem:[%s10 + $0xe8] sm:$0xff]
      %v1989 = vld [vmem:[%s10 + $0xf0] sm:$0xff]
      %v1990 = vld [vmem:[%s10 + $0xf8] sm:$0xff]
      %1999 = vrot.lane.b32.xlu0 %v1959, 96
      %v2000 = vpop.permute.xlu0 %1999
      %2001 = vrot.lane.b32.xlu0 %v1963, 96
      %v2002 = vpop.permute.xlu0 %2001
      %2003 = vrot.lane.b32.xlu0 %v1967, 96
      %v2004 = vpop.permute.xlu0 %2003
      %2005 = vrot.lane.b32.xlu0 %v1971, 96
      %v2006 = vpop.permute.xlu0 %2005
      %2007 = vrot.lane.b32.xlu0 %v1975, 96
      %v2008 = vpop.permute.xlu0 %2007
      %2009 = vrot.lane.b32.xlu0 %v1979, 96
      %v2010 = vpop.permute.xlu0 %2009
      %2011 = vrot.lane.b32.xlu0 %v1983, 96
      %v2012 = vpop.permute.xlu0 %2011
      %2013 = vrot.lane.b32.xlu0 %v1987, 96
      %v2014 = vpop.permute.xlu0 %2013
      %2019 = vrot.lane.b32.xlu0 %v1948, 127
      %v2020 = vpop.permute.xlu0 %2019
      %2021 = vrot.lane.b32.xlu0 %v1951, 127
      %v2022 = vpop.permute.xlu0 %2021
      %2023 = vrot.lane.b32.xlu0 %v1954, 127
      %v2024 = vpop.permute.xlu0 %2023
      %2025 = vrot.lane.b32.xlu0 %v1957, 127
      %v2026 = vpop.permute.xlu0 %2025
      %v2031 = vsel %vm1302, %v2000, 0
      %v2033 = vsel %vm1302, %v2002, 0
      %v2035 = vsel %vm1302, %v2004, 0
      %v2037 = vsel %vm1302, %v2006, 0
      %v2039 = vsel %vm1302, %v2008, 0
      %v2041 = vsel %vm1302, %v2010, 0
      %v2043 = vsel %vm1302, %v2012, 0
      %v2045 = vsel %vm1302, %v2014, 0
      %2047 = vmatpush.msra.mxu0 0.0
      %2048 = vmatpush.msra.mxu0 0.0
      %2049 = vmatpush.msra.mxu0 0.0
      %2050 = vmatpush.msra.mxu0 0.0
      %2051 = vmatpush.msra.mxu0 0.0
      %2052 = vmatpush.msra.mxu0 0.0
      %2053 = vmatpush.msra.mxu0 0.0
      %2054 = vmatpush.msra.mxu0 0.0
      %2055 = vmatpush.msra.mxu0 0.0
      %2056 = vmatpush.msra.mxu0 0.0
      %2057 = vmatpush.msra.mxu0 0.0
      %2058 = vmatpush.msra.mxu0 0.0
      %2059 = vmatpush.msra.mxu0 %v2026
      %2060 = vmatpush.msra.mxu0 %v2024
      %2061 = vmatpush.msra.mxu0 %v2022
      %2062 = vmatpush.msra.mxu0 %v2020
      %2063 = vmatmul.f32.gmra.mxu0 %v2031
      %v2064 = vpop.f32.mrf.mxu0
      %v2065 = vadd.f32 0.0, %v2064
      %2066 = vmatmul.f32.gmra.mxu0 %v2033
      %v2067 = vpop.f32.mrf.mxu0
      %v2068 = vadd.f32 0.0, %v2067
      %2069 = vmatmul.f32.gmra.mxu0 %v2035
      %v2070 = vpop.f32.mrf.mxu0
      %v2071 = vadd.f32 0.0, %v2070
      %2072 = vmatmul.f32.gmra.mxu0 %v2037
      %v2073 = vpop.f32.mrf.mxu0
      %v2074 = vadd.f32 0.0, %v2073
      %2075 = vmatmul.f32.gmra.mxu0 %v2039
      %v2076 = vpop.f32.mrf.mxu0
      %v2077 = vadd.f32 0.0, %v2076
      %2078 = vmatmul.f32.gmra.mxu0 %v2041
      %v2079 = vpop.f32.mrf.mxu0
      %v2080 = vadd.f32 0.0, %v2079
      %2081 = vmatmul.f32.gmra.mxu0 %v2043
      %v2082 = vpop.f32.mrf.mxu0
      %v2083 = vadd.f32 0.0, %v2082
      %2084 = vmatmul.f32.gmra.mxu0 %v2045
      %v2085 = vpop.f32.mrf.mxu0
      %v2086 = vadd.f32 0.0, %v2085
      %2087 = vdwg.mxu0
      %v2088 = vsel %vm1302, %v1959, 0
      %v2090 = vsel %vm1302, %v1963, 0
      %v2092 = vsel %vm1302, %v1967, 0
      %v2094 = vsel %vm1302, %v1971, 0
      %v2096 = vsel %vm1302, %v1975, 0
      %v2098 = vsel %vm1302, %v1979, 0
      %v2100 = vsel %vm1302, %v1983, 0
      %v2102 = vsel %vm1302, %v1987, 0
      %2104 = vmatpush.msra.mxu0 0.0
      %2105 = vmatpush.msra.mxu0 0.0
      %2106 = vmatpush.msra.mxu0 0.0
      %2107 = vmatpush.msra.mxu0 0.0
      %2108 = vmatpush.msra.mxu0 0.0
      %2109 = vmatpush.msra.mxu0 0.0
      %2110 = vmatpush.msra.mxu0 0.0
      %2111 = vmatpush.msra.mxu0 0.0
      %2112 = vmatpush.msra.mxu0 0.0
      %2113 = vmatpush.msra.mxu0 0.0
      %2114 = vmatpush.msra.mxu0 0.0
      %2115 = vmatpush.msra.mxu0 0.0
      %2116 = vmatpush.msra.mxu0 %v1957
      %2117 = vmatpush.msra.mxu0 %v1954
      %2118 = vmatpush.msra.mxu0 %v1951
      %2119 = vmatpush.msra.mxu0 %v1948
      %2120 = vmatmul.f32.gmra.mxu0 %v2088
      %v2121 = vpop.f32.mrf.mxu0
      %v2122 = vadd.f32 %v2065, %v2121
      %2123 = vmatmul.f32.gmra.mxu0 %v2090
      %v2124 = vpop.f32.mrf.mxu0
      %v2125 = vadd.f32 %v2068, %v2124
      %2126 = vmatmul.f32.gmra.mxu0 %v2092
      %v2127 = vpop.f32.mrf.mxu0
      %v2128 = vadd.f32 %v2071, %v2127
      %2129 = vmatmul.f32.gmra.mxu0 %v2094
      %v2130 = vpop.f32.mrf.mxu0
      %v2131 = vadd.f32 %v2074, %v2130
      %2132 = vmatmul.f32.gmra.mxu0 %v2096
      %v2133 = vpop.f32.mrf.mxu0
      %v2134 = vadd.f32 %v2077, %v2133
      %2135 = vmatmul.f32.gmra.mxu0 %v2098
      %v2136 = vpop.f32.mrf.mxu0
      %v2137 = vadd.f32 %v2080, %v2136
      %2138 = vmatmul.f32.gmra.mxu0 %v2100
      %v2139 = vpop.f32.mrf.mxu0
      %v2140 = vadd.f32 %v2083, %v2139
      %2141 = vmatmul.f32.gmra.mxu0 %v2102
      %v2142 = vpop.f32.mrf.mxu0
      %v2143 = vadd.f32 %v2086, %v2142
      %2144 = vdwg.mxu0
      %2145 = vrot.lane.b32.xlu0 %v1959, 64
      %v2146 = vpop.permute.xlu0 %2145
      %2147 = vrot.lane.b32.xlu0 %v1963, 64
      %v2148 = vpop.permute.xlu0 %2147
      %2149 = vrot.lane.b32.xlu0 %v1967, 64
      %v2150 = vpop.permute.xlu0 %2149
      %2151 = vrot.lane.b32.xlu0 %v1971, 64
      %v2152 = vpop.permute.xlu0 %2151
      %2153 = vrot.lane.b32.xlu0 %v1975, 64
      %v2154 = vpop.permute.xlu0 %2153
      %2155 = vrot.lane.b32.xlu0 %v1979, 64
      %v2156 = vpop.permute.xlu0 %2155
      %2157 = vrot.lane.b32.xlu0 %v1983, 64
      %v2158 = vpop.permute.xlu0 %2157
      %2159 = vrot.lane.b32.xlu0 %v1987, 64
      %v2160 = vpop.permute.xlu0 %2159
      %2161 = vrot.lane.b32.xlu0 %v1948, 126
      %v2162 = vpop.permute.xlu0 %2161
      %2163 = vrot.lane.b32.xlu0 %v1951, 126
      %v2164 = vpop.permute.xlu0 %2163
      %2165 = vrot.lane.b32.xlu0 %v1954, 126
      %v2166 = vpop.permute.xlu0 %2165
      %2167 = vrot.lane.b32.xlu0 %v1957, 126
      %v2168 = vpop.permute.xlu0 %2167
      %v2173 = vsel %vm1302, %v2146, 0
      %v2175 = vsel %vm1302, %v2148, 0
      %v2177 = vsel %vm1302, %v2150, 0
      %v2179 = vsel %vm1302, %v2152, 0
      %v2181 = vsel %vm1302, %v2154, 0
      %v2183 = vsel %vm1302, %v2156, 0
      %v2185 = vsel %vm1302, %v2158, 0
      %v2187 = vsel %vm1302, %v2160, 0
      %2189 = vmatpush.msra.mxu0 0.0
      %2190 = vmatpush.msra.mxu0 0.0
      %2191 = vmatpush.msra.mxu0 0.0
      %2192 = vmatpush.msra.mxu0 0.0
      %2193 = vmatpush.msra.mxu0 0.0
      %2194 = vmatpush.msra.mxu0 0.0
      %2195 = vmatpush.msra.mxu0 0.0
      %2196 = vmatpush.msra.mxu0 0.0
      %2197 = vmatpush.msra.mxu0 0.0
      %2198 = vmatpush.msra.mxu0 0.0
      %2199 = vmatpush.msra.mxu0 0.0
      %2200 = vmatpush.msra.mxu0 0.0
      %2201 = vmatpush.msra.mxu0 %v2168
      %2202 = vmatpush.msra.mxu0 %v2166
      %2203 = vmatpush.msra.mxu0 %v2164
      %2204 = vmatpush.msra.mxu0 %v2162
      %2205 = vmatmul.f32.gmra.mxu0 %v2173
      %v2206 = vpop.f32.mrf.mxu0
      %v2207 = vadd.f32 0.0, %v2206
      %2208 = vmatmul.f32.gmra.mxu0 %v2175
      %v2209 = vpop.f32.mrf.mxu0
      %v2210 = vadd.f32 0.0, %v2209
      %2211 = vmatmul.f32.gmra.mxu0 %v2177
      %v2212 = vpop.f32.mrf.mxu0
      %v2213 = vadd.f32 0.0, %v2212
      %2214 = vmatmul.f32.gmra.mxu0 %v2179
      %v2215 = vpop.f32.mrf.mxu0
      %v2216 = vadd.f32 0.0, %v2215
      %2217 = vmatmul.f32.gmra.mxu0 %v2181
      %v2218 = vpop.f32.mrf.mxu0
      %v2219 = vadd.f32 0.0, %v2218
      %2220 = vmatmul.f32.gmra.mxu0 %v2183
      %v2221 = vpop.f32.mrf.mxu0
      %v2222 = vadd.f32 0.0, %v2221
      %2223 = vmatmul.f32.gmra.mxu0 %v2185
      %v2224 = vpop.f32.mrf.mxu0
      %v2225 = vadd.f32 0.0, %v2224
      %2226 = vmatmul.f32.gmra.mxu0 %v2187
      %v2227 = vpop.f32.mrf.mxu0
      %v2228 = vadd.f32 0.0, %v2227
      %2229 = vdwg.mxu0
      %v2230 = vadd.f32 %v2122, %v2207
      %v2231 = vadd.f32 %v2125, %v2210
      %v2232 = vadd.f32 %v2128, %v2213
      %v2233 = vadd.f32 %v2131, %v2216
      %v2234 = vadd.f32 %v2134, %v2219
      %v2235 = vadd.f32 %v2137, %v2222
      %v2236 = vadd.f32 %v2140, %v2225
      %v2237 = vadd.f32 %v2143, %v2228
      %2238 = vrot.lane.b32.xlu0 %v1959, 32
      %v2239 = vpop.permute.xlu0 %2238
      %2240 = vrot.lane.b32.xlu0 %v1963, 32
      %v2241 = vpop.permute.xlu0 %2240
      %2242 = vrot.lane.b32.xlu0 %v1967, 32
      %v2243 = vpop.permute.xlu0 %2242
      %2244 = vrot.lane.b32.xlu0 %v1971, 32
      %v2245 = vpop.permute.xlu0 %2244
      %2246 = vrot.lane.b32.xlu0 %v1975, 32
      %v2247 = vpop.permute.xlu0 %2246
      %2248 = vrot.lane.b32.xlu0 %v1979, 32
      %v2249 = vpop.permute.xlu0 %2248
      %2250 = vrot.lane.b32.xlu0 %v1983, 32
      %v2251 = vpop.permute.xlu0 %2250
      %2252 = vrot.lane.b32.xlu0 %v1987, 32
      %v2253 = vpop.permute.xlu0 %2252
      %2254 = vrot.lane.b32.xlu0 %v1948, 125
      %v2255 = vpop.permute.xlu0 %2254
      %2256 = vrot.lane.b32.xlu0 %v1951, 125
      %v2257 = vpop.permute.xlu0 %2256
      %2258 = vrot.lane.b32.xlu0 %v1954, 125
      %v2259 = vpop.permute.xlu0 %2258
      %2260 = vrot.lane.b32.xlu0 %v1957, 125
      %v2261 = vpop.permute.xlu0 %2260
      %v2266 = vsel %vm1302, %v2239, 0
      %v2268 = vsel %vm1302, %v2241, 0
      %v2270 = vsel %vm1302, %v2243, 0
      %v2272 = vsel %vm1302, %v2245, 0
      %v2274 = vsel %vm1302, %v2247, 0
      %v2276 = vsel %vm1302, %v2249, 0
      %v2278 = vsel %vm1302, %v2251, 0
      %v2280 = vsel %vm1302, %v2253, 0
      %2282 = vmatpush.msra.mxu0 0.0
      %2283 = vmatpush.msra.mxu0 0.0
      %2284 = vmatpush.msra.mxu0 0.0
      %2285 = vmatpush.msra.mxu0 0.0
      %2286 = vmatpush.msra.mxu0 0.0
      %2287 = vmatpush.msra.mxu0 0.0
      %2288 = vmatpush.msra.mxu0 0.0
      %2289 = vmatpush.msra.mxu0 0.0
      %2290 = vmatpush.msra.mxu0 0.0
      %2291 = vmatpush.msra.mxu0 0.0
      %2292 = vmatpush.msra.mxu0 0.0
      %2293 = vmatpush.msra.mxu0 0.0
      %2294 = vmatpush.msra.mxu0 %v2261
      %2295 = vmatpush.msra.mxu0 %v2259
      %2296 = vmatpush.msra.mxu0 %v2257
      %2297 = vmatpush.msra.mxu0 %v2255
      %2298 = vmatmul.f32.gmra.mxu0 %v2266
      %v2299 = vpop.f32.mrf.mxu0
      %v2300 = vadd.f32 0.0, %v2299
      %2301 = vmatmul.f32.gmra.mxu0 %v2268
      %v2302 = vpop.f32.mrf.mxu0
      %v2303 = vadd.f32 0.0, %v2302
      %2304 = vmatmul.f32.gmra.mxu0 %v2270
      %v2305 = vpop.f32.mrf.mxu0
      %v2306 = vadd.f32 0.0, %v2305
      %2307 = vmatmul.f32.gmra.mxu0 %v2272
      %v2308 = vpop.f32.mrf.mxu0
      %v2309 = vadd.f32 0.0, %v2308
      %2310 = vmatmul.f32.gmra.mxu0 %v2274
      %v2311 = vpop.f32.mrf.mxu0
      %v2312 = vadd.f32 0.0, %v2311
      %2313 = vmatmul.f32.gmra.mxu0 %v2276
      %v2314 = vpop.f32.mrf.mxu0
      %v2315 = vadd.f32 0.0, %v2314
      %2316 = vmatmul.f32.gmra.mxu0 %v2278
      %v2317 = vpop.f32.mrf.mxu0
      %v2318 = vadd.f32 0.0, %v2317
      %2319 = vmatmul.f32.gmra.mxu0 %v2280
      %v2320 = vpop.f32.mrf.mxu0
      %v2321 = vadd.f32 0.0, %v2320
      %2322 = vdwg.mxu0
      %v2323 = vadd.f32 %v2230, %v2300
      %v2324 = vadd.f32 %v2231, %v2303
      %v2325 = vadd.f32 %v2232, %v2306
      %v2326 = vadd.f32 %v2233, %v2309
      %v2327 = vadd.f32 %v2234, %v2312
      %v2328 = vadd.f32 %v2235, %v2315
      %v2329 = vadd.f32 %v2236, %v2318
      %v2330 = vadd.f32 %v2237, %v2321
      %2331 = vrot.lane.b32.xlu0 %v1948, 122
      %v2332 = vpop.permute.xlu0 %2331
      %2333 = vrot.lane.b32.xlu0 %v1951, 122
      %v2334 = vpop.permute.xlu0 %2333
      %2335 = vrot.lane.b32.xlu0 %v1954, 122
      %v2336 = vpop.permute.xlu0 %2335
      %2337 = vrot.lane.b32.xlu0 %v1957, 122
      %v2338 = vpop.permute.xlu0 %2337
      %v2344 = vsel %vm1302, %v1960, 0
      %v2347 = vsel %vm1302, %v1964, 0
      %v2350 = vsel %vm1302, %v1968, 0
      %v2353 = vsel %vm1302, %v1972, 0
      %v2356 = vsel %vm1302, %v1976, 0
      %v2359 = vsel %vm1302, %v1980, 0
      %v2362 = vsel %vm1302, %v1984, 0
      %v2365 = vsel %vm1302, %v1988, 0
      %2367 = vmatpush.msra.mxu0 0.0
      %2368 = vmatpush.msra.mxu0 0.0
      %2369 = vmatpush.msra.mxu0 0.0
      %2370 = vmatpush.msra.mxu0 0.0
      %2371 = vmatpush.msra.mxu0 0.0
      %2372 = vmatpush.msra.mxu0 0.0
      %2373 = vmatpush.msra.mxu0 0.0
      %2374 = vmatpush.msra.mxu0 0.0
      %2375 = vmatpush.msra.mxu0 0.0
      %2376 = vmatpush.msra.mxu0 0.0
      %2377 = vmatpush.msra.mxu0 0.0
      %2378 = vmatpush.msra.mxu0 0.0
      %2379 = vmatpush.msra.mxu0 %v2338
      %2380 = vmatpush.msra.mxu0 %v2336
      %2381 = vmatpush.msra.mxu0 %v2334
      %2382 = vmatpush.msra.mxu0 %v2332
      %2383 = vmatmul.f32.gmra.mxu0 %v2344
      %v2384 = vpop.f32.mrf.mxu0
      %v2385 = vadd.f32 0.0, %v2384
      %2386 = vmatmul.f32.gmra.mxu0 %v2347
      %v2387 = vpop.f32.mrf.mxu0
      %v2388 = vadd.f32 0.0, %v2387
      %2389 = vmatmul.f32.gmra.mxu0 %v2350
      %v2390 = vpop.f32.mrf.mxu0
      %v2391 = vadd.f32 0.0, %v2390
      %2392 = vmatmul.f32.gmra.mxu0 %v2353
      %v2393 = vpop.f32.mrf.mxu0
      %v2394 = vadd.f32 0.0, %v2393
      %2395 = vmatmul.f32.gmra.mxu0 %v2356
      %v2396 = vpop.f32.mrf.mxu0
      %v2397 = vadd.f32 0.0, %v2396
      %2398 = vmatmul.f32.gmra.mxu0 %v2359
      %v2399 = vpop.f32.mrf.mxu0
      %v2400 = vadd.f32 0.0, %v2399
      %2401 = vmatmul.f32.gmra.mxu0 %v2362
      %v2402 = vpop.f32.mrf.mxu0
      %v2403 = vadd.f32 0.0, %v2402
      %2404 = vmatmul.f32.gmra.mxu0 %v2365
      %v2405 = vpop.f32.mrf.mxu0
      %v2406 = vadd.f32 0.0, %v2405
      %2407 = vdwg.mxu0
      %v2408 = vadd.f32 %v2323, %v2385
      %v2409 = vadd.f32 %v2324, %v2388
      %v2410 = vadd.f32 %v2325, %v2391
      %v2411 = vadd.f32 %v2326, %v2394
      %v2412 = vadd.f32 %v2327, %v2397
      %v2413 = vadd.f32 %v2328, %v2400
      %v2414 = vadd.f32 %v2329, %v2403
      %v2415 = vadd.f32 %v2330, %v2406
      %2416 = vrot.lane.b32.xlu0 %v1960, 96
      %v2417 = vpop.permute.xlu0 %2416
      %2418 = vrot.lane.b32.xlu0 %v1964, 96
      %v2419 = vpop.permute.xlu0 %2418
      %2420 = vrot.lane.b32.xlu0 %v1968, 96
      %v2421 = vpop.permute.xlu0 %2420
      %2422 = vrot.lane.b32.xlu0 %v1972, 96
      %v2423 = vpop.permute.xlu0 %2422
      %2424 = vrot.lane.b32.xlu0 %v1976, 96
      %v2425 = vpop.permute.xlu0 %2424
      %2426 = vrot.lane.b32.xlu0 %v1980, 96
      %v2427 = vpop.permute.xlu0 %2426
      %2428 = vrot.lane.b32.xlu0 %v1984, 96
      %v2429 = vpop.permute.xlu0 %2428
      %2430 = vrot.lane.b32.xlu0 %v1988, 96
      %v2431 = vpop.permute.xlu0 %2430
      %2432 = vrot.lane.b32.xlu0 %v1948, 121
      %v2433 = vpop.permute.xlu0 %2432
      %2434 = vrot.lane.b32.xlu0 %v1951, 121
      %v2435 = vpop.permute.xlu0 %2434
      %2436 = vrot.lane.b32.xlu0 %v1954, 121
      %v2437 = vpop.permute.xlu0 %2436
      %2438 = vrot.lane.b32.xlu0 %v1957, 121
      %v2439 = vpop.permute.xlu0 %2438
      %v2444 = vsel %vm1302, %v2417, 0
      %v2446 = vsel %vm1302, %v2419, 0
      %v2448 = vsel %vm1302, %v2421, 0
      %v2450 = vsel %vm1302, %v2423, 0
      %v2452 = vsel %vm1302, %v2425, 0
      %v2454 = vsel %vm1302, %v2427, 0
      %v2456 = vsel %vm1302, %v2429, 0
      %v2458 = vsel %vm1302, %v2431, 0
      %2460 = vmatpush.msra.mxu0 0.0
      %2461 = vmatpush.msra.mxu0 0.0
      %2462 = vmatpush.msra.mxu0 0.0
      %2463 = vmatpush.msra.mxu0 0.0
      %2464 = vmatpush.msra.mxu0 0.0
      %2465 = vmatpush.msra.mxu0 0.0
      %2466 = vmatpush.msra.mxu0 0.0
      %2467 = vmatpush.msra.mxu0 0.0
      %2468 = vmatpush.msra.mxu0 0.0
      %2469 = vmatpush.msra.mxu0 0.0
      %2470 = vmatpush.msra.mxu0 0.0
      %2471 = vmatpush.msra.mxu0 0.0
      %2472 = vmatpush.msra.mxu0 %v2439
      %2473 = vmatpush.msra.mxu0 %v2437
      %2474 = vmatpush.msra.mxu0 %v2435
      %2475 = vmatpush.msra.mxu0 %v2433
      %2476 = vmatmul.f32.gmra.mxu0 %v2444
      %v2477 = vpop.f32.mrf.mxu0
      %v2478 = vadd.f32 0.0, %v2477
      %2479 = vmatmul.f32.gmra.mxu0 %v2446
      %v2480 = vpop.f32.mrf.mxu0
      %v2481 = vadd.f32 0.0, %v2480
      %2482 = vmatmul.f32.gmra.mxu0 %v2448
      %v2483 = vpop.f32.mrf.mxu0
      %v2484 = vadd.f32 0.0, %v2483
      %2485 = vmatmul.f32.gmra.mxu0 %v2450
      %v2486 = vpop.f32.mrf.mxu0
      %v2487 = vadd.f32 0.0, %v2486
      %2488 = vmatmul.f32.gmra.mxu0 %v2452
      %v2489 = vpop.f32.mrf.mxu0
      %v2490 = vadd.f32 0.0, %v2489
      %2491 = vmatmul.f32.gmra.mxu0 %v2454
      %v2492 = vpop.f32.mrf.mxu0
      %v2493 = vadd.f32 0.0, %v2492
      %2494 = vmatmul.f32.gmra.mxu0 %v2456
      %v2495 = vpop.f32.mrf.mxu0
      %v2496 = vadd.f32 0.0, %v2495
      %2497 = vmatmul.f32.gmra.mxu0 %v2458
      %v2498 = vpop.f32.mrf.mxu0
      %v2499 = vadd.f32 0.0, %v2498
      %2500 = vdwg.mxu0
      %v2501 = vadd.f32 %v2408, %v2478
      %v2502 = vadd.f32 %v2409, %v2481
      %v2503 = vadd.f32 %v2410, %v2484
      %v2504 = vadd.f32 %v2411, %v2487
      %v2505 = vadd.f32 %v2412, %v2490
      %v2506 = vadd.f32 %v2413, %v2493
      %v2507 = vadd.f32 %v2414, %v2496
      %v2508 = vadd.f32 %v2415, %v2499
      %2509 = vrot.lane.b32.xlu0 %v1960, 64
      %v2510 = vpop.permute.xlu0 %2509
      %2511 = vrot.lane.b32.xlu0 %v1964, 64
      %v2512 = vpop.permute.xlu0 %2511
      %2513 = vrot.lane.b32.xlu0 %v1968, 64
      %v2514 = vpop.permute.xlu0 %2513
      %2515 = vrot.lane.b32.xlu0 %v1972, 64
      %v2516 = vpop.permute.xlu0 %2515
      %2517 = vrot.lane.b32.xlu0 %v1976, 64
      %v2518 = vpop.permute.xlu0 %2517
      %2519 = vrot.lane.b32.xlu0 %v1980, 64
      %v2520 = vpop.permute.xlu0 %2519
      %2521 = vrot.lane.b32.xlu0 %v1984, 64
      %v2522 = vpop.permute.xlu0 %2521
      %2523 = vrot.lane.b32.xlu0 %v1988, 64
      %v2524 = vpop.permute.xlu0 %2523
      %2525 = vrot.lane.b32.xlu0 %v1948, 120
      %v2526 = vpop.permute.xlu0 %2525
      %2527 = vrot.lane.b32.xlu0 %v1951, 120
      %v2528 = vpop.permute.xlu0 %2527
      %2529 = vrot.lane.b32.xlu0 %v1954, 120
      %v2530 = vpop.permute.xlu0 %2529
      %2531 = vrot.lane.b32.xlu0 %v1957, 120
      %v2532 = vpop.permute.xlu0 %2531
      %v2537 = vsel %vm1302, %v2510, 0
      %v2539 = vsel %vm1302, %v2512, 0
      %v2541 = vsel %vm1302, %v2514, 0
      %v2543 = vsel %vm1302, %v2516, 0
      %v2545 = vsel %vm1302, %v2518, 0
      %v2547 = vsel %vm1302, %v2520, 0
      %v2549 = vsel %vm1302, %v2522, 0
      %v2551 = vsel %vm1302, %v2524, 0
      %2553 = vmatpush.msra.mxu0 0.0
      %2554 = vmatpush.msra.mxu0 0.0
      %2555 = vmatpush.msra.mxu0 0.0
      %2556 = vmatpush.msra.mxu0 0.0
      %2557 = vmatpush.msra.mxu0 0.0
      %2558 = vmatpush.msra.mxu0 0.0
      %2559 = vmatpush.msra.mxu0 0.0
      %2560 = vmatpush.msra.mxu0 0.0
      %2561 = vmatpush.msra.mxu0 0.0
      %2562 = vmatpush.msra.mxu0 0.0
      %2563 = vmatpush.msra.mxu0 0.0
      %2564 = vmatpush.msra.mxu0 0.0
      %2565 = vmatpush.msra.mxu0 %v2532
      %2566 = vmatpush.msra.mxu0 %v2530
      %2567 = vmatpush.msra.mxu0 %v2528
      %2568 = vmatpush.msra.mxu0 %v2526
      %2569 = vmatmul.f32.gmra.mxu0 %v2537
      %v2570 = vpop.f32.mrf.mxu0
      %v2571 = vadd.f32 0.0, %v2570
      %2572 = vmatmul.f32.gmra.mxu0 %v2539
      %v2573 = vpop.f32.mrf.mxu0
      %v2574 = vadd.f32 0.0, %v2573
      %2575 = vmatmul.f32.gmra.mxu0 %v2541
      %v2576 = vpop.f32.mrf.mxu0
      %v2577 = vadd.f32 0.0, %v2576
      %2578 = vmatmul.f32.gmra.mxu0 %v2543
      %v2579 = vpop.f32.mrf.mxu0
      %v2580 = vadd.f32 0.0, %v2579
      %2581 = vmatmul.f32.gmra.mxu0 %v2545
      %v2582 = vpop.f32.mrf.mxu0
      %v2583 = vadd.f32 0.0, %v2582
      %2584 = vmatmul.f32.gmra.mxu0 %v2547
      %v2585 = vpop.f32.mrf.mxu0
      %v2586 = vadd.f32 0.0, %v2585
      %2587 = vmatmul.f32.gmra.mxu0 %v2549
      %v2588 = vpop.f32.mrf.mxu0
      %v2589 = vadd.f32 0.0, %v2588
      %2590 = vmatmul.f32.gmra.mxu0 %v2551
      %v2591 = vpop.f32.mrf.mxu0
      %v2592 = vadd.f32 0.0, %v2591
      %2593 = vdwg.mxu0
      %v2594 = vadd.f32 %v2501, %v2571
      %v2595 = vadd.f32 %v2502, %v2574
      %v2596 = vadd.f32 %v2503, %v2577
      %v2597 = vadd.f32 %v2504, %v2580
      %v2598 = vadd.f32 %v2505, %v2583
      %v2599 = vadd.f32 %v2506, %v2586
      %v2600 = vadd.f32 %v2507, %v2589
      %v2601 = vadd.f32 %v2508, %v2592
      %2602 = vrot.lane.b32.xlu0 %v1960, 32
      %v2603 = vpop.permute.xlu0 %2602
      %2604 = vrot.lane.b32.xlu0 %v1964, 32
      %v2605 = vpop.permute.xlu0 %2604
      %2606 = vrot.lane.b32.xlu0 %v1968, 32
      %v2607 = vpop.permute.xlu0 %2606
      %2608 = vrot.lane.b32.xlu0 %v1972, 32
      %v2609 = vpop.permute.xlu0 %2608
      %2610 = vrot.lane.b32.xlu0 %v1976, 32
      %v2611 = vpop.permute.xlu0 %2610
      %2612 = vrot.lane.b32.xlu0 %v1980, 32
      %v2613 = vpop.permute.xlu0 %2612
      %2614 = vrot.lane.b32.xlu0 %v1984, 32
      %v2615 = vpop.permute.xlu0 %2614
      %2616 = vrot.lane.b32.xlu0 %v1988, 32
      %v2617 = vpop.permute.xlu0 %2616
      %2618 = vrot.lane.b32.xlu0 %v1948, 119
      %v2619 = vpop.permute.xlu0 %2618
      %2620 = vrot.lane.b32.xlu0 %v1951, 119
      %v2621 = vpop.permute.xlu0 %2620
      %2622 = vrot.lane.b32.xlu0 %v1954, 119
      %v2623 = vpop.permute.xlu0 %2622
      %2624 = vrot.lane.b32.xlu0 %v1957, 119
      %v2625 = vpop.permute.xlu0 %2624
      %v2630 = vsel %vm1302, %v2603, 0
      %v2632 = vsel %vm1302, %v2605, 0
      %v2634 = vsel %vm1302, %v2607, 0
      %v2636 = vsel %vm1302, %v2609, 0
      %v2638 = vsel %vm1302, %v2611, 0
      %v2640 = vsel %vm1302, %v2613, 0
      %v2642 = vsel %vm1302, %v2615, 0
      %v2644 = vsel %vm1302, %v2617, 0
      %2646 = vmatpush.msra.mxu0 0.0
      %2647 = vmatpush.msra.mxu0 0.0
      %2648 = vmatpush.msra.mxu0 0.0
      %2649 = vmatpush.msra.mxu0 0.0
      %2650 = vmatpush.msra.mxu0 0.0
      %2651 = vmatpush.msra.mxu0 0.0
      %2652 = vmatpush.msra.mxu0 0.0
      %2653 = vmatpush.msra.mxu0 0.0
      %2654 = vmatpush.msra.mxu0 0.0
      %2655 = vmatpush.msra.mxu0 0.0
      %2656 = vmatpush.msra.mxu0 0.0
      %2657 = vmatpush.msra.mxu0 0.0
      %2658 = vmatpush.msra.mxu0 %v2625
      %2659 = vmatpush.msra.mxu0 %v2623
      %2660 = vmatpush.msra.mxu0 %v2621
      %2661 = vmatpush.msra.mxu0 %v2619
      %2662 = vmatmul.f32.gmra.mxu0 %v2630
      %v2663 = vpop.f32.mrf.mxu0
      %v2664 = vadd.f32 0.0, %v2663
      %2665 = vmatmul.f32.gmra.mxu0 %v2632
      %v2666 = vpop.f32.mrf.mxu0
      %v2667 = vadd.f32 0.0, %v2666
      %2668 = vmatmul.f32.gmra.mxu0 %v2634
      %v2669 = vpop.f32.mrf.mxu0
      %v2670 = vadd.f32 0.0, %v2669
      %2671 = vmatmul.f32.gmra.mxu0 %v2636
      %v2672 = vpop.f32.mrf.mxu0
      %v2673 = vadd.f32 0.0, %v2672
      %2674 = vmatmul.f32.gmra.mxu0 %v2638
      %v2675 = vpop.f32.mrf.mxu0
      %v2676 = vadd.f32 0.0, %v2675
      %2677 = vmatmul.f32.gmra.mxu0 %v2640
      %v2678 = vpop.f32.mrf.mxu0
      %v2679 = vadd.f32 0.0, %v2678
      %2680 = vmatmul.f32.gmra.mxu0 %v2642
      %v2681 = vpop.f32.mrf.mxu0
      %v2682 = vadd.f32 0.0, %v2681
      %2683 = vmatmul.f32.gmra.mxu0 %v2644
      %v2684 = vpop.f32.mrf.mxu0
      %v2685 = vadd.f32 0.0, %v2684
      %2686 = vdwg.mxu0
      %v2687 = vadd.f32 %v2594, %v2664
      %v2688 = vadd.f32 %v2595, %v2667
      %v2689 = vadd.f32 %v2596, %v2670
      %v2690 = vadd.f32 %v2597, %v2673
      %v2691 = vadd.f32 %v2598, %v2676
      %v2692 = vadd.f32 %v2599, %v2679
      %v2693 = vadd.f32 %v2600, %v2682
      %v2694 = vadd.f32 %v2601, %v2685
      %2695 = vrot.lane.b32.xlu0 %v1948, 116
      %v2696 = vpop.permute.xlu0 %2695
      %2697 = vrot.lane.b32.xlu0 %v1951, 116
      %v2698 = vpop.permute.xlu0 %2697
      %2699 = vrot.lane.b32.xlu0 %v1954, 116
      %v2700 = vpop.permute.xlu0 %2699
      %2701 = vrot.lane.b32.xlu0 %v1957, 116
      %v2702 = vpop.permute.xlu0 %2701
      %v2708 = vsel %vm1302, %v1961, 0
      %v2711 = vsel %vm1302, %v1965, 0
      %v2714 = vsel %vm1302, %v1969, 0
      %v2717 = vsel %vm1302, %v1973, 0
      %v2720 = vsel %vm1302, %v1977, 0
      %v2723 = vsel %vm1302, %v1981, 0
      %v2726 = vsel %vm1302, %v1985, 0
      %v2729 = vsel %vm1302, %v1989, 0
      %2731 = vmatpush.msra.mxu0 0.0
      %2732 = vmatpush.msra.mxu0 0.0
      %2733 = vmatpush.msra.mxu0 0.0
      %2734 = vmatpush.msra.mxu0 0.0
      %2735 = vmatpush.msra.mxu0 0.0
      %2736 = vmatpush.msra.mxu0 0.0
      %2737 = vmatpush.msra.mxu0 0.0
      %2738 = vmatpush.msra.mxu0 0.0
      %2739 = vmatpush.msra.mxu0 0.0
      %2740 = vmatpush.msra.mxu0 0.0
      %2741 = vmatpush.msra.mxu0 0.0
      %2742 = vmatpush.msra.mxu0 0.0
      %2743 = vmatpush.msra.mxu0 %v2702
      %2744 = vmatpush.msra.mxu0 %v2700
      %2745 = vmatpush.msra.mxu0 %v2698
      %2746 = vmatpush.msra.mxu0 %v2696
      %2747 = vmatmul.f32.gmra.mxu0 %v2708
      %v2748 = vpop.f32.mrf.mxu0
      %v2749 = vadd.f32 0.0, %v2748
      %2750 = vmatmul.f32.gmra.mxu0 %v2711
      %v2751 = vpop.f32.mrf.mxu0
      %v2752 = vadd.f32 0.0, %v2751
      %2753 = vmatmul.f32.gmra.mxu0 %v2714
      %v2754 = vpop.f32.mrf.mxu0
      %v2755 = vadd.f32 0.0, %v2754
      %2756 = vmatmul.f32.gmra.mxu0 %v2717
      %v2757 = vpop.f32.mrf.mxu0
      %v2758 = vadd.f32 0.0, %v2757
      %2759 = vmatmul.f32.gmra.mxu0 %v2720
      %v2760 = vpop.f32.mrf.mxu0
      %v2761 = vadd.f32 0.0, %v2760
      %2762 = vmatmul.f32.gmra.mxu0 %v2723
      %v2763 = vpop.f32.mrf.mxu0
      %v2764 = vadd.f32 0.0, %v2763
      %2765 = vmatmul.f32.gmra.mxu0 %v2726
      %v2766 = vpop.f32.mrf.mxu0
      %v2767 = vadd.f32 0.0, %v2766
      %2768 = vmatmul.f32.gmra.mxu0 %v2729
      %v2769 = vpop.f32.mrf.mxu0
      %v2770 = vadd.f32 0.0, %v2769
      %2771 = vdwg.mxu0
      %v2772 = vadd.f32 %v2687, %v2749
      %v2773 = vadd.f32 %v2688, %v2752
      %v2774 = vadd.f32 %v2689, %v2755
      %v2775 = vadd.f32 %v2690, %v2758
      %v2776 = vadd.f32 %v2691, %v2761
      %v2777 = vadd.f32 %v2692, %v2764
      %v2778 = vadd.f32 %v2693, %v2767
      %v2779 = vadd.f32 %v2694, %v2770
      %2780 = vrot.lane.b32.xlu0 %v1961, 96
      %v2781 = vpop.permute.xlu0 %2780
      %2782 = vrot.lane.b32.xlu0 %v1965, 96
      %v2783 = vpop.permute.xlu0 %2782
      %2784 = vrot.lane.b32.xlu0 %v1969, 96
      %v2785 = vpop.permute.xlu0 %2784
      %2786 = vrot.lane.b32.xlu0 %v1973, 96
      %v2787 = vpop.permute.xlu0 %2786
      %2788 = vrot.lane.b32.xlu0 %v1977, 96
      %v2789 = vpop.permute.xlu0 %2788
      %2790 = vrot.lane.b32.xlu0 %v1981, 96
      %v2791 = vpop.permute.xlu0 %2790
      %2792 = vrot.lane.b32.xlu0 %v1985, 96
      %v2793 = vpop.permute.xlu0 %2792
      %2794 = vrot.lane.b32.xlu0 %v1989, 96
      %v2795 = vpop.permute.xlu0 %2794
      %2796 = vrot.lane.b32.xlu0 %v1948, 115
      %v2797 = vpop.permute.xlu0 %2796
      %2798 = vrot.lane.b32.xlu0 %v1951, 115
      %v2799 = vpop.permute.xlu0 %2798
      %2800 = vrot.lane.b32.xlu0 %v1954, 115
      %v2801 = vpop.permute.xlu0 %2800
      %2802 = vrot.lane.b32.xlu0 %v1957, 115
      %v2803 = vpop.permute.xlu0 %2802
      %v2808 = vsel %vm1302, %v2781, 0
      %v2810 = vsel %vm1302, %v2783, 0
      %v2812 = vsel %vm1302, %v2785, 0
      %v2814 = vsel %vm1302, %v2787, 0
      %v2816 = vsel %vm1302, %v2789, 0
      %v2818 = vsel %vm1302, %v2791, 0
      %v2820 = vsel %vm1302, %v2793, 0
      %v2822 = vsel %vm1302, %v2795, 0
      %2824 = vmatpush.msra.mxu0 0.0
      %2825 = vmatpush.msra.mxu0 0.0
      %2826 = vmatpush.msra.mxu0 0.0
      %2827 = vmatpush.msra.mxu0 0.0
      %2828 = vmatpush.msra.mxu0 0.0
      %2829 = vmatpush.msra.mxu0 0.0
      %2830 = vmatpush.msra.mxu0 0.0
      %2831 = vmatpush.msra.mxu0 0.0
      %2832 = vmatpush.msra.mxu0 0.0
      %2833 = vmatpush.msra.mxu0 0.0
      %2834 = vmatpush.msra.mxu0 0.0
      %2835 = vmatpush.msra.mxu0 0.0
      %2836 = vmatpush.msra.mxu0 %v2803
      %2837 = vmatpush.msra.mxu0 %v2801
      %2838 = vmatpush.msra.mxu0 %v2799
      %2839 = vmatpush.msra.mxu0 %v2797
      %2840 = vmatmul.f32.gmra.mxu0 %v2808
      %v2841 = vpop.f32.mrf.mxu0
      %v2842 = vadd.f32 0.0, %v2841
      %2843 = vmatmul.f32.gmra.mxu0 %v2810
      %v2844 = vpop.f32.mrf.mxu0
      %v2845 = vadd.f32 0.0, %v2844
      %2846 = vmatmul.f32.gmra.mxu0 %v2812
      %v2847 = vpop.f32.mrf.mxu0
      %v2848 = vadd.f32 0.0, %v2847
      %2849 = vmatmul.f32.gmra.mxu0 %v2814
      %v2850 = vpop.f32.mrf.mxu0
      %v2851 = vadd.f32 0.0, %v2850
      %2852 = vmatmul.f32.gmra.mxu0 %v2816
      %v2853 = vpop.f32.mrf.mxu0
      %v2854 = vadd.f32 0.0, %v2853
      %2855 = vmatmul.f32.gmra.mxu0 %v2818
      %v2856 = vpop.f32.mrf.mxu0
      %v2857 = vadd.f32 0.0, %v2856
      %2858 = vmatmul.f32.gmra.mxu0 %v2820
      %v2859 = vpop.f32.mrf.mxu0
      %v2860 = vadd.f32 0.0, %v2859
      %2861 = vmatmul.f32.gmra.mxu0 %v2822
      %v2862 = vpop.f32.mrf.mxu0
      %v2863 = vadd.f32 0.0, %v2862
      %2864 = vdwg.mxu0
      %v2865 = vadd.f32 %v2772, %v2842
      %v2866 = vadd.f32 %v2773, %v2845
      %v2867 = vadd.f32 %v2774, %v2848
      %v2868 = vadd.f32 %v2775, %v2851
      %v2869 = vadd.f32 %v2776, %v2854
      %v2870 = vadd.f32 %v2777, %v2857
      %v2871 = vadd.f32 %v2778, %v2860
      %v2872 = vadd.f32 %v2779, %v2863
      %2873 = vrot.lane.b32.xlu0 %v1961, 64
      %v2874 = vpop.permute.xlu0 %2873
      %2875 = vrot.lane.b32.xlu0 %v1965, 64
      %v2876 = vpop.permute.xlu0 %2875
      %2877 = vrot.lane.b32.xlu0 %v1969, 64
      %v2878 = vpop.permute.xlu0 %2877
      %2879 = vrot.lane.b32.xlu0 %v1973, 64
      %v2880 = vpop.permute.xlu0 %2879
      %2881 = vrot.lane.b32.xlu0 %v1977, 64
      %v2882 = vpop.permute.xlu0 %2881
      %2883 = vrot.lane.b32.xlu0 %v1981, 64
      %v2884 = vpop.permute.xlu0 %2883
      %2885 = vrot.lane.b32.xlu0 %v1985, 64
      %v2886 = vpop.permute.xlu0 %2885
      %2887 = vrot.lane.b32.xlu0 %v1989, 64
      %v2888 = vpop.permute.xlu0 %2887
      %2889 = vrot.lane.b32.xlu0 %v1948, 114
      %v2890 = vpop.permute.xlu0 %2889
      %2891 = vrot.lane.b32.xlu0 %v1951, 114
      %v2892 = vpop.permute.xlu0 %2891
      %2893 = vrot.lane.b32.xlu0 %v1954, 114
      %v2894 = vpop.permute.xlu0 %2893
      %2895 = vrot.lane.b32.xlu0 %v1957, 114
      %v2896 = vpop.permute.xlu0 %2895
      %v2901 = vsel %vm1302, %v2874, 0
      %v2903 = vsel %vm1302, %v2876, 0
      %v2905 = vsel %vm1302, %v2878, 0
      %v2907 = vsel %vm1302, %v2880, 0
      %v2909 = vsel %vm1302, %v2882, 0
      %v2911 = vsel %vm1302, %v2884, 0
      %v2913 = vsel %vm1302, %v2886, 0
      %v2915 = vsel %vm1302, %v2888, 0
      %2917 = vmatpush.msra.mxu0 0.0
      %2918 = vmatpush.msra.mxu0 0.0
      %2919 = vmatpush.msra.mxu0 0.0
      %2920 = vmatpush.msra.mxu0 0.0
      %2921 = vmatpush.msra.mxu0 0.0
      %2922 = vmatpush.msra.mxu0 0.0
      %2923 = vmatpush.msra.mxu0 0.0
      %2924 = vmatpush.msra.mxu0 0.0
      %2925 = vmatpush.msra.mxu0 0.0
      %2926 = vmatpush.msra.mxu0 0.0
      %2927 = vmatpush.msra.mxu0 0.0
      %2928 = vmatpush.msra.mxu0 0.0
      %2929 = vmatpush.msra.mxu0 %v2896
      %2930 = vmatpush.msra.mxu0 %v2894
      %2931 = vmatpush.msra.mxu0 %v2892
      %2932 = vmatpush.msra.mxu0 %v2890
      %2933 = vmatmul.f32.gmra.mxu0 %v2901
      %v2934 = vpop.f32.mrf.mxu0
      %v2935 = vadd.f32 0.0, %v2934
      %2936 = vmatmul.f32.gmra.mxu0 %v2903
      %v2937 = vpop.f32.mrf.mxu0
      %v2938 = vadd.f32 0.0, %v2937
      %2939 = vmatmul.f32.gmra.mxu0 %v2905
      %v2940 = vpop.f32.mrf.mxu0
      %v2941 = vadd.f32 0.0, %v2940
      %2942 = vmatmul.f32.gmra.mxu0 %v2907
      %v2943 = vpop.f32.mrf.mxu0
      %v2944 = vadd.f32 0.0, %v2943
      %2945 = vmatmul.f32.gmra.mxu0 %v2909
      %v2946 = vpop.f32.mrf.mxu0
      %v2947 = vadd.f32 0.0, %v2946
      %2948 = vmatmul.f32.gmra.mxu0 %v2911
      %v2949 = vpop.f32.mrf.mxu0
      %v2950 = vadd.f32 0.0, %v2949
      %2951 = vmatmul.f32.gmra.mxu0 %v2913
      %v2952 = vpop.f32.mrf.mxu0
      %v2953 = vadd.f32 0.0, %v2952
      %2954 = vmatmul.f32.gmra.mxu0 %v2915
      %v2955 = vpop.f32.mrf.mxu0
      %v2956 = vadd.f32 0.0, %v2955
      %2957 = vdwg.mxu0
      %v2958 = vadd.f32 %v2865, %v2935
      %v2959 = vadd.f32 %v2866, %v2938
      %v2960 = vadd.f32 %v2867, %v2941
      %v2961 = vadd.f32 %v2868, %v2944
      %v2962 = vadd.f32 %v2869, %v2947
      %v2963 = vadd.f32 %v2870, %v2950
      %v2964 = vadd.f32 %v2871, %v2953
      %v2965 = vadd.f32 %v2872, %v2956
      %2966 = vrot.lane.b32.xlu0 %v1961, 32
      %v2967 = vpop.permute.xlu0 %2966
      %2968 = vrot.lane.b32.xlu0 %v1965, 32
      %v2969 = vpop.permute.xlu0 %2968
      %2970 = vrot.lane.b32.xlu0 %v1969, 32
      %v2971 = vpop.permute.xlu0 %2970
      %2972 = vrot.lane.b32.xlu0 %v1973, 32
      %v2973 = vpop.permute.xlu0 %2972
      %2974 = vrot.lane.b32.xlu0 %v1977, 32
      %v2975 = vpop.permute.xlu0 %2974
      %2976 = vrot.lane.b32.xlu0 %v1981, 32
      %v2977 = vpop.permute.xlu0 %2976
      %2978 = vrot.lane.b32.xlu0 %v1985, 32
      %v2979 = vpop.permute.xlu0 %2978
      %2980 = vrot.lane.b32.xlu0 %v1989, 32
      %v2981 = vpop.permute.xlu0 %2980
      %2982 = vrot.lane.b32.xlu0 %v1948, 113
      %v2983 = vpop.permute.xlu0 %2982
      %2984 = vrot.lane.b32.xlu0 %v1951, 113
      %v2985 = vpop.permute.xlu0 %2984
      %2986 = vrot.lane.b32.xlu0 %v1954, 113
      %v2987 = vpop.permute.xlu0 %2986
      %2988 = vrot.lane.b32.xlu0 %v1957, 113
      %v2989 = vpop.permute.xlu0 %2988
      %v2994 = vsel %vm1302, %v2967, 0
      %v2996 = vsel %vm1302, %v2969, 0
      %v2998 = vsel %vm1302, %v2971, 0
      %v3000 = vsel %vm1302, %v2973, 0
      %v3002 = vsel %vm1302, %v2975, 0
      %v3004 = vsel %vm1302, %v2977, 0
      %v3006 = vsel %vm1302, %v2979, 0
      %v3008 = vsel %vm1302, %v2981, 0
      %3010 = vmatpush.msra.mxu0 0.0
      %3011 = vmatpush.msra.mxu0 0.0
      %3012 = vmatpush.msra.mxu0 0.0
      %3013 = vmatpush.msra.mxu0 0.0
      %3014 = vmatpush.msra.mxu0 0.0
      %3015 = vmatpush.msra.mxu0 0.0
      %3016 = vmatpush.msra.mxu0 0.0
      %3017 = vmatpush.msra.mxu0 0.0
      %3018 = vmatpush.msra.mxu0 0.0
      %3019 = vmatpush.msra.mxu0 0.0
      %3020 = vmatpush.msra.mxu0 0.0
      %3021 = vmatpush.msra.mxu0 0.0
      %3022 = vmatpush.msra.mxu0 %v2989
      %3023 = vmatpush.msra.mxu0 %v2987
      %3024 = vmatpush.msra.mxu0 %v2985
      %3025 = vmatpush.msra.mxu0 %v2983
      %3026 = vmatmul.f32.gmra.mxu0 %v2994
      %v3027 = vpop.f32.mrf.mxu0
      %v3028 = vadd.f32 0.0, %v3027
      %3029 = vmatmul.f32.gmra.mxu0 %v2996
      %v3030 = vpop.f32.mrf.mxu0
      %v3031 = vadd.f32 0.0, %v3030
      %3032 = vmatmul.f32.gmra.mxu0 %v2998
      %v3033 = vpop.f32.mrf.mxu0
      %v3034 = vadd.f32 0.0, %v3033
      %3035 = vmatmul.f32.gmra.mxu0 %v3000
      %v3036 = vpop.f32.mrf.mxu0
      %v3037 = vadd.f32 0.0, %v3036
      %3038 = vmatmul.f32.gmra.mxu0 %v3002
      %v3039 = vpop.f32.mrf.mxu0
      %v3040 = vadd.f32 0.0, %v3039
      %3041 = vmatmul.f32.gmra.mxu0 %v3004
      %v3042 = vpop.f32.mrf.mxu0
      %v3043 = vadd.f32 0.0, %v3042
      %3044 = vmatmul.f32.gmra.mxu0 %v3006
      %v3045 = vpop.f32.mrf.mxu0
      %v3046 = vadd.f32 0.0, %v3045
      %3047 = vmatmul.f32.gmra.mxu0 %v3008
      %v3048 = vpop.f32.mrf.mxu0
      %v3049 = vadd.f32 0.0, %v3048
      %3050 = vdwg.mxu0
      %v3051 = vadd.f32 %v2958, %v3028
      %v3052 = vadd.f32 %v2959, %v3031
      %v3053 = vadd.f32 %v2960, %v3034
      %v3054 = vadd.f32 %v2961, %v3037
      %v3055 = vadd.f32 %v2962, %v3040
      %v3056 = vadd.f32 %v2963, %v3043
      %v3057 = vadd.f32 %v2964, %v3046
      %v3058 = vadd.f32 %v2965, %v3049
      %3059 = vrot.lane.b32.xlu0 %v1948, 110
      %v3060 = vpop.permute.xlu0 %3059
      %3061 = vrot.lane.b32.xlu0 %v1951, 110
      %v3062 = vpop.permute.xlu0 %3061
      %3063 = vrot.lane.b32.xlu0 %v1954, 110
      %v3064 = vpop.permute.xlu0 %3063
      %3065 = vrot.lane.b32.xlu0 %v1957, 110
      %v3066 = vpop.permute.xlu0 %3065
      %v3072 = vsel %vm1302, %v1962, 0
      %v3075 = vsel %vm1302, %v1966, 0
      %v3078 = vsel %vm1302, %v1970, 0
      %v3081 = vsel %vm1302, %v1974, 0
      %v3084 = vsel %vm1302, %v1978, 0
      %v3087 = vsel %vm1302, %v1982, 0
      %v3090 = vsel %vm1302, %v1986, 0
      %v3093 = vsel %vm1302, %v1990, 0
      %3095 = vmatpush.msra.mxu0 0.0
      %3096 = vmatpush.msra.mxu0 0.0
      %3097 = vmatpush.msra.mxu0 0.0
      %3098 = vmatpush.msra.mxu0 0.0
      %3099 = vmatpush.msra.mxu0 0.0
      %3100 = vmatpush.msra.mxu0 0.0
      %3101 = vmatpush.msra.mxu0 0.0
      %3102 = vmatpush.msra.mxu0 0.0
      %3103 = vmatpush.msra.mxu0 0.0
      %3104 = vmatpush.msra.mxu0 0.0
      %3105 = vmatpush.msra.mxu0 0.0
      %3106 = vmatpush.msra.mxu0 0.0
      %3107 = vmatpush.msra.mxu0 %v3066
      %3108 = vmatpush.msra.mxu0 %v3064
      %3109 = vmatpush.msra.mxu0 %v3062
      %3110 = vmatpush.msra.mxu0 %v3060
      %3111 = vmatmul.f32.gmra.mxu0 %v3072
      %v3112 = vpop.f32.mrf.mxu0
      %v3113 = vadd.f32 0.0, %v3112
      %3114 = vmatmul.f32.gmra.mxu0 %v3075
      %v3115 = vpop.f32.mrf.mxu0
      %v3116 = vadd.f32 0.0, %v3115
      %3117 = vmatmul.f32.gmra.mxu0 %v3078
      %v3118 = vpop.f32.mrf.mxu0
      %v3119 = vadd.f32 0.0, %v3118
      %3120 = vmatmul.f32.gmra.mxu0 %v3081
      %v3121 = vpop.f32.mrf.mxu0
      %v3122 = vadd.f32 0.0, %v3121
      %3123 = vmatmul.f32.gmra.mxu0 %v3084
      %v3124 = vpop.f32.mrf.mxu0
      %v3125 = vadd.f32 0.0, %v3124
      %3126 = vmatmul.f32.gmra.mxu0 %v3087
      %v3127 = vpop.f32.mrf.mxu0
      %v3128 = vadd.f32 0.0, %v3127
      %3129 = vmatmul.f32.gmra.mxu0 %v3090
      %v3130 = vpop.f32.mrf.mxu0
      %v3131 = vadd.f32 0.0, %v3130
      %3132 = vmatmul.f32.gmra.mxu0 %v3093
      %v3133 = vpop.f32.mrf.mxu0
      %v3134 = vadd.f32 0.0, %v3133
      %3135 = vdwg.mxu0
      %v3136 = vadd.f32 %v3051, %v3113
      %v3137 = vadd.f32 %v3052, %v3116
      %v3138 = vadd.f32 %v3053, %v3119
      %v3139 = vadd.f32 %v3054, %v3122
      %v3140 = vadd.f32 %v3055, %v3125
      %v3141 = vadd.f32 %v3056, %v3128
      %v3142 = vadd.f32 %v3057, %v3131
      %v3143 = vadd.f32 %v3058, %v3134
      %3144 = vrot.lane.b32.xlu0 %v1962, 96
      %v3145 = vpop.permute.xlu0 %3144
      %3146 = vrot.lane.b32.xlu0 %v1966, 96
      %v3147 = vpop.permute.xlu0 %3146
      %3148 = vrot.lane.b32.xlu0 %v1970, 96
      %v3149 = vpop.permute.xlu0 %3148
      %3150 = vrot.lane.b32.xlu0 %v1974, 96
      %v3151 = vpop.permute.xlu0 %3150
      %3152 = vrot.lane.b32.xlu0 %v1978, 96
      %v3153 = vpop.permute.xlu0 %3152
      %3154 = vrot.lane.b32.xlu0 %v1982, 96
      %v3155 = vpop.permute.xlu0 %3154
      %3156 = vrot.lane.b32.xlu0 %v1986, 96
      %v3157 = vpop.permute.xlu0 %3156
      %3158 = vrot.lane.b32.xlu0 %v1990, 96
      %v3159 = vpop.permute.xlu0 %3158
      %3160 = vrot.lane.b32.xlu0 %v1948, 109
      %v3161 = vpop.permute.xlu0 %3160
      %3162 = vrot.lane.b32.xlu0 %v1951, 109
      %v3163 = vpop.permute.xlu0 %3162
      %3164 = vrot.lane.b32.xlu0 %v1954, 109
      %v3165 = vpop.permute.xlu0 %3164
      %3166 = vrot.lane.b32.xlu0 %v1957, 109
      %v3167 = vpop.permute.xlu0 %3166
      %v3172 = vsel %vm1302, %v3145, 0
      %v3174 = vsel %vm1302, %v3147, 0
      %v3176 = vsel %vm1302, %v3149, 0
      %v3178 = vsel %vm1302, %v3151, 0
      %v3180 = vsel %vm1302, %v3153, 0
      %v3182 = vsel %vm1302, %v3155, 0
      %v3184 = vsel %vm1302, %v3157, 0
      %v3186 = vsel %vm1302, %v3159, 0
      %3188 = vmatpush.msra.mxu0 0.0
      %3189 = vmatpush.msra.mxu0 0.0
      %3190 = vmatpush.msra.mxu0 0.0
      %3191 = vmatpush.msra.mxu0 0.0
      %3192 = vmatpush.msra.mxu0 0.0
      %3193 = vmatpush.msra.mxu0 0.0
      %3194 = vmatpush.msra.mxu0 0.0
      %3195 = vmatpush.msra.mxu0 0.0
      %3196 = vmatpush.msra.mxu0 0.0
      %3197 = vmatpush.msra.mxu0 0.0
      %3198 = vmatpush.msra.mxu0 0.0
      %3199 = vmatpush.msra.mxu0 0.0
      %3200 = vmatpush.msra.mxu0 %v3167
      %3201 = vmatpush.msra.mxu0 %v3165
      %3202 = vmatpush.msra.mxu0 %v3163
      %3203 = vmatpush.msra.mxu0 %v3161
      %3204 = vmatmul.f32.gmra.mxu0 %v3172
      %v3205 = vpop.f32.mrf.mxu0
      %v3206 = vadd.f32 0.0, %v3205
      %3207 = vmatmul.f32.gmra.mxu0 %v3174
      %v3208 = vpop.f32.mrf.mxu0
      %v3209 = vadd.f32 0.0, %v3208
      %3210 = vmatmul.f32.gmra.mxu0 %v3176
      %v3211 = vpop.f32.mrf.mxu0
      %v3212 = vadd.f32 0.0, %v3211
      %3213 = vmatmul.f32.gmra.mxu0 %v3178
      %v3214 = vpop.f32.mrf.mxu0
      %v3215 = vadd.f32 0.0, %v3214
      %3216 = vmatmul.f32.gmra.mxu0 %v3180
      %v3217 = vpop.f32.mrf.mxu0
      %v3218 = vadd.f32 0.0, %v3217
      %3219 = vmatmul.f32.gmra.mxu0 %v3182
      %v3220 = vpop.f32.mrf.mxu0
      %v3221 = vadd.f32 0.0, %v3220
      %3222 = vmatmul.f32.gmra.mxu0 %v3184
      %v3223 = vpop.f32.mrf.mxu0
      %v3224 = vadd.f32 0.0, %v3223
      %3225 = vmatmul.f32.gmra.mxu0 %v3186
      %v3226 = vpop.f32.mrf.mxu0
      %v3227 = vadd.f32 0.0, %v3226
      %3228 = vdwg.mxu0
      %v3229 = vadd.f32 %v3136, %v3206
      %v3230 = vadd.f32 %v3137, %v3209
      %v3231 = vadd.f32 %v3138, %v3212
      %v3232 = vadd.f32 %v3139, %v3215
      %v3233 = vadd.f32 %v3140, %v3218
      %v3234 = vadd.f32 %v3141, %v3221
      %v3235 = vadd.f32 %v3142, %v3224
      %v3236 = vadd.f32 %v3143, %v3227
      %3237 = vrot.lane.b32.xlu0 %v1962, 64
      %v3238 = vpop.permute.xlu0 %3237
      %3239 = vrot.lane.b32.xlu0 %v1966, 64
      %v3240 = vpop.permute.xlu0 %3239
      %3241 = vrot.lane.b32.xlu0 %v1970, 64
      %v3242 = vpop.permute.xlu0 %3241
      %3243 = vrot.lane.b32.xlu0 %v1974, 64
      %v3244 = vpop.permute.xlu0 %3243
      %3245 = vrot.lane.b32.xlu0 %v1978, 64
      %v3246 = vpop.permute.xlu0 %3245
      %3247 = vrot.lane.b32.xlu0 %v1982, 64
      %v3248 = vpop.permute.xlu0 %3247
      %3249 = vrot.lane.b32.xlu0 %v1986, 64
      %v3250 = vpop.permute.xlu0 %3249
      %3251 = vrot.lane.b32.xlu0 %v1990, 64
      %v3252 = vpop.permute.xlu0 %3251
      %3253 = vrot.lane.b32.xlu0 %v1948, 108
      %v3254 = vpop.permute.xlu0 %3253
      %3255 = vrot.lane.b32.xlu0 %v1951, 108
      %v3256 = vpop.permute.xlu0 %3255
      %3257 = vrot.lane.b32.xlu0 %v1954, 108
      %v3258 = vpop.permute.xlu0 %3257
      %3259 = vrot.lane.b32.xlu0 %v1957, 108
      %v3260 = vpop.permute.xlu0 %3259
      %v3265 = vsel %vm1302, %v3238, 0
      %v3267 = vsel %vm1302, %v3240, 0
      %v3269 = vsel %vm1302, %v3242, 0
      %v3271 = vsel %vm1302, %v3244, 0
      %v3273 = vsel %vm1302, %v3246, 0
      %v3275 = vsel %vm1302, %v3248, 0
      %v3277 = vsel %vm1302, %v3250, 0
      %v3279 = vsel %vm1302, %v3252, 0
      %3281 = vmatpush.msra.mxu0 0.0
      %3282 = vmatpush.msra.mxu0 0.0
      %3283 = vmatpush.msra.mxu0 0.0
      %3284 = vmatpush.msra.mxu0 0.0
      %3285 = vmatpush.msra.mxu0 0.0
      %3286 = vmatpush.msra.mxu0 0.0
      %3287 = vmatpush.msra.mxu0 0.0
      %3288 = vmatpush.msra.mxu0 0.0
      %3289 = vmatpush.msra.mxu0 0.0
      %3290 = vmatpush.msra.mxu0 0.0
      %3291 = vmatpush.msra.mxu0 0.0
      %3292 = vmatpush.msra.mxu0 0.0
      %3293 = vmatpush.msra.mxu0 %v3260
      %3294 = vmatpush.msra.mxu0 %v3258
      %3295 = vmatpush.msra.mxu0 %v3256
      %3296 = vmatpush.msra.mxu0 %v3254
      %3297 = vmatmul.f32.gmra.mxu0 %v3265
      %v3298 = vpop.f32.mrf.mxu0
      %v3299 = vadd.f32 0.0, %v3298
      %3300 = vmatmul.f32.gmra.mxu0 %v3267
      %v3301 = vpop.f32.mrf.mxu0
      %v3302 = vadd.f32 0.0, %v3301
      %3303 = vmatmul.f32.gmra.mxu0 %v3269
      %v3304 = vpop.f32.mrf.mxu0
      %v3305 = vadd.f32 0.0, %v3304
      %3306 = vmatmul.f32.gmra.mxu0 %v3271
      %v3307 = vpop.f32.mrf.mxu0
      %v3308 = vadd.f32 0.0, %v3307
      %3309 = vmatmul.f32.gmra.mxu0 %v3273
      %v3310 = vpop.f32.mrf.mxu0
      %v3311 = vadd.f32 0.0, %v3310
      %3312 = vmatmul.f32.gmra.mxu0 %v3275
      %v3313 = vpop.f32.mrf.mxu0
      %v3314 = vadd.f32 0.0, %v3313
      %3315 = vmatmul.f32.gmra.mxu0 %v3277
      %v3316 = vpop.f32.mrf.mxu0
      %v3317 = vadd.f32 0.0, %v3316
      %3318 = vmatmul.f32.gmra.mxu0 %v3279
      %v3319 = vpop.f32.mrf.mxu0
      %v3320 = vadd.f32 0.0, %v3319
      %3321 = vdwg.mxu0
      %v3322 = vadd.f32 %v3229, %v3299
      %v3323 = vadd.f32 %v3230, %v3302
      %v3324 = vadd.f32 %v3231, %v3305
      %v3325 = vadd.f32 %v3232, %v3308
      %v3326 = vadd.f32 %v3233, %v3311
      %v3327 = vadd.f32 %v3234, %v3314
      %v3328 = vadd.f32 %v3235, %v3317
      %v3329 = vadd.f32 %v3236, %v3320
      %3330 = vrot.lane.b32.xlu0 %v1962, 32
      %v3331 = vpop.permute.xlu0 %3330
      %3332 = vrot.lane.b32.xlu0 %v1966, 32
      %v3333 = vpop.permute.xlu0 %3332
      %3334 = vrot.lane.b32.xlu0 %v1970, 32
      %v3335 = vpop.permute.xlu0 %3334
      %3336 = vrot.lane.b32.xlu0 %v1974, 32
      %v3337 = vpop.permute.xlu0 %3336
      %3338 = vrot.lane.b32.xlu0 %v1978, 32
      %v3339 = vpop.permute.xlu0 %3338
      %3340 = vrot.lane.b32.xlu0 %v1982, 32
      %v3341 = vpop.permute.xlu0 %3340
      %3342 = vrot.lane.b32.xlu0 %v1986, 32
      %v3343 = vpop.permute.xlu0 %3342
      %3344 = vrot.lane.b32.xlu0 %v1990, 32
      %v3345 = vpop.permute.xlu0 %3344
      %3346 = vrot.lane.b32.xlu0 %v1948, 107
      %v3347 = vpop.permute.xlu0 %3346
      %3348 = vrot.lane.b32.xlu0 %v1951, 107
      %v3349 = vpop.permute.xlu0 %3348
      %3350 = vrot.lane.b32.xlu0 %v1954, 107
      %v3351 = vpop.permute.xlu0 %3350
      %3352 = vrot.lane.b32.xlu0 %v1957, 107
      %v3353 = vpop.permute.xlu0 %3352
      %v3358 = vsel %vm1302, %v3331, 0
      %v3360 = vsel %vm1302, %v3333, 0
      %v3362 = vsel %vm1302, %v3335, 0
      %v3364 = vsel %vm1302, %v3337, 0
      %v3366 = vsel %vm1302, %v3339, 0
      %v3368 = vsel %vm1302, %v3341, 0
      %v3370 = vsel %vm1302, %v3343, 0
      %v3372 = vsel %vm1302, %v3345, 0
      %3374 = vmatpush.msra.mxu0 0.0
      %3375 = vmatpush.msra.mxu0 0.0
      %3376 = vmatpush.msra.mxu0 0.0
      %3377 = vmatpush.msra.mxu0 0.0
      %3378 = vmatpush.msra.mxu0 0.0
      %3379 = vmatpush.msra.mxu0 0.0
      %3380 = vmatpush.msra.mxu0 0.0
      %3381 = vmatpush.msra.mxu0 0.0
      %3382 = vmatpush.msra.mxu0 0.0
      %3383 = vmatpush.msra.mxu0 0.0
      %3384 = vmatpush.msra.mxu0 0.0
      %3385 = vmatpush.msra.mxu0 0.0
      %3386 = vmatpush.msra.mxu0 %v3353
      %3387 = vmatpush.msra.mxu0 %v3351
      %3388 = vmatpush.msra.mxu0 %v3349
      %3389 = vmatpush.msra.mxu0 %v3347
      %3390 = vmatmul.f32.gmra.mxu0 %v3358
      %v3391 = vpop.f32.mrf.mxu0
      %v3392 = vadd.f32 0.0, %v3391
      %3393 = vmatmul.f32.gmra.mxu0 %v3360
      %v3394 = vpop.f32.mrf.mxu0
      %v3395 = vadd.f32 0.0, %v3394
      %3396 = vmatmul.f32.gmra.mxu0 %v3362
      %v3397 = vpop.f32.mrf.mxu0
      %v3398 = vadd.f32 0.0, %v3397
      %3399 = vmatmul.f32.gmra.mxu0 %v3364
      %v3400 = vpop.f32.mrf.mxu0
      %v3401 = vadd.f32 0.0, %v3400
      %3402 = vmatmul.f32.gmra.mxu0 %v3366
      %v3403 = vpop.f32.mrf.mxu0
      %v3404 = vadd.f32 0.0, %v3403
      %3405 = vmatmul.f32.gmra.mxu0 %v3368
      %v3406 = vpop.f32.mrf.mxu0
      %v3407 = vadd.f32 0.0, %v3406
      %3408 = vmatmul.f32.gmra.mxu0 %v3370
      %v3409 = vpop.f32.mrf.mxu0
      %v3410 = vadd.f32 0.0, %v3409
      %3411 = vmatmul.f32.gmra.mxu0 %v3372
      %v3412 = vpop.f32.mrf.mxu0
      %v3413 = vadd.f32 0.0, %v3412
      %3414 = vdwg.mxu0
      %v3415 = vadd.f32 %v3322, %v3392
      %v3416 = vadd.f32 %v3323, %v3395
      %v3417 = vadd.f32 %v3324, %v3398
      %v3418 = vadd.f32 %v3325, %v3401
      %v3419 = vadd.f32 %v3326, %v3404
      %v3420 = vadd.f32 %v3327, %v3407
      %v3421 = vadd.f32 %v3328, %v3410
      %v3422 = vadd.f32 %v3329, %v3413
      %v3423 = vld [vmem:[%s11] sm:$0xff]
      %v3424 = vld [vmem:[%s11 + $0x8] sm:$0xff]
      %v3425 = vld [vmem:[%s11 + $0x10] sm:$0xff]
      %v3426 = vld [vmem:[%s11 + $0x18] sm:$0xff]
      %v3427 = vld [vmem:[%s11 + $0x20] sm:$0xff]
      %v3428 = vld [vmem:[%s11 + $0x28] sm:$0xff]
      %v3429 = vld [vmem:[%s11 + $0x30] sm:$0xff]
      %v3430 = vld [vmem:[%s11 + $0x38] sm:$0xff]
      %3432 = vset.pattern.permute.xlu0 0
      %3433 = vperm.xlu0 %3432, %v3423
      %v3434 = vpop.permute.xlu0 %3433
      %3437 = vset.pattern.permute.xlu0 0
      %3438 = vperm.xlu0 %3437, %v3424
      %v3439 = vpop.permute.xlu0 %3438
      %3442 = vset.pattern.permute.xlu0 0
      %3443 = vperm.xlu0 %3442, %v3425
      %v3444 = vpop.permute.xlu0 %3443
      %3447 = vset.pattern.permute.xlu0 0
      %3448 = vperm.xlu0 %3447, %v3426
      %v3449 = vpop.permute.xlu0 %3448
      %3452 = vset.pattern.permute.xlu0 0
      %3453 = vperm.xlu0 %3452, %v3427
      %v3454 = vpop.permute.xlu0 %3453
      %3457 = vset.pattern.permute.xlu0 0
      %3458 = vperm.xlu0 %3457, %v3428
      %v3459 = vpop.permute.xlu0 %3458
      %3462 = vset.pattern.permute.xlu0 0
      %3463 = vperm.xlu0 %3462, %v3429
      %v3464 = vpop.permute.xlu0 %3463
      %3467 = vset.pattern.permute.xlu0 0
      %3468 = vperm.xlu0 %3467, %v3430
      %v3469 = vpop.permute.xlu0 %3468
      %v3471 = vadd.f32 %v3415, %v3434
      %v3472 = vadd.f32 %v3416, %v3439
      %v3473 = vadd.f32 %v3417, %v3444
      %v3474 = vadd.f32 %v3418, %v3449
      %v3475 = vadd.f32 %v3419, %v3454
      %v3476 = vadd.f32 %v3420, %v3459
      %v3477 = vadd.f32 %v3421, %v3464
      %v3478 = vadd.f32 %v3422, %v3469
      %vm3479 = vcmp.gt.f32.partialorder %v3471, 0.0
      %vm3480 = vcmp.gt.f32.partialorder %v3472, 0.0
      %vm3481 = vcmp.gt.f32.partialorder %v3473, 0.0
      %vm3482 = vcmp.gt.f32.partialorder %v3474, 0.0
      %vm3483 = vcmp.gt.f32.partialorder %v3475, 0.0
      %vm3484 = vcmp.gt.f32.partialorder %v3476, 0.0
      %vm3485 = vcmp.gt.f32.partialorder %v3477, 0.0
      %vm3486 = vcmp.gt.f32.partialorder %v3478, 0.0
      %v3487 = vmul.f32 %v3471, 0.2
      %v3488 = vmul.f32 %v3472, 0.2
      %v3489 = vmul.f32 %v3473, 0.2
      %v3490 = vmul.f32 %v3474, 0.2
      %v3491 = vmul.f32 %v3475, 0.2
      %v3492 = vmul.f32 %v3476, 0.2
      %v3493 = vmul.f32 %v3477, 0.2
      %v3494 = vmul.f32 %v3478, 0.2
      %v3495 = vsel %vm3479, %v3471, %v3487
      %v3496 = vsel %vm3480, %v3472, %v3488
      %v3497 = vsel %vm3481, %v3473, %v3489
      %v3498 = vsel %vm3482, %v3474, %v3490
      %v3499 = vsel %vm3483, %v3475, %v3491
      %v3500 = vsel %vm3484, %v3476, %v3492
      %v3501 = vsel %vm3485, %v3477, %v3493
      %v3502 = vsel %vm3486, %v3478, %v3494
      %v3503 = vld [vmem:[%s12] sm:$0xff]
      %v3504 = vld [vmem:[%s12 + $0x8] sm:$0xff]
      %v3505 = vld [vmem:[%s12 + $0x10] sm:$0x3]
      %vm3506 = vcmask 146432
      %v3508 = vsel %vm3506, %v3495, 0
      %v3511 = vsel %vm3506, %v3496, 0
      %v3514 = vsel %vm3506, %v3497, 0
      %v3517 = vsel %vm3506, %v3498, 0
      %v3520 = vsel %vm3506, %v3499, 0
      %v3523 = vsel %vm3506, %v3500, 0
      %v3526 = vsel %vm3506, %v3501, 0
      %v3529 = vsel %vm3506, %v3502, 0
      %vm3531 = vcmask 1041408
      %v3533 = vsel %vm3531, %v3505, 0
      %3535 = vmatpush.msra.mxu0 0.0
      %3536 = vmatpush.msra.mxu0 0.0
      %3537 = vmatpush.msra.mxu0 0.0
      %3538 = vmatpush.msra.mxu0 0.0
      %3539 = vmatpush.msra.mxu0 0.0
      %3540 = vmatpush.msra.mxu0 0.0
      %3541 = vmatpush.msra.mxu0 0.0
      %3542 = vmatpush.msra.mxu0 0.0
      %3543 = vmatpush.msra.mxu0 0.0
      %3544 = vmatpush.msra.mxu0 0.0
      %3545 = vmatpush.msra.mxu0 0.0
      %3546 = vmatpush.msra.mxu0 0.0
      %3547 = vmatpush.msra.mxu0 0.0
      %3548 = vmatpush.msra.mxu0 %v3533
      %3549 = vmatpush.msra.mxu0 %v3504
      %3550 = vmatpush.msra.mxu0 %v3503
      %3551 = vmatmul.f32.gmra.mxu0 %v3508
      %v3552 = vpop.f32.mrf.mxu0
      %v3553 = vadd.f32 0.0, %v3552
      %3554 = vmatmul.f32.gmra.mxu0 %v3511
      %v3555 = vpop.f32.mrf.mxu0
      %v3556 = vadd.f32 0.0, %v3555
      %3557 = vmatmul.f32.gmra.mxu0 %v3514
      %v3558 = vpop.f32.mrf.mxu0
      %v3559 = vadd.f32 0.0, %v3558
      %3560 = vmatmul.f32.gmra.mxu0 %v3517
      %v3561 = vpop.f32.mrf.mxu0
      %v3562 = vadd.f32 0.0, %v3561
      %3563 = vmatmul.f32.gmra.mxu0 %v3520
      %v3564 = vpop.f32.mrf.mxu0
      %v3565 = vadd.f32 0.0, %v3564
      %3566 = vmatmul.f32.gmra.mxu0 %v3523
      %v3567 = vpop.f32.mrf.mxu0
      %v3568 = vadd.f32 0.0, %v3567
      %3569 = vmatmul.f32.gmra.mxu0 %v3526
      %v3570 = vpop.f32.mrf.mxu0
      %v3571 = vadd.f32 0.0, %v3570
      %3572 = vmatmul.f32.gmra.mxu0 %v3529
      %v3573 = vpop.f32.mrf.mxu0
      %v3574 = vadd.f32 0.0, %v3573
      %3575 = vdwg.mxu0
      %v3576 = vld [vmem:[%s13] sm:$0xff]
      %v3578 = vperm.slane %v3576, 0
      %3579 = vrot.lane.b32.xlu0 %v3578, 64
      %v3580 = vpop.permute.xlu0 %3579
      %3589 = vrot.lane.b32.xlu0 %v3553, 127
      %v3590 = vpop.permute.xlu0 %3589
      %3591 = vrot.lane.b32.xlu0 %v3556, 127
      %v3592 = vpop.permute.xlu0 %3591
      %3593 = vrot.lane.b32.xlu0 %v3559, 127
      %v3594 = vpop.permute.xlu0 %3593
      %3595 = vrot.lane.b32.xlu0 %v3562, 127
      %v3596 = vpop.permute.xlu0 %3595
      %3597 = vrot.lane.b32.xlu0 %v3565, 127
      %v3598 = vpop.permute.xlu0 %3597
      %3599 = vrot.lane.b32.xlu0 %v3568, 127
      %v3600 = vpop.permute.xlu0 %3599
      %3601 = vrot.lane.b32.xlu0 %v3571, 127
      %v3602 = vpop.permute.xlu0 %3601
      %3603 = vrot.lane.b32.xlu0 %v3574, 127
      %v3604 = vpop.permute.xlu0 %3603
      %v3613 = vsel %vm1654, %v3580, 0
      %3615 = vmatpush.msra.mxu0 0.0
      %3616 = vmatpush.msra.mxu0 0.0
      %3617 = vmatpush.msra.mxu0 0.0
      %3618 = vmatpush.msra.mxu0 0.0
      %3619 = vmatpush.msra.mxu0 0.0
      %3620 = vmatpush.msra.mxu0 0.0
      %3621 = vmatpush.msra.mxu0 0.0
      %3622 = vmatpush.msra.mxu0 0.0
      %3623 = vmatpush.msra.mxu0 %v3604
      %3624 = vmatpush.msra.mxu0 %v3602
      %3625 = vmatpush.msra.mxu0 %v3600
      %3626 = vmatpush.msra.mxu0 %v3598
      %3627 = vmatpush.msra.mxu0 %v3596
      %3628 = vmatpush.msra.mxu0 %v3594
      %3629 = vmatpush.msra.mxu0 %v3592
      %3630 = vmatpush.msra.mxu0 %v3590
      %3631 = vmatmul.f32.gmra.mxu0 %v3613
      %v3632 = vpop.f32.mrf.mxu0
      %v3633 = vadd.f32 0.0, %v3632
      %3634 = vdwg.mxu0
      %v3635 = vsel %vm1654, %v3576, 0
      %3637 = vmatpush.msra.mxu0 0.0
      %3638 = vmatpush.msra.mxu0 0.0
      %3639 = vmatpush.msra.mxu0 0.0
      %3640 = vmatpush.msra.mxu0 0.0
      %3641 = vmatpush.msra.mxu0 0.0
      %3642 = vmatpush.msra.mxu0 0.0
      %3643 = vmatpush.msra.mxu0 0.0
      %3644 = vmatpush.msra.mxu0 0.0
      %3645 = vmatpush.msra.mxu0 %v3574
      %3646 = vmatpush.msra.mxu0 %v3571
      %3647 = vmatpush.msra.mxu0 %v3568
      %3648 = vmatpush.msra.mxu0 %v3565
      %3649 = vmatpush.msra.mxu0 %v3562
      %3650 = vmatpush.msra.mxu0 %v3559
      %3651 = vmatpush.msra.mxu0 %v3556
      %3652 = vmatpush.msra.mxu0 %v3553
      %3653 = vmatmul.f32.gmra.mxu0 %v3635
      %v3654 = vpop.f32.mrf.mxu0
      %v3655 = vadd.f32 %v3633, %v3654
      %3656 = vdwg.mxu0
      %v3657 = vperm.slane %v3576, 1
      %3658 = vrot.lane.b32.xlu0 %v3553, 126
      %v3659 = vpop.permute.xlu0 %3658
      %3660 = vrot.lane.b32.xlu0 %v3556, 126
      %v3661 = vpop.permute.xlu0 %3660
      %3662 = vrot.lane.b32.xlu0 %v3559, 126
      %v3663 = vpop.permute.xlu0 %3662
      %3664 = vrot.lane.b32.xlu0 %v3562, 126
      %v3665 = vpop.permute.xlu0 %3664
      %3666 = vrot.lane.b32.xlu0 %v3565, 126
      %v3667 = vpop.permute.xlu0 %3666
      %3668 = vrot.lane.b32.xlu0 %v3568, 126
      %v3669 = vpop.permute.xlu0 %3668
      %3670 = vrot.lane.b32.xlu0 %v3571, 126
      %v3671 = vpop.permute.xlu0 %3670
      %3672 = vrot.lane.b32.xlu0 %v3574, 126
      %v3673 = vpop.permute.xlu0 %3672
      %v3682 = vsel %vm1654, %v3657, 0
      %3684 = vmatpush.msra.mxu0 0.0
      %3685 = vmatpush.msra.mxu0 0.0
      %3686 = vmatpush.msra.mxu0 0.0
      %3687 = vmatpush.msra.mxu0 0.0
      %3688 = vmatpush.msra.mxu0 0.0
      %3689 = vmatpush.msra.mxu0 0.0
      %3690 = vmatpush.msra.mxu0 0.0
      %3691 = vmatpush.msra.mxu0 0.0
      %3692 = vmatpush.msra.mxu0 %v3673
      %3693 = vmatpush.msra.mxu0 %v3671
      %3694 = vmatpush.msra.mxu0 %v3669
      %3695 = vmatpush.msra.mxu0 %v3667
      %3696 = vmatpush.msra.mxu0 %v3665
      %3697 = vmatpush.msra.mxu0 %v3663
      %3698 = vmatpush.msra.mxu0 %v3661
      %3699 = vmatpush.msra.mxu0 %v3659
      %3700 = vmatmul.f32.gmra.mxu0 %v3682
      %v3701 = vpop.f32.mrf.mxu0
      %v3702 = vadd.f32 0.0, %v3701
      %3703 = vdwg.mxu0
      %v3704 = vadd.f32 %v3655, %v3702
      %3705 = vrot.lane.b32.xlu0 %v3657, 64
      %v3706 = vpop.permute.xlu0 %3705
      %3707 = vrot.lane.b32.xlu0 %v3553, 125
      %v3708 = vpop.permute.xlu0 %3707
      %3709 = vrot.lane.b32.xlu0 %v3556, 125
      %v3710 = vpop.permute.xlu0 %3709
      %3711 = vrot.lane.b32.xlu0 %v3559, 125
      %v3712 = vpop.permute.xlu0 %3711
      %3713 = vrot.lane.b32.xlu0 %v3562, 125
      %v3714 = vpop.permute.xlu0 %3713
      %3715 = vrot.lane.b32.xlu0 %v3565, 125
      %v3716 = vpop.permute.xlu0 %3715
      %3717 = vrot.lane.b32.xlu0 %v3568, 125
      %v3718 = vpop.permute.xlu0 %3717
      %3719 = vrot.lane.b32.xlu0 %v3571, 125
      %v3720 = vpop.permute.xlu0 %3719
      %3721 = vrot.lane.b32.xlu0 %v3574, 125
      %v3722 = vpop.permute.xlu0 %3721
      %v3731 = vsel %vm1654, %v3706, 0
      %3733 = vmatpush.msra.mxu0 0.0
      %3734 = vmatpush.msra.mxu0 0.0
      %3735 = vmatpush.msra.mxu0 0.0
      %3736 = vmatpush.msra.mxu0 0.0
      %3737 = vmatpush.msra.mxu0 0.0
      %3738 = vmatpush.msra.mxu0 0.0
      %3739 = vmatpush.msra.mxu0 0.0
      %3740 = vmatpush.msra.mxu0 0.0
      %3741 = vmatpush.msra.mxu0 %v3722
      %3742 = vmatpush.msra.mxu0 %v3720
      %3743 = vmatpush.msra.mxu0 %v3718
      %3744 = vmatpush.msra.mxu0 %v3716
      %3745 = vmatpush.msra.mxu0 %v3714
      %3746 = vmatpush.msra.mxu0 %v3712
      %3747 = vmatpush.msra.mxu0 %v3710
      %3748 = vmatpush.msra.mxu0 %v3708
      %3749 = vmatmul.f32.gmra.mxu0 %v3731
      %v3750 = vpop.f32.mrf.mxu0
      %v3751 = vadd.f32 0.0, %v3750
      %3752 = vdwg.mxu0
      %v3753 = vadd.f32 %v3704, %v3751
      %v3754 = vperm.slane %v3576, 2
      %3755 = vrot.lane.b32.xlu0 %v3553, 123
      %v3756 = vpop.permute.xlu0 %3755
      %3757 = vrot.lane.b32.xlu0 %v3556, 123
      %v3758 = vpop.permute.xlu0 %3757
      %3759 = vrot.lane.b32.xlu0 %v3559, 123
      %v3760 = vpop.permute.xlu0 %3759
      %3761 = vrot.lane.b32.xlu0 %v3562, 123
      %v3762 = vpop.permute.xlu0 %3761
      %3763 = vrot.lane.b32.xlu0 %v3565, 123
      %v3764 = vpop.permute.xlu0 %3763
      %3765 = vrot.lane.b32.xlu0 %v3568, 123
      %v3766 = vpop.permute.xlu0 %3765
      %3767 = vrot.lane.b32.xlu0 %v3571, 123
      %v3768 = vpop.permute.xlu0 %3767
      %3769 = vrot.lane.b32.xlu0 %v3574, 123
      %v3770 = vpop.permute.xlu0 %3769
      %v3779 = vsel %vm1654, %v3754, 0
      %3781 = vmatpush.msra.mxu0 0.0
      %3782 = vmatpush.msra.mxu0 0.0
      %3783 = vmatpush.msra.mxu0 0.0
      %3784 = vmatpush.msra.mxu0 0.0
      %3785 = vmatpush.msra.mxu0 0.0
      %3786 = vmatpush.msra.mxu0 0.0
      %3787 = vmatpush.msra.mxu0 0.0
      %3788 = vmatpush.msra.mxu0 0.0
      %3789 = vmatpush.msra.mxu0 %v3770
      %3790 = vmatpush.msra.mxu0 %v3768
      %3791 = vmatpush.msra.mxu0 %v3766
      %3792 = vmatpush.msra.mxu0 %v3764
      %3793 = vmatpush.msra.mxu0 %v3762
      %3794 = vmatpush.msra.mxu0 %v3760
      %3795 = vmatpush.msra.mxu0 %v3758
      %3796 = vmatpush.msra.mxu0 %v3756
      %3797 = vmatmul.f32.gmra.mxu0 %v3779
      %v3798 = vpop.f32.mrf.mxu0
      %v3799 = vadd.f32 0.0, %v3798
      %3800 = vdwg.mxu0
      %v3801 = vadd.f32 %v3753, %v3799
      %3802 = vrot.lane.b32.xlu0 %v3754, 64
      %v3803 = vpop.permute.xlu0 %3802
      %3804 = vrot.lane.b32.xlu0 %v3553, 122
      %v3805 = vpop.permute.xlu0 %3804
      %3806 = vrot.lane.b32.xlu0 %v3556, 122
      %v3807 = vpop.permute.xlu0 %3806
      %3808 = vrot.lane.b32.xlu0 %v3559, 122
      %v3809 = vpop.permute.xlu0 %3808
      %3810 = vrot.lane.b32.xlu0 %v3562, 122
      %v3811 = vpop.permute.xlu0 %3810
      %3812 = vrot.lane.b32.xlu0 %v3565, 122
      %v3813 = vpop.permute.xlu0 %3812
      %3814 = vrot.lane.b32.xlu0 %v3568, 122
      %v3815 = vpop.permute.xlu0 %3814
      %3816 = vrot.lane.b32.xlu0 %v3571, 122
      %v3817 = vpop.permute.xlu0 %3816
      %3818 = vrot.lane.b32.xlu0 %v3574, 122
      %v3819 = vpop.permute.xlu0 %3818
      %v3828 = vsel %vm1654, %v3803, 0
      %3830 = vmatpush.msra.mxu0 0.0
      %3831 = vmatpush.msra.mxu0 0.0
      %3832 = vmatpush.msra.mxu0 0.0
      %3833 = vmatpush.msra.mxu0 0.0
      %3834 = vmatpush.msra.mxu0 0.0
      %3835 = vmatpush.msra.mxu0 0.0
      %3836 = vmatpush.msra.mxu0 0.0
      %3837 = vmatpush.msra.mxu0 0.0
      %3838 = vmatpush.msra.mxu0 %v3819
      %3839 = vmatpush.msra.mxu0 %v3817
      %3840 = vmatpush.msra.mxu0 %v3815
      %3841 = vmatpush.msra.mxu0 %v3813
      %3842 = vmatpush.msra.mxu0 %v3811
      %3843 = vmatpush.msra.mxu0 %v3809
      %3844 = vmatpush.msra.mxu0 %v3807
      %3845 = vmatpush.msra.mxu0 %v3805
      %3846 = vmatmul.f32.gmra.mxu0 %v3828
      %v3847 = vpop.f32.mrf.mxu0
      %v3848 = vadd.f32 0.0, %v3847
      %3849 = vdwg.mxu0
      %v3850 = vadd.f32 %v3801, %v3848
      %v3851 = vperm.slane %v3576, 3
      %3852 = vrot.lane.b32.xlu0 %v3553, 121
      %v3853 = vpop.permute.xlu0 %3852
      %3854 = vrot.lane.b32.xlu0 %v3556, 121
      %v3855 = vpop.permute.xlu0 %3854
      %3856 = vrot.lane.b32.xlu0 %v3559, 121
      %v3857 = vpop.permute.xlu0 %3856
      %3858 = vrot.lane.b32.xlu0 %v3562, 121
      %v3859 = vpop.permute.xlu0 %3858
      %3860 = vrot.lane.b32.xlu0 %v3565, 121
      %v3861 = vpop.permute.xlu0 %3860
      %3862 = vrot.lane.b32.xlu0 %v3568, 121
      %v3863 = vpop.permute.xlu0 %3862
      %3864 = vrot.lane.b32.xlu0 %v3571, 121
      %v3865 = vpop.permute.xlu0 %3864
      %3866 = vrot.lane.b32.xlu0 %v3574, 121
      %v3867 = vpop.permute.xlu0 %3866
      %v3876 = vsel %vm1654, %v3851, 0
      %3878 = vmatpush.msra.mxu0 0.0
      %3879 = vmatpush.msra.mxu0 0.0
      %3880 = vmatpush.msra.mxu0 0.0
      %3881 = vmatpush.msra.mxu0 0.0
      %3882 = vmatpush.msra.mxu0 0.0
      %3883 = vmatpush.msra.mxu0 0.0
      %3884 = vmatpush.msra.mxu0 0.0
      %3885 = vmatpush.msra.mxu0 0.0
      %3886 = vmatpush.msra.mxu0 %v3867
      %3887 = vmatpush.msra.mxu0 %v3865
      %3888 = vmatpush.msra.mxu0 %v3863
      %3889 = vmatpush.msra.mxu0 %v3861
      %3890 = vmatpush.msra.mxu0 %v3859
      %3891 = vmatpush.msra.mxu0 %v3857
      %3892 = vmatpush.msra.mxu0 %v3855
      %3893 = vmatpush.msra.mxu0 %v3853
      %3894 = vmatmul.f32.gmra.mxu0 %v3876
      %v3895 = vpop.f32.mrf.mxu0
      %v3896 = vadd.f32 0.0, %v3895
      %3897 = vdwg.mxu0
      %v3898 = vadd.f32 %v3850, %v3896
      %3899 = vrot.lane.b32.xlu0 %v3851, 64
      %v3900 = vpop.permute.xlu0 %3899
      %3901 = vrot.lane.b32.xlu0 %v3553, 120
      %v3902 = vpop.permute.xlu0 %3901
      %3903 = vrot.lane.b32.xlu0 %v3556, 120
      %v3904 = vpop.permute.xlu0 %3903
      %3905 = vrot.lane.b32.xlu0 %v3559, 120
      %v3906 = vpop.permute.xlu0 %3905
      %3907 = vrot.lane.b32.xlu0 %v3562, 120
      %v3908 = vpop.permute.xlu0 %3907
      %3909 = vrot.lane.b32.xlu0 %v3565, 120
      %v3910 = vpop.permute.xlu0 %3909
      %3911 = vrot.lane.b32.xlu0 %v3568, 120
      %v3912 = vpop.permute.xlu0 %3911
      %3913 = vrot.lane.b32.xlu0 %v3571, 120
      %v3914 = vpop.permute.xlu0 %3913
      %3915 = vrot.lane.b32.xlu0 %v3574, 120
      %v3916 = vpop.permute.xlu0 %3915
      %v3925 = vsel %vm1654, %v3900, 0
      %3927 = vmatpush.msra.mxu0 0.0
      %3928 = vmatpush.msra.mxu0 0.0
      %3929 = vmatpush.msra.mxu0 0.0
      %3930 = vmatpush.msra.mxu0 0.0
      %3931 = vmatpush.msra.mxu0 0.0
      %3932 = vmatpush.msra.mxu0 0.0
      %3933 = vmatpush.msra.mxu0 0.0
      %3934 = vmatpush.msra.mxu0 0.0
      %3935 = vmatpush.msra.mxu0 %v3916
      %3936 = vmatpush.msra.mxu0 %v3914
      %3937 = vmatpush.msra.mxu0 %v3912
      %3938 = vmatpush.msra.mxu0 %v3910
      %3939 = vmatpush.msra.mxu0 %v3908
      %3940 = vmatpush.msra.mxu0 %v3906
      %3941 = vmatpush.msra.mxu0 %v3904
      %3942 = vmatpush.msra.mxu0 %v3902
      %3943 = vmatmul.f32.gmra.mxu0 %v3925
      %v3944 = vpop.f32.mrf.mxu0
      %v3945 = vadd.f32 0.0, %v3944
      %3946 = vdwg.mxu0
      %v3947 = vadd.f32 %v3898, %v3945
      %v3948 = vperm.slane %v3576, 4
      %3949 = vrot.lane.b32.xlu0 %v3553, 118
      %v3950 = vpop.permute.xlu0 %3949
      %3951 = vrot.lane.b32.xlu0 %v3556, 118
      %v3952 = vpop.permute.xlu0 %3951
      %3953 = vrot.lane.b32.xlu0 %v3559, 118
      %v3954 = vpop.permute.xlu0 %3953
      %3955 = vrot.lane.b32.xlu0 %v3562, 118
      %v3956 = vpop.permute.xlu0 %3955
      %3957 = vrot.lane.b32.xlu0 %v3565, 118
      %v3958 = vpop.permute.xlu0 %3957
      %3959 = vrot.lane.b32.xlu0 %v3568, 118
      %v3960 = vpop.permute.xlu0 %3959
      %3961 = vrot.lane.b32.xlu0 %v3571, 118
      %v3962 = vpop.permute.xlu0 %3961
      %3963 = vrot.lane.b32.xlu0 %v3574, 118
      %v3964 = vpop.permute.xlu0 %3963
      %v3973 = vsel %vm1654, %v3948, 0
      %3975 = vmatpush.msra.mxu0 0.0
      %3976 = vmatpush.msra.mxu0 0.0
      %3977 = vmatpush.msra.mxu0 0.0
      %3978 = vmatpush.msra.mxu0 0.0
      %3979 = vmatpush.msra.mxu0 0.0
      %3980 = vmatpush.msra.mxu0 0.0
      %3981 = vmatpush.msra.mxu0 0.0
      %3982 = vmatpush.msra.mxu0 0.0
      %3983 = vmatpush.msra.mxu0 %v3964
      %3984 = vmatpush.msra.mxu0 %v3962
      %3985 = vmatpush.msra.mxu0 %v3960
      %3986 = vmatpush.msra.mxu0 %v3958
      %3987 = vmatpush.msra.mxu0 %v3956
      %3988 = vmatpush.msra.mxu0 %v3954
      %3989 = vmatpush.msra.mxu0 %v3952
      %3990 = vmatpush.msra.mxu0 %v3950
      %3991 = vmatmul.f32.gmra.mxu0 %v3973
      %v3992 = vpop.f32.mrf.mxu0
      %v3993 = vadd.f32 0.0, %v3992
      %3994 = vdwg.mxu0
      %v3995 = vadd.f32 %v3947, %v3993
      %3996 = vrot.lane.b32.xlu0 %v3948, 64
      %v3997 = vpop.permute.xlu0 %3996
      %3998 = vrot.lane.b32.xlu0 %v3553, 117
      %v3999 = vpop.permute.xlu0 %3998
      %4000 = vrot.lane.b32.xlu0 %v3556, 117
      %v4001 = vpop.permute.xlu0 %4000
      %4002 = vrot.lane.b32.xlu0 %v3559, 117
      %v4003 = vpop.permute.xlu0 %4002
      %4004 = vrot.lane.b32.xlu0 %v3562, 117
      %v4005 = vpop.permute.xlu0 %4004
      %4006 = vrot.lane.b32.xlu0 %v3565, 117
      %v4007 = vpop.permute.xlu0 %4006
      %4008 = vrot.lane.b32.xlu0 %v3568, 117
      %v4009 = vpop.permute.xlu0 %4008
      %4010 = vrot.lane.b32.xlu0 %v3571, 117
      %v4011 = vpop.permute.xlu0 %4010
      %4012 = vrot.lane.b32.xlu0 %v3574, 117
      %v4013 = vpop.permute.xlu0 %4012
      %v4022 = vsel %vm1654, %v3997, 0
      %4024 = vmatpush.msra.mxu0 0.0
      %4025 = vmatpush.msra.mxu0 0.0
      %4026 = vmatpush.msra.mxu0 0.0
      %4027 = vmatpush.msra.mxu0 0.0
      %4028 = vmatpush.msra.mxu0 0.0
      %4029 = vmatpush.msra.mxu0 0.0
      %4030 = vmatpush.msra.mxu0 0.0
      %4031 = vmatpush.msra.mxu0 0.0
      %4032 = vmatpush.msra.mxu0 %v4013
      %4033 = vmatpush.msra.mxu0 %v4011
      %4034 = vmatpush.msra.mxu0 %v4009
      %4035 = vmatpush.msra.mxu0 %v4007
      %4036 = vmatpush.msra.mxu0 %v4005
      %4037 = vmatpush.msra.mxu0 %v4003
      %4038 = vmatpush.msra.mxu0 %v4001
      %4039 = vmatpush.msra.mxu0 %v3999
      %4040 = vmatmul.f32.gmra.mxu0 %v4022
      %v4041 = vpop.f32.mrf.mxu0
      %v4042 = vadd.f32 0.0, %v4041
      %4043 = vdwg.mxu0
      %v4044 = vadd.f32 %v3995, %v4042
      %v4045 = vperm.slane %v3576, 5
      %4046 = vrot.lane.b32.xlu0 %v3553, 116
      %v4047 = vpop.permute.xlu0 %4046
      %4048 = vrot.lane.b32.xlu0 %v3556, 116
      %v4049 = vpop.permute.xlu0 %4048
      %4050 = vrot.lane.b32.xlu0 %v3559, 116
      %v4051 = vpop.permute.xlu0 %4050
      %4052 = vrot.lane.b32.xlu0 %v3562, 116
      %v4053 = vpop.permute.xlu0 %4052
      %4054 = vrot.lane.b32.xlu0 %v3565, 116
      %v4055 = vpop.permute.xlu0 %4054
      %4056 = vrot.lane.b32.xlu0 %v3568, 116
      %v4057 = vpop.permute.xlu0 %4056
      %4058 = vrot.lane.b32.xlu0 %v3571, 116
      %v4059 = vpop.permute.xlu0 %4058
      %4060 = vrot.lane.b32.xlu0 %v3574, 116
      %v4061 = vpop.permute.xlu0 %4060
      %v4070 = vsel %vm1654, %v4045, 0
      %4072 = vmatpush.msra.mxu0 0.0
      %4073 = vmatpush.msra.mxu0 0.0
      %4074 = vmatpush.msra.mxu0 0.0
      %4075 = vmatpush.msra.mxu0 0.0
      %4076 = vmatpush.msra.mxu0 0.0
      %4077 = vmatpush.msra.mxu0 0.0
      %4078 = vmatpush.msra.mxu0 0.0
      %4079 = vmatpush.msra.mxu0 0.0
      %4080 = vmatpush.msra.mxu0 %v4061
      %4081 = vmatpush.msra.mxu0 %v4059
      %4082 = vmatpush.msra.mxu0 %v4057
      %4083 = vmatpush.msra.mxu0 %v4055
      %4084 = vmatpush.msra.mxu0 %v4053
      %4085 = vmatpush.msra.mxu0 %v4051
      %4086 = vmatpush.msra.mxu0 %v4049
      %4087 = vmatpush.msra.mxu0 %v4047
      %4088 = vmatmul.f32.gmra.mxu0 %v4070
      %v4089 = vpop.f32.mrf.mxu0
      %v4090 = vadd.f32 0.0, %v4089
      %4091 = vdwg.mxu0
      %v4092 = vadd.f32 %v4044, %v4090
      %4093 = vrot.lane.b32.xlu0 %v4045, 64
      %v4094 = vpop.permute.xlu0 %4093
      %4095 = vrot.lane.b32.xlu0 %v3553, 115
      %v4096 = vpop.permute.xlu0 %4095
      %4097 = vrot.lane.b32.xlu0 %v3556, 115
      %v4098 = vpop.permute.xlu0 %4097
      %4099 = vrot.lane.b32.xlu0 %v3559, 115
      %v4100 = vpop.permute.xlu0 %4099
      %4101 = vrot.lane.b32.xlu0 %v3562, 115
      %v4102 = vpop.permute.xlu0 %4101
      %4103 = vrot.lane.b32.xlu0 %v3565, 115
      %v4104 = vpop.permute.xlu0 %4103
      %4105 = vrot.lane.b32.xlu0 %v3568, 115
      %v4106 = vpop.permute.xlu0 %4105
      %4107 = vrot.lane.b32.xlu0 %v3571, 115
      %v4108 = vpop.permute.xlu0 %4107
      %4109 = vrot.lane.b32.xlu0 %v3574, 115
      %v4110 = vpop.permute.xlu0 %4109
      %v4119 = vsel %vm1654, %v4094, 0
      %4121 = vmatpush.msra.mxu0 0.0
      %4122 = vmatpush.msra.mxu0 0.0
      %4123 = vmatpush.msra.mxu0 0.0
      %4124 = vmatpush.msra.mxu0 0.0
      %4125 = vmatpush.msra.mxu0 0.0
      %4126 = vmatpush.msra.mxu0 0.0
      %4127 = vmatpush.msra.mxu0 0.0
      %4128 = vmatpush.msra.mxu0 0.0
      %4129 = vmatpush.msra.mxu0 %v4110
      %4130 = vmatpush.msra.mxu0 %v4108
      %4131 = vmatpush.msra.mxu0 %v4106
      %4132 = vmatpush.msra.mxu0 %v4104
      %4133 = vmatpush.msra.mxu0 %v4102
      %4134 = vmatpush.msra.mxu0 %v4100
      %4135 = vmatpush.msra.mxu0 %v4098
      %4136 = vmatpush.msra.mxu0 %v4096
      %4137 = vmatmul.f32.gmra.mxu0 %v4119
      %v4138 = vpop.f32.mrf.mxu0
      %v4139 = vadd.f32 0.0, %v4138
      %4140 = vdwg.mxu0
      %v4141 = vadd.f32 %v4092, %v4139
      %v4142 = vperm.slane %v3576, 6
      %4143 = vrot.lane.b32.xlu0 %v3553, 113
      %v4144 = vpop.permute.xlu0 %4143
      %4145 = vrot.lane.b32.xlu0 %v3556, 113
      %v4146 = vpop.permute.xlu0 %4145
      %4147 = vrot.lane.b32.xlu0 %v3559, 113
      %v4148 = vpop.permute.xlu0 %4147
      %4149 = vrot.lane.b32.xlu0 %v3562, 113
      %v4150 = vpop.permute.xlu0 %4149
      %4151 = vrot.lane.b32.xlu0 %v3565, 113
      %v4152 = vpop.permute.xlu0 %4151
      %4153 = vrot.lane.b32.xlu0 %v3568, 113
      %v4154 = vpop.permute.xlu0 %4153
      %4155 = vrot.lane.b32.xlu0 %v3571, 113
      %v4156 = vpop.permute.xlu0 %4155
      %4157 = vrot.lane.b32.xlu0 %v3574, 113
      %v4158 = vpop.permute.xlu0 %4157
      %v4167 = vsel %vm1654, %v4142, 0
      %4169 = vmatpush.msra.mxu0 0.0
      %4170 = vmatpush.msra.mxu0 0.0
      %4171 = vmatpush.msra.mxu0 0.0
      %4172 = vmatpush.msra.mxu0 0.0
      %4173 = vmatpush.msra.mxu0 0.0
      %4174 = vmatpush.msra.mxu0 0.0
      %4175 = vmatpush.msra.mxu0 0.0
      %4176 = vmatpush.msra.mxu0 0.0
      %4177 = vmatpush.msra.mxu0 %v4158
      %4178 = vmatpush.msra.mxu0 %v4156
      %4179 = vmatpush.msra.mxu0 %v4154
      %4180 = vmatpush.msra.mxu0 %v4152
      %4181 = vmatpush.msra.mxu0 %v4150
      %4182 = vmatpush.msra.mxu0 %v4148
      %4183 = vmatpush.msra.mxu0 %v4146
      %4184 = vmatpush.msra.mxu0 %v4144
      %4185 = vmatmul.f32.gmra.mxu0 %v4167
      %v4186 = vpop.f32.mrf.mxu0
      %v4187 = vadd.f32 0.0, %v4186
      %4188 = vdwg.mxu0
      %v4189 = vadd.f32 %v4141, %v4187
      %4190 = vrot.lane.b32.xlu0 %v4142, 64
      %v4191 = vpop.permute.xlu0 %4190
      %4192 = vrot.lane.b32.xlu0 %v3553, 112
      %v4193 = vpop.permute.xlu0 %4192
      %4194 = vrot.lane.b32.xlu0 %v3556, 112
      %v4195 = vpop.permute.xlu0 %4194
      %4196 = vrot.lane.b32.xlu0 %v3559, 112
      %v4197 = vpop.permute.xlu0 %4196
      %4198 = vrot.lane.b32.xlu0 %v3562, 112
      %v4199 = vpop.permute.xlu0 %4198
      %4200 = vrot.lane.b32.xlu0 %v3565, 112
      %v4201 = vpop.permute.xlu0 %4200
      %4202 = vrot.lane.b32.xlu0 %v3568, 112
      %v4203 = vpop.permute.xlu0 %4202
      %4204 = vrot.lane.b32.xlu0 %v3571, 112
      %v4205 = vpop.permute.xlu0 %4204
      %4206 = vrot.lane.b32.xlu0 %v3574, 112
      %v4207 = vpop.permute.xlu0 %4206
      %v4216 = vsel %vm1654, %v4191, 0
      %4218 = vmatpush.msra.mxu0 0.0
      %4219 = vmatpush.msra.mxu0 0.0
      %4220 = vmatpush.msra.mxu0 0.0
      %4221 = vmatpush.msra.mxu0 0.0
      %4222 = vmatpush.msra.mxu0 0.0
      %4223 = vmatpush.msra.mxu0 0.0
      %4224 = vmatpush.msra.mxu0 0.0
      %4225 = vmatpush.msra.mxu0 0.0
      %4226 = vmatpush.msra.mxu0 %v4207
      %4227 = vmatpush.msra.mxu0 %v4205
      %4228 = vmatpush.msra.mxu0 %v4203
      %4229 = vmatpush.msra.mxu0 %v4201
      %4230 = vmatpush.msra.mxu0 %v4199
      %4231 = vmatpush.msra.mxu0 %v4197
      %4232 = vmatpush.msra.mxu0 %v4195
      %4233 = vmatpush.msra.mxu0 %v4193
      %4234 = vmatmul.f32.gmra.mxu0 %v4216
      %v4235 = vpop.f32.mrf.mxu0
      %v4236 = vadd.f32 0.0, %v4235
      %4237 = vdwg.mxu0
      %v4238 = vadd.f32 %v4189, %v4236
      %v4239 = vperm.slane %v3576, 7
      %4240 = vrot.lane.b32.xlu0 %v3553, 111
      %v4241 = vpop.permute.xlu0 %4240
      %4242 = vrot.lane.b32.xlu0 %v3556, 111
      %v4243 = vpop.permute.xlu0 %4242
      %4244 = vrot.lane.b32.xlu0 %v3559, 111
      %v4245 = vpop.permute.xlu0 %4244
      %4246 = vrot.lane.b32.xlu0 %v3562, 111
      %v4247 = vpop.permute.xlu0 %4246
      %4248 = vrot.lane.b32.xlu0 %v3565, 111
      %v4249 = vpop.permute.xlu0 %4248
      %4250 = vrot.lane.b32.xlu0 %v3568, 111
      %v4251 = vpop.permute.xlu0 %4250
      %4252 = vrot.lane.b32.xlu0 %v3571, 111
      %v4253 = vpop.permute.xlu0 %4252
      %4254 = vrot.lane.b32.xlu0 %v3574, 111
      %v4255 = vpop.permute.xlu0 %4254
      %v4264 = vsel %vm1654, %v4239, 0
      %4266 = vmatpush.msra.mxu0 0.0
      %4267 = vmatpush.msra.mxu0 0.0
      %4268 = vmatpush.msra.mxu0 0.0
      %4269 = vmatpush.msra.mxu0 0.0
      %4270 = vmatpush.msra.mxu0 0.0
      %4271 = vmatpush.msra.mxu0 0.0
      %4272 = vmatpush.msra.mxu0 0.0
      %4273 = vmatpush.msra.mxu0 0.0
      %4274 = vmatpush.msra.mxu0 %v4255
      %4275 = vmatpush.msra.mxu0 %v4253
      %4276 = vmatpush.msra.mxu0 %v4251
      %4277 = vmatpush.msra.mxu0 %v4249
      %4278 = vmatpush.msra.mxu0 %v4247
      %4279 = vmatpush.msra.mxu0 %v4245
      %4280 = vmatpush.msra.mxu0 %v4243
      %4281 = vmatpush.msra.mxu0 %v4241
      %4282 = vmatmul.f32.gmra.mxu0 %v4264
      %v4283 = vpop.f32.mrf.mxu0
      %v4284 = vadd.f32 0.0, %v4283
      %4285 = vdwg.mxu0
      %v4286 = vadd.f32 %v4238, %v4284
      %4287 = vrot.lane.b32.xlu0 %v4239, 64
      %v4288 = vpop.permute.xlu0 %4287
      %4289 = vrot.lane.b32.xlu0 %v3553, 110
      %v4290 = vpop.permute.xlu0 %4289
      %4291 = vrot.lane.b32.xlu0 %v3556, 110
      %v4292 = vpop.permute.xlu0 %4291
      %4293 = vrot.lane.b32.xlu0 %v3559, 110
      %v4294 = vpop.permute.xlu0 %4293
      %4295 = vrot.lane.b32.xlu0 %v3562, 110
      %v4296 = vpop.permute.xlu0 %4295
      %4297 = vrot.lane.b32.xlu0 %v3565, 110
      %v4298 = vpop.permute.xlu0 %4297
      %4299 = vrot.lane.b32.xlu0 %v3568, 110
      %v4300 = vpop.permute.xlu0 %4299
      %4301 = vrot.lane.b32.xlu0 %v3571, 110
      %v4302 = vpop.permute.xlu0 %4301
      %4303 = vrot.lane.b32.xlu0 %v3574, 110
      %v4304 = vpop.permute.xlu0 %4303
      %v4313 = vsel %vm1654, %v4288, 0
      %4315 = vmatpush.msra.mxu0 0.0
      %4316 = vmatpush.msra.mxu0 0.0
      %4317 = vmatpush.msra.mxu0 0.0
      %4318 = vmatpush.msra.mxu0 0.0
      %4319 = vmatpush.msra.mxu0 0.0
      %4320 = vmatpush.msra.mxu0 0.0
      %4321 = vmatpush.msra.mxu0 0.0
      %4322 = vmatpush.msra.mxu0 0.0
      %4323 = vmatpush.msra.mxu0 %v4304
      %4324 = vmatpush.msra.mxu0 %v4302
      %4325 = vmatpush.msra.mxu0 %v4300
      %4326 = vmatpush.msra.mxu0 %v4298
      %4327 = vmatpush.msra.mxu0 %v4296
      %4328 = vmatpush.msra.mxu0 %v4294
      %4329 = vmatpush.msra.mxu0 %v4292
      %4330 = vmatpush.msra.mxu0 %v4290
      %4331 = vmatmul.f32.gmra.mxu0 %v4313
      %v4332 = vpop.f32.mrf.mxu0
      %v4333 = vadd.f32 0.0, %v4332
      %4334 = vdwg.mxu0
      %v4335 = vadd.f32 %v4286, %v4333
      %v4336 = vld [vmem:[#allocation2] sm:$0x1]
      %4338 = vset.pattern.permute.xlu0 0
      %4339 = vperm.xlu0 %4338, %v4336
      %v4340 = vpop.permute.xlu0 %4339
      %v4342 = vperm.slane %v4340, 0
      %v4343 = vadd.f32 %v4335, %v4342
      %v4344 = vld [vmem:[%s15] sm:$0xff]
      %v4345 = vld [vmem:[%s15 + $0x8] sm:$0x3]
      %vm4346 = vcmask 80896
      %v4348 = vsel %vm4346, %v4343, 0
      %v4351 = vsel %vm3531, %v4345, 0
      %4353 = vmatpush.msra.mxu0 0.0
      %4354 = vmatpush.msra.mxu0 0.0
      %4355 = vmatpush.msra.mxu0 0.0
      %4356 = vmatpush.msra.mxu0 0.0
      %4357 = vmatpush.msra.mxu0 0.0
      %4358 = vmatpush.msra.mxu0 0.0
      %4359 = vmatpush.msra.mxu0 0.0
      %4360 = vmatpush.msra.mxu0 0.0
      %4361 = vmatpush.msra.mxu0 0.0
      %4362 = vmatpush.msra.mxu0 0.0
      %4363 = vmatpush.msra.mxu0 0.0
      %4364 = vmatpush.msra.mxu0 0.0
      %4365 = vmatpush.msra.mxu0 0.0
      %4366 = vmatpush.msra.mxu0 0.0
      %4367 = vmatpush.msra.mxu0 %v4351
      %4368 = vmatpush.msra.mxu0 %v4344
      %4369 = vmatmul.f32.gmra.mxu0 %v4348
      %v4370 = vpop.f32.mrf.mxu0
      %v4371 = vadd.f32 0.0, %v4370
      %4372 = vdwg.mxu0
      %vm4373 = vcmask 24576
      %4374 = vst.msk [vmem:[%s519] sm:$0x1] %vm4373, %v4371
      %p4375 = scmp.lt.s32.totalorder %s29, 1
      %s4376 = scalar_select %p4375, %s29, 1
      %s4377 = scalar_lea.vmem %s16, %s4376
      // Predicated region
      $region85: #{forward.1} parent=83 // pred_check
        %p4378 = pneg %p388
      $region86: #{forward.1} parent=83 // pred_check_branch
        %4380 = sbr.rel (%p4378) target = $region88
      $region87: #{forward.1} parent=83 // pred_region
        _
      $region88: #{forward.1} parent=83 // pred_fallthru
        _
    $region84: #{forward.1} parent=5 // pred_fallthru
      _
    %p4381 = scmp.le.s32.totalorder 2, %s24
    // Predicated region
    $region89: #{forward.1} parent=5 // pred_check
      %p4382 = pneg %p4381
    $region90: #{forward.1} parent=5 // pred_check_branch
      %4384 = sbr.rel (%p4382) target = $region92
    $region91: #{forward.1} parent=5 // pred_region
      %s4385 = ssub.s32 %s24, 2
      // Predicated region
      $region93: #{forward.1} parent=91 // pred_check
        %p4386 = pneg %p394
      $region94: #{forward.1} parent=91 // pred_check_branch
        %4388 = sbr.rel (%p4386) target = $region96
      $region95: #{forward.1} parent=91 // pred_region
        %p4389 = scmp.lt.s32.totalorder %s30, 1
        %s4390 = scalar_select %p4389, %s30, 1
        %s4391 = scalar_lea.vmem %s16, %s4390
      $region96: #{forward.1} parent=91 // pred_fallthru
        _
    $region92: #{forward.1} parent=5 // pred_fallthru
      _
  $region6: #{forward.1} parent=0 // loop_footer
    %s28 = sadd.s32 1, %s24
  $region7: #{forward.1} parent=0 // loop_footer_branch
    %23 = sbr.rel target = $region3
  $region8: #{forward.1} parent=0 // loop_exit
    _

</llo_original>
